<compile_context>
chip_gen: v6e
topology: v6e:2x2x1
jax: 0.10.0
libtpu: 0.0.40
codegen_flags: <defaults>
</compile_context>

<pallas_src>
import jax
import jax.numpy as jnp
from jax import lax
from jax.experimental import pallas as pl
from jax.experimental.pallas import tpu as pltpu

_EPS = 1e-5
_VMEM_LIMIT = 32 * 1024 * 1024     # safe on v5e/v6e/v7x; tiles below use only a few MiB


# ----------------------------------------------------------------- small helpers

def _round_up(x, m):
    return (x + m - 1) // m * m


def _pad2d(a, rows, cols):
    pr, pc = rows - a.shape[0], cols - a.shape[1]
    if pr == 0 and pc == 0:
        return a
    return jnp.pad(a, ((0, pr), (0, pc)))


def _tile_m(m):
    """M tile: 512 for long M; >=2 tiles for medium M (v7x has 2 TensorCores)."""
    if m >= 1024:
        return 512
    if m > 256:
        return _round_up((m + 1) // 2, 8)
    return _round_up(m, 8)


def _tile_last(p):
    """Tile size for a 128-aligned (padded) K or N extent."""
    for t in (512, 256, 128):
        if p % t == 0:
            return t
    return p


def _cparams(sem):
    return pltpu.CompilerParams(dimension_semantics=sem,
                                vmem_limit_bytes=_VMEM_LIMIT)


# ----------------------------------------------------------------- Pallas kernels

def _matmul_kernel(a_ref, b_ref, o_ref, acc_ref):
    """Tiled GEMM with f32 VMEM accumulator (P1 + P3); stores in o_ref.dtype."""
    k = pl.program_id(2)

    @pl.when(k == 0)
    def _():
        acc_ref[...] = jnp.zeros_like(acc_ref)

    acc_ref[...] += jnp.dot(a_ref[...], b_ref[...],
                            preferred_element_type=jnp.float32)

    @pl.when(k == pl.num_programs(2) - 1)
    def _():
        o_ref[...] = acc_ref[...].astype(o_ref.dtype)


def _conv_relu_stats_kernel(a_ref, b_ref, y_ref, st_ref, acc_ref):
    """GEMM -> ReLU (bf16 out), plus per-M-tile per-channel f32 (sum, sum_sq)."""
    k = pl.program_id(1)

    @pl.when(k == 0)
    def _():
        acc_ref[...] = jnp.zeros_like(acc_ref)

    acc_ref[...] += jnp.dot(a_ref[...], b_ref[...],
                            preferred_element_type=jnp.float32)

    @pl.when(k == pl.num_programs(1) - 1)
    def _():
        y = jnp.maximum(acc_ref[...], 0.0)
        y_ref[...] = y.astype(y_ref.dtype)
        # Zero-padded rows/channels contribute nothing to the raw moments, so the
        # host just divides by the true element count.
        s1 = jnp.sum(y, axis=0, keepdims=True)
        s2 = jnp.sum(y * y, axis=0, keepdims=True)
        st_ref[...] = jnp.concatenate([s1, s2], axis=0)[None]


def _affine_kernel(y_ref, s_ref, b_ref, o_ref):
    """Per-channel affine: o = y * scale + shift (BatchNorm apply)."""
    o_ref[...] = (y_ref[...].astype(jnp.float32) * s_ref[...]
                  + b_ref[...]).astype(o_ref.dtype)


# ----------------------------------------------------------------- GEMM wrappers

def _gemm(a, b, out_dtype=jnp.bfloat16, compute_dtype=jnp.bfloat16):
    """a: (M, K), b: (K, N) -> (M, N) out_dtype via tiled bf16 MXU GEMM.

    K and N are zero-padded to multiples of 128 (aligned loads, lane-dense
    stores); the result is sliced back to (M, N)."""
    m, k = a.shape
    _, n = b.shape
    tm = _tile_m(m)
    mp = _round_up(m, tm)
    kp = _round_up(k, 128)
    np_ = _round_up(n, 128)
    tk = _tile_last(kp)
    tn = _tile_last(np_)
    a_p = _pad2d(a.astype(compute_dtype), mp, kp)
    b_p = _pad2d(b.astype(compute_dtype), kp, np_)
    grid = (mp // tm, np_ // tn, kp // tk)
    out = pl.pallas_call(
        _matmul_kernel,
        grid=grid,
        in_specs=[pl.BlockSpec((tm, tk), lambda i, j, kk: (i, kk)),
                  pl.BlockSpec((tk, tn), lambda i, j, kk: (kk, j))],
        out_specs=pl.BlockSpec((tm, tn), lambda i, j, kk: (i, j)),
        out_shape=jax.ShapeDtypeStruct((mp, np_), out_dtype),
        scratch_shapes=[pltpu.VMEM((tm, tn), jnp.float32)],
        compiler_params=_cparams(("parallel", "parallel", "arbitrary")),
        cost_estimate=pl.CostEstimate(
            flops=2 * mp * kp * np_, transcendentals=0,
            bytes_accessed=a_p.size * a_p.dtype.itemsize
            + b_p.size * b_p.dtype.itemsize
            + mp * np_ * jnp.dtype(out_dtype).itemsize),
    )(a_p, b_p)
    return out[:m, :n]


def _conv_gemm_relu_stats(a, b, compute_dtype=jnp.bfloat16):
    """relu(a @ b) (bf16, lane-dense padded N) + per-M-tile (sum, sum_sq).

    Returns (y_pad (Mp, Np) bf16, stats (num_m, 2, Np) f32, tm)."""
    m, k = a.shape
    _, n = b.shape
    tm = _tile_m(m)
    mp = _round_up(m, tm)
    kp = _round_up(k, 128)
    np_ = _round_up(n, 128)
    tk = _tile_last(kp)
    num_m, num_k = mp // tm, kp // tk
    a_p = _pad2d(a.astype(compute_dtype), mp, kp)
    b_p = _pad2d(b.astype(compute_dtype), kp, np_)
    # TODO(synk): tile N as well when Cout is very large (>=512) to bound the
    # untiled (tk, Np)/(tm, Np) blocks on v7x's 64 MiB VMEM.
    y, st = pl.pallas_call(
        _conv_relu_stats_kernel,
        grid=(num_m, num_k),
        in_specs=[pl.BlockSpec((tm, tk), lambda i, kk: (i, kk)),
                  pl.BlockSpec((tk, np_), lambda i, kk: (kk, 0))],
        out_specs=(pl.BlockSpec((tm, np_), lambda i, kk: (i, 0)),
                   pl.BlockSpec((1, 2, np_), lambda i, kk: (i, 0, 0))),
        out_shape=(jax.ShapeDtypeStruct((mp, np_), jnp.bfloat16),
                   jax.ShapeDtypeStruct((num_m, 2, np_), jnp.float32)),
        scratch_shapes=[pltpu.VMEM((tm, np_), jnp.float32)],
        compiler_params=_cparams(("parallel", "arbitrary")),
        cost_estimate=pl.CostEstimate(
            flops=2 * mp * kp * np_, transcendentals=0,
            bytes_accessed=a_p.size * a_p.dtype.itemsize
            + b_p.size * b_p.dtype.itemsize
            + mp * np_ * 2 + num_m * 2 * np_ * 4),
    )(a_p, b_p)
    return y, st, tm


def _apply_affine(y_pad, scale, shift, tm, out_dtype):
    """Per-channel affine over an (Mp, Np) activation slab (lane-dense Np)."""
    mp, np_ = y_pad.shape
    return pl.pallas_call(
        _affine_kernel,
        grid=(mp // tm,),
        in_specs=[pl.BlockSpec((tm, np_), lambda i: (i, 0)),
                  pl.BlockSpec((1, np_), lambda i: (0, 0)),
                  pl.BlockSpec((1, np_), lambda i: (0, 0))],
        out_specs=pl.BlockSpec((tm, np_), lambda i: (i, 0)),
        out_shape=jax.ShapeDtypeStruct((mp, np_), out_dtype),
        compiler_params=_cparams(("parallel",)),
    )(y_pad, scale.reshape(1, np_).astype(jnp.float32),
      shift.reshape(1, np_).astype(jnp.float32))


# ----------------------------------------------------------------- conv glue (channels-last, bf16)

def _im2col_3x3x3(x):
    """(N, D, H, W, C) -> (N*D*H*W, 27*C); pad=1; column order (kd, kh, kw, c)."""
    n, d, h, w, c = x.shape
    xp = jnp.pad(x, ((0, 0), (1, 1), (1, 1), (1, 1), (0, 0)))
    cols = [xp[:, kd:kd + d, kh:kh + h, kw:kw + w, :]
            for kd in range(3) for kh in range(3) for kw in range(3)]
    return jnp.stack(cols, axis=4).reshape(n * d * h * w, 27 * c)


def _im2col_2x2x2(xp):
    """(N, D+2, H+2, W+2, C) (already padded) -> (N*(D+1)*(H+1)*(W+1), 8*C)."""
    n, dp, hp, wp, c = xp.shape
    do, ho, wo = dp - 1, hp - 1, wp - 1
    cols = [xp[:, kd:kd + do, kh:kh + ho, kw:kw + wo, :]
            for kd in range(2) for kh in range(2) for kw in range(2)]
    return jnp.stack(cols, axis=4).reshape(n * do * ho * wo, 8 * c)


def conv3x3_relu_bn(x, w, gamma, beta, eps=_EPS, out_dtype=jnp.bfloat16):
    """Conv3d(3, pad=1, no bias) -> ReLU -> BatchNorm3d (train-mode batch stats).

    x: (N, D, H, W, Cin) channels-last bf16; w: (Cout, Cin, 3, 3, 3) PyTorch layout."""
    n, d, h, ww, cin = x.shape
    cout = w.shape[0]
    patches = _im2col_3x3x3(x)                                    # bf16 (M, 27*Cin)
    w_mat = w.transpose(2, 3, 4, 1, 0).reshape(27 * cin, cout)    # (27*Cin, Cout)
    m = patches.shape[0]

    y_pad, st, tm = _conv_gemm_relu_stats(patches, w_mat)
    np_ = y_pad.shape[1]
    s = jnp.sum(st, axis=0)                                       # (2, Np)
    mean = s[0] / m
    var = jnp.maximum(s[1] / m - mean * mean, 0.0)                # biased var, clamped
    gamma_p = jnp.pad(gamma, (0, np_ - cout))                     # padded channels -> 0
    beta_p = jnp.pad(beta, (0, np_ - cout))
    scale = gamma_p * lax.rsqrt(var + eps)
    shift = beta_p - mean * scale

    z = _apply_affine(y_pad, scale, shift, tm, out_dtype)[:m, :cout]
    return z.reshape(n, d, h, ww, cout)


def conv_transpose4x4x4_s2(x, wt):
    """ConvTranspose3d(k=4, s=2, p=1, no bias) via output-parity decomposition.

    x: (N, D, H, W, Cin) channels-last bf16; wt: (Cin, Cout, 4, 4, 4) PyTorch layout.
    Output voxel (2m+qd, 2h+qh, 2w+qw) only touches the 8 kernel taps with index
    parity (qd, qh, qw): 8 stride-1 2x2x2 sub-convolutions sharing one kernel-size-2
    im2col of the once-padded input (no zero-dilated input, no redundant MACs)."""
    n, d, h, w, cin = x.shape
    cout = wt.shape[1]
    xp = jnp.pad(x, ((0, 0), (1, 1), (1, 1), (1, 1), (0, 0)))
    patches = _im2col_2x2x2(xp)                                   # bf16 (M, 8*Cin)

    # Regular-conv-equivalent (flipped, channel-swapped) kernel, then split every
    # size-4 kernel axis into (tap t, parity q) with kernel index = 2*t + q.
    w_eq = jnp.flip(wt, axis=(2, 3, 4)).transpose(1, 0, 2, 3, 4)  # (Cout, Cin, 4, 4, 4)
    w_r = w_eq.reshape(cout, cin, 2, 2, 2, 2, 2, 2)               # (co,ci,td,qd,th,qh,tw,qw)
    w_all = w_r.transpose(2, 4, 6, 1, 3, 5, 7, 0).reshape(8 * cin, 8 * cout)

    r = _gemm(patches, w_all, out_dtype=jnp.bfloat16)             # (M, 8*Cout) bf16
    # TODO(synk): fold this parity interleave into the next layer's im2col / the
    # GEMM out index_map to avoid the XLA-level full-tensor shuffle (bf16 already
    # halves its traffic).
    r = r.reshape(n, d + 1, h + 1, w + 1, 2, 2, 2, cout)
    parts = [r[:, qd:qd + d, qh:qh + h, qw:qw + w, qd, qh, qw, :]
             for qd in range(2) for qh in range(2) for qw in range(2)]
    y = jnp.stack(parts, axis=4).reshape(n, d, h, w, 2, 2, 2, cout)
    y = y.transpose(0, 1, 4, 2, 5, 3, 6, 7).reshape(n, 2 * d, 2 * h, 2 * w, cout)
    return y


# ----------------------------------------------------------------- model

def init_params(key, in_channel):
    c = in_channel // 2
    ks = jax.random.split(key, 7)
    return dict(
        up_w=0.1 * jax.random.normal(ks[0], (in_channel, c, 4, 4, 4), jnp.float32),
        c1_w=0.1 * jax.random.normal(ks[1], (c, c, 3, 3, 3), jnp.float32),
        bn1_g=1.0 + 0.1 * jax.random.normal(ks[2], (c,), jnp.float32),
        bn1_b=0.1 * jax.random.normal(ks[3], (c,), jnp.float32),
        c2_w=0.1 * jax.random.normal(ks[4], (c, c, 3, 3, 3), jnp.float32),
        bn2_g=1.0 + 0.1 * jax.random.normal(ks[5], (c,), jnp.float32),
        bn2_b=0.1 * jax.random.normal(ks[6], (c,), jnp.float32),
    )


@jax.jit
def g_forward(x, p):
    """x: (N, Cin, D, H, W) NCDHW (PyTorch convention) -> (N, Cin//2, 2D, 2H, 2W)."""
    xl = x.transpose(0, 2, 3, 4, 1).astype(jnp.bfloat16)          # channels-last bf16 once
    xl = conv_transpose4x4x4_s2(xl, p["up_w"])                    # self.up
    xl = conv3x3_relu_bn(xl, p["c1_w"], p["bn1_g"], p["bn1_b"],
                         out_dtype=jnp.bfloat16)                  # conv -> relu -> bn
    xl = conv3x3_relu_bn(xl, p["c2_w"], p["bn2_g"], p["bn2_b"],
                         out_dtype=jnp.float32)                   # final layer in f32
    return xl.transpose(0, 4, 1, 2, 3)                            # back to NCDHW


# ----------------------------------------------------------------- pure-JAX reference

def g_reference(x, p):
    dn = ("NCDHW", "OIDHW", "NCDHW")
    w_eq = jnp.flip(p["up_w"], axis=(2, 3, 4)).transpose(1, 0, 2, 3, 4)
    x = lax.conv_general_dilated(x, w_eq, (1, 1, 1), [(2, 2)] * 3,
                                 lhs_dilation=(2, 2, 2), dimension_numbers=dn)

    def block(x, w, g, b):
        y = lax.conv_general_dilated(x, w, (1, 1, 1), [(1, 1)] * 3,
                                     dimension_numbers=dn)
        y = jnp.maximum(y, 0.0)
        m = jnp.mean(y, axis=(0, 2, 3, 4), keepdims=True)
        v = jnp.mean((y - m) ** 2, axis=(0, 2, 3, 4), keepdims=True)
        return ((y - m) * lax.rsqrt(v + _EPS) * g.reshape(1, -1, 1, 1, 1)
                + b.reshape(1, -1, 1, 1, 1))

    x = block(x, p["c1_w"], p["bn1_g"], p["bn1_b"])
    x = block(x, p["c2_w"], p["bn2_g"], p["bn2_b"])
    return x


if __name__ == "__main__":
    in_channel = 8                       # C = in_channel // 2 = 4
    key = jax.random.PRNGKey(0)
    kx, kp = jax.random.split(key)

    x = jax.random.normal(kx, (2, in_channel, 8, 8, 8), jnp.float32)   # NCDHW
    params = init_params(kp, in_channel)

    out = jax.block_until_ready(g_forward(x, params))
    assert out.shape == (2, in_channel // 2, 16, 16, 16), out.shape

    ref = jax.block_until_ready(g_reference(x, params))
    # bf16 MXU operands / bf16 intermediates (with f32 accumulation and f32 BN
    # statistics) bound the achievable accuracy.
    err = float(jnp.max(jnp.abs(out - ref)))
    tol = 5e-2 * (1.0 + float(jnp.max(jnp.abs(ref))))
    assert err < tol, f"mismatch vs reference: {err} (tol {tol})"

    print("KERNEL_OK")
</pallas_src>

<mosaic_0001>
module attributes {stable_mosaic.version = 11 : i64} {
  func.func @_matmul_kernel(%arg0: i32, %arg1: i32, %arg2: i32, %arg3: memref<512x128xbf16, #tpu.memory_space<vmem>>, %arg4: memref<128x128xbf16, #tpu.memory_space<vmem>>, %arg5: memref<512x128xbf16, #tpu.memory_space<vmem>>, %arg6: memref<512x128xf32, #tpu.memory_space<vmem>>) attributes {dimension_semantics = [#tpu.dimension_semantics<parallel>, #tpu.dimension_semantics<parallel>, #tpu.dimension_semantics<arbitrary>], iteration_bounds = array<i64: 3, 1, 1>, scalar_prefetch = 0 : i64, scratch_operands = 1 : i64, tpu.core_type = #tpu.core_type<tc>, window_params = [{transform_indices = @transform_0, window_bounds = array<i64: 512, 128>}, {transform_indices = @transform_1, window_bounds = array<i64: 128, 128>}, {transform_indices = @transform_2, window_bounds = array<i64: 512, 128>}]} {
    %c0_i32 = arith.constant 0 : i32
    %0 = arith.cmpi eq, %arg2, %c0_i32 : i32
    %1 = arith.extui %0 : i1 to i32
    %c0_i32_0 = arith.constant 0 : i32
    %2 = arith.cmpi ne, %1, %c0_i32_0 : i32
    scf.if %2 {
      %cst_10 = arith.constant 0.000000e+00 : f32
      %12 = vector.broadcast %cst_10 : f32 to vector<512x128xf32>
      %c0_11 = arith.constant 0 : index
      %c0_12 = arith.constant 0 : index
      %13 = vector.load %arg6[%c0_11, %c0_12] : memref<512x128xf32, #tpu.memory_space<vmem>>, vector<512x128xf32>
      tpu.vector_store %arg6[%c0_11, %c0_12], %12 {strides = array<i32>} : memref<512x128xf32, #tpu.memory_space<vmem>>, vector<512x128xf32>,
    } else {
    }
    %c0 = arith.constant 0 : index
    %c0_1 = arith.constant 0 : index
    %3 = vector.load %arg6[%c0, %c0_1] : memref<512x128xf32, #tpu.memory_space<vmem>>, vector<512x128xf32>
    %c0_2 = arith.constant 0 : index
    %c0_3 = arith.constant 0 : index
    %4 = vector.load %arg3[%c0_2, %c0_3] : memref<512x128xbf16, #tpu.memory_space<vmem>>, vector<512x128xbf16>
    %c0_4 = arith.constant 0 : index
    %c0_5 = arith.constant 0 : index
    %5 = vector.load %arg4[%c0_4, %c0_5] : memref<128x128xbf16, #tpu.memory_space<vmem>>, vector<128x128xbf16>
    %cst = arith.constant dense<0.000000e+00> : vector<512x128xf32>
    %6 = tpu.matmul %4, %5, %cst {dimension_numbers = #tpu.dot_dimension_numbers<[1], [0], [0], [1], [0, 0, 1, 1], [], []>} : vector<512x128xbf16>, vector<128x128xbf16>, vector<512x128xf32> -> vector<512x128xf32>
    %7 = arith.addf %3, %6 : vector<512x128xf32>
    %c0_6 = arith.constant 0 : index
    %c0_7 = arith.constant 0 : index
    %8 = vector.load %arg6[%c0_6, %c0_7] : memref<512x128xf32, #tpu.memory_space<vmem>>, vector<512x128xf32>
    tpu.vector_store %arg6[%c0_6, %c0_7], %7 {strides = array<i32>} : memref<512x128xf32, #tpu.memory_space<vmem>>, vector<512x128xf32>,
    %c0_i32_8 = arith.constant 0 : i32
    %9 = arith.cmpi eq, %arg2, %c0_i32_8 : i32
    %10 = arith.extui %9 : i1 to i32
    %c0_i32_9 = arith.constant 0 : i32
    %11 = arith.cmpi ne, %10, %c0_i32_9 : i32
    scf.if %11 {
      %c0_10 = arith.constant 0 : index
      %c0_11 = arith.constant 0 : index
      %12 = vector.load %arg6[%c0_10, %c0_11] : memref<512x128xf32, #tpu.memory_space<vmem>>, vector<512x128xf32>
      %13 = arith.truncf %12 : vector<512x128xf32> to vector<512x128xbf16>
      %c0_12 = arith.constant 0 : index
      %c0_13 = arith.constant 0 : index
      %14 = vector.load %arg5[%c0_12, %c0_13] : memref<512x128xbf16, #tpu.memory_space<vmem>>, vector<512x128xbf16>
      tpu.vector_store %arg5[%c0_12, %c0_13], %13 {strides = array<i32>} : memref<512x128xbf16, #tpu.memory_space<vmem>>, vector<512x128xbf16>,
    } else {
    }
    return
  }
  func.func @transform_0(%arg0: i32, %arg1: i32, %arg2: i32) -> (i32, i32) {
    %c0_i32 = arith.constant 0 : i32
    return %arg0, %arg2 : i32, i32
  }
  func.func @transform_1(%arg0: i32, %arg1: i32, %arg2: i32) -> (i32, i32) {
    %c0_i32 = arith.constant 0 : i32
    return %arg2, %arg1 : i32, i32
  }
  func.func @transform_2(%arg0: i32, %arg1: i32, %arg2: i32) -> (i32, i32) {
    %c0_i32 = arith.constant 0 : i32
    return %arg0, %arg1 : i32, i32
  }
}

module attributes {stable_mosaic.version = 11 : i64} {
  func.func @_conv_relu_stats_kernel(%arg0: i32, %arg1: i32, %arg2: memref<512x128xbf16, #tpu.memory_space<vmem>>, %arg3: memref<128x128xbf16, #tpu.memory_space<vmem>>, %arg4: memref<512x128xbf16, #tpu.memory_space<vmem>>, %arg5: memref<1x2x128xf32, #tpu.memory_space<vmem>>, %arg6: memref<512x128xf32, #tpu.memory_space<vmem>>) attributes {dimension_semantics = [#tpu.dimension_semantics<parallel>, #tpu.dimension_semantics<arbitrary>], iteration_bounds = array<i64: 16, 1>, scalar_prefetch = 0 : i64, scratch_operands = 1 : i64, tpu.core_type = #tpu.core_type<tc>, window_params = [{transform_indices = @transform_0, window_bounds = array<i64: 512, 128>}, {transform_indices = @transform_1, window_bounds = array<i64: 128, 128>}, {transform_indices = @transform_2, window_bounds = array<i64: 512, 128>}, {transform_indices = @transform_3, window_bounds = array<i64: 1, 2, 128>}]} {
    %c0_i32 = arith.constant 0 : i32
    %0 = arith.cmpi eq, %arg1, %c0_i32 : i32
    %1 = arith.extui %0 : i1 to i32
    %c0_i32_0 = arith.constant 0 : i32
    %2 = arith.cmpi ne, %1, %c0_i32_0 : i32
    scf.if %2 {
      %cst_10 = arith.constant 0.000000e+00 : f32
      %12 = vector.broadcast %cst_10 : f32 to vector<512x128xf32>
      %c0_11 = arith.constant 0 : index
      %c0_12 = arith.constant 0 : index
      %13 = vector.load %arg6[%c0_11, %c0_12] : memref<512x128xf32, #tpu.memory_space<vmem>>, vector<512x128xf32>
      tpu.vector_store %arg6[%c0_11, %c0_12], %12 {strides = array<i32>} : memref<512x128xf32, #tpu.memory_space<vmem>>, vector<512x128xf32>,
    } else {
    }
    %c0 = arith.constant 0 : index
    %c0_1 = arith.constant 0 : index
    %3 = vector.load %arg6[%c0, %c0_1] : memref<512x128xf32, #tpu.memory_space<vmem>>, vector<512x128xf32>
    %c0_2 = arith.constant 0 : index
    %c0_3 = arith.constant 0 : index
    %4 = vector.load %arg2[%c0_2, %c0_3] : memref<512x128xbf16, #tpu.memory_space<vmem>>, vector<512x128xbf16>
    %c0_4 = arith.constant 0 : index
    %c0_5 = arith.constant 0 : index
    %5 = vector.load %arg3[%c0_4, %c0_5] : memref<128x128xbf16, #tpu.memory_space<vmem>>, vector<128x128xbf16>
    %cst = arith.constant dense<0.000000e+00> : vector<512x128xf32>
    %6 = tpu.matmul %4, %5, %cst {dimension_numbers = #tpu.dot_dimension_numbers<[1], [0], [0], [1], [0, 0, 1, 1], [], []>} : vector<512x128xbf16>, vector<128x128xbf16>, vector<512x128xf32> -> vector<512x128xf32>
    %7 = arith.addf %3, %6 : vector<512x128xf32>
    %c0_6 = arith.constant 0 : index
    %c0_7 = arith.constant 0 : index
    %8 = vector.load %arg6[%c0_6, %c0_7] : memref<512x128xf32, #tpu.memory_space<vmem>>, vector<512x128xf32>
    tpu.vector_store %arg6[%c0_6, %c0_7], %7 {strides = array<i32>} : memref<512x128xf32, #tpu.memory_space<vmem>>, vector<512x128xf32>,
    %c0_i32_8 = arith.constant 0 : i32
    %9 = arith.cmpi eq, %arg1, %c0_i32_8 : i32
    %10 = arith.extui %9 : i1 to i32
    %c0_i32_9 = arith.constant 0 : i32
    %11 = arith.cmpi ne, %10, %c0_i32_9 : i32
    scf.if %11 {
      %c0_10 = arith.constant 0 : index
      %c0_11 = arith.constant 0 : index
      %12 = vector.load %arg6[%c0_10, %c0_11] : memref<512x128xf32, #tpu.memory_space<vmem>>, vector<512x128xf32>
      %cst_12 = arith.constant 0.000000e+00 : f32
      %13 = vector.broadcast %cst_12 : f32 to vector<512x128xf32>
      %14 = arith.maximumf %12, %13 : vector<512x128xf32>
      %15 = arith.truncf %14 : vector<512x128xf32> to vector<512x128xbf16>
      %c0_13 = arith.constant 0 : index
      %c0_14 = arith.constant 0 : index
      %16 = vector.load %arg4[%c0_13, %c0_14] : memref<512x128xbf16, #tpu.memory_space<vmem>>, vector<512x128xbf16>
      tpu.vector_store %arg4[%c0_13, %c0_14], %15 {strides = array<i32>} : memref<512x128xbf16, #tpu.memory_space<vmem>>, vector<512x128xbf16>,
      %cst_15 = arith.constant dense<0.000000e+00> : vector<128xf32>
      %17 = vector.multi_reduction <add>, %14, %cst_15 [0] : vector<512x128xf32> to vector<128xf32>
      %18 = vector.shape_cast %17 : vector<128xf32> to vector<1x128xf32>
      %19 = arith.mulf %14, %14 : vector<512x128xf32>
      %cst_16 = arith.constant dense<0.000000e+00> : vector<128xf32>
      %20 = vector.multi_reduction <add>, %19, %cst_16 [0] : vector<512x128xf32> to vector<128xf32>
      %21 = vector.shape_cast %20 : vector<128xf32> to vector<1x128xf32>
      %22 = tpu.concatenate %18, %21 in 0 : vector<1x128xf32>, vector<1x128xf32> -> vector<2x128xf32>
      %23 = vector.shape_cast %22 : vector<2x128xf32> to vector<1x2x128xf32>
      %c0_17 = arith.constant 0 : index
      %c0_18 = arith.constant 0 : index
      %c0_19 = arith.constant 0 : index
      %24 = vector.load %arg5[%c0_17, %c0_18, %c0_19] : memref<1x2x128xf32, #tpu.memory_space<vmem>>, vector<1x2x128xf32>
      tpu.vector_store %arg5[%c0_17, %c0_18, %c0_19], %23 {strides = array<i32>} : memref<1x2x128xf32, #tpu.memory_space<vmem>>, vector<1x2x128xf32>,
    } else {
    }
    return
  }
  func.func @transform_0(%arg0: i32, %arg1: i32) -> (i32, i32) {
    %c0_i32 = arith.constant 0 : i32
    return %arg0, %arg1 : i32, i32
  }
  func.func @transform_1(%arg0: i32, %arg1: i32) -> (i32, i32) {
    %c0_i32 = arith.constant 0 : i32
    %c0_i32_0 = arith.constant 0 : i32
    return %arg1, %c0_i32 : i32, i32
  }
  func.func @transform_2(%arg0: i32, %arg1: i32) -> (i32, i32) {
    %c0_i32 = arith.constant 0 : i32
    %c0_i32_0 = arith.constant 0 : i32
    return %arg0, %c0_i32 : i32, i32
  }
  func.func @transform_3(%arg0: i32, %arg1: i32) -> (i32, i32, i32) {
    %c0_i32 = arith.constant 0 : i32
    %c0_i32_0 = arith.constant 0 : i32
    %c0_i32_1 = arith.constant 0 : i32
    return %arg0, %c0_i32, %c0_i32_0 : i32, i32, i32
  }
}

module attributes {stable_mosaic.version = 11 : i64} {
  func.func @_affine_kernel(%arg0: i32, %arg1: memref<512x128xbf16, #tpu.memory_space<vmem>>, %arg2: memref<1x128xf32, #tpu.memory_space<vmem>>, %arg3: memref<1x128xf32, #tpu.memory_space<vmem>>, %arg4: memref<512x128xbf16, #tpu.memory_space<vmem>>) attributes {dimension_semantics = [#tpu.dimension_semantics<parallel>], iteration_bounds = array<i64: 16>, scalar_prefetch = 0 : i64, scratch_operands = 0 : i64, tpu.core_type = #tpu.core_type<tc>, window_params = [{transform_indices = @transform_0, window_bounds = array<i64: 512, 128>}, {pipeline_mode = #tpu.pipeline_mode<synchronous>, transform_indices = @transform_1, window_bounds = array<i64: 1, 128>}, {pipeline_mode = #tpu.pipeline_mode<synchronous>, transform_indices = @transform_2, window_bounds = array<i64: 1, 128>}, {transform_indices = @transform_3, window_bounds = array<i64: 512, 128>}]} {
    %c0 = arith.constant 0 : index
    %c0_0 = arith.constant 0 : index
    %0 = vector.load %arg1[%c0, %c0_0] : memref<512x128xbf16, #tpu.memory_space<vmem>>, vector<512x128xbf16>
    %1 = arith.extf %0 : vector<512x128xbf16> to vector<512x128xf32>
    %c0_1 = arith.constant 0 : index
    %c0_2 = arith.constant 0 : index
    %2 = vector.load %arg2[%c0_1, %c0_2] : memref<1x128xf32, #tpu.memory_space<vmem>>, vector<1x128xf32>
    %3 = vector.broadcast %2 : vector<1x128xf32> to vector<512x128xf32>
    %4 = arith.mulf %1, %3 : vector<512x128xf32>
    %c0_3 = arith.constant 0 : index
    %c0_4 = arith.constant 0 : index
    %5 = vector.load %arg3[%c0_3, %c0_4] : memref<1x128xf32, #tpu.memory_space<vmem>>, vector<1x128xf32>
    %6 = vector.broadcast %5 : vector<1x128xf32> to vector<512x128xf32>
    %7 = arith.addf %4, %6 : vector<512x128xf32>
    %8 = arith.truncf %7 : vector<512x128xf32> to vector<512x128xbf16>
    %c0_5 = arith.constant 0 : index
    %c0_6 = arith.constant 0 : index
    %9 = vector.load %arg4[%c0_5, %c0_6] : memref<512x128xbf16, #tpu.memory_space<vmem>>, vector<512x128xbf16>
    tpu.vector_store %arg4[%c0_5, %c0_6], %8 {strides = array<i32>} : memref<512x128xbf16, #tpu.memory_space<vmem>>, vector<512x128xbf16>,
    return
  }
  func.func @transform_0(%arg0: i32) -> (i32, i32) {
    %c0_i32 = arith.constant 0 : i32
    %c0_i32_0 = arith.constant 0 : i32
    return %arg0, %c0_i32 : i32, i32
  }
  func.func @transform_1(%arg0: i32) -> (i32, i32) {
    %c0_i32 = arith.constant 0 : i32
    %c0_i32_0 = arith.constant 0 : i32
    %c0_i32_1 = arith.constant 0 : i32
    return %c0_i32, %c0_i32_0 : i32, i32
  }
  func.func @transform_2(%arg0: i32) -> (i32, i32) {
    %c0_i32 = arith.constant 0 : i32
    %c0_i32_0 = arith.constant 0 : i32
    %c0_i32_1 = arith.constant 0 : i32
    return %c0_i32, %c0_i32_0 : i32, i32
  }
  func.func @transform_3(%arg0: i32) -> (i32, i32) {
    %c0_i32 = arith.constant 0 : i32
    %c0_i32_0 = arith.constant 0 : i32
    return %arg0, %c0_i32 : i32, i32
  }
}

module attributes {stable_mosaic.version = 11 : i64} {
  func.func @_affine_kernel(%arg0: i32, %arg1: memref<512x128xbf16, #tpu.memory_space<vmem>>, %arg2: memref<1x128xf32, #tpu.memory_space<vmem>>, %arg3: memref<1x128xf32, #tpu.memory_space<vmem>>, %arg4: memref<512x128xf32, #tpu.memory_space<vmem>>) attributes {dimension_semantics = [#tpu.dimension_semantics<parallel>], iteration_bounds = array<i64: 16>, scalar_prefetch = 0 : i64, scratch_operands = 0 : i64, tpu.core_type = #tpu.core_type<tc>, window_params = [{transform_indices = @transform_0, window_bounds = array<i64: 512, 128>}, {pipeline_mode = #tpu.pipeline_mode<synchronous>, transform_indices = @transform_1, window_bounds = array<i64: 1, 128>}, {pipeline_mode = #tpu.pipeline_mode<synchronous>, transform_indices = @transform_2, window_bounds = array<i64: 1, 128>}, {transform_indices = @transform_3, window_bounds = array<i64: 512, 128>}]} {
    %c0 = arith.constant 0 : index
    %c0_0 = arith.constant 0 : index
    %0 = vector.load %arg1[%c0, %c0_0] : memref<512x128xbf16, #tpu.memory_space<vmem>>, vector<512x128xbf16>
    %1 = arith.extf %0 : vector<512x128xbf16> to vector<512x128xf32>
    %c0_1 = arith.constant 0 : index
    %c0_2 = arith.constant 0 : index
    %2 = vector.load %arg2[%c0_1, %c0_2] : memref<1x128xf32, #tpu.memory_space<vmem>>, vector<1x128xf32>
    %3 = vector.broadcast %2 : vector<1x128xf32> to vector<512x128xf32>
    %4 = arith.mulf %1, %3 : vector<512x128xf32>
    %c0_3 = arith.constant 0 : index
    %c0_4 = arith.constant 0 : index
    %5 = vector.load %arg3[%c0_3, %c0_4] : memref<1x128xf32, #tpu.memory_space<vmem>>, vector<1x128xf32>
    %6 = vector.broadcast %5 : vector<1x128xf32> to vector<512x128xf32>
    %7 = arith.addf %4, %6 : vector<512x128xf32>
    %c0_5 = arith.constant 0 : index
    %c0_6 = arith.constant 0 : index
    %8 = vector.load %arg4[%c0_5, %c0_6] : memref<512x128xf32, #tpu.memory_space<vmem>>, vector<512x128xf32>
    tpu.vector_store %arg4[%c0_5, %c0_6], %7 {strides = array<i32>} : memref<512x128xf32, #tpu.memory_space<vmem>>, vector<512x128xf32>,
    return
  }
  func.func @transform_0(%arg0: i32) -> (i32, i32) {
    %c0_i32 = arith.constant 0 : i32
    %c0_i32_0 = arith.constant 0 : i32
    return %arg0, %c0_i32 : i32, i32
  }
  func.func @transform_1(%arg0: i32) -> (i32, i32) {
    %c0_i32 = arith.constant 0 : i32
    %c0_i32_0 = arith.constant 0 : i32
    %c0_i32_1 = arith.constant 0 : i32
    return %c0_i32, %c0_i32_0 : i32, i32
  }
  func.func @transform_2(%arg0: i32) -> (i32, i32) {
    %c0_i32 = arith.constant 0 : i32
    %c0_i32_0 = arith.constant 0 : i32
    %c0_i32_1 = arith.constant 0 : i32
    return %c0_i32, %c0_i32_0 : i32, i32
  }
  func.func @transform_3(%arg0: i32) -> (i32, i32) {
    %c0_i32 = arith.constant 0 : i32
    %c0_i32_0 = arith.constant 0 : i32
    return %arg0, %c0_i32 : i32, i32
  }
}

</mosaic_0001>

<llo_original>
// kernel: g_forward.5
$region0: #{g_forward.5}
  #allocation0 [shape = 'u32[]', space=smem, size = 0x4, offset = 0x4, fixed_abs, tag = 'smem constant byte address 0x4 - core index']
  #allocation1 [shape = 'u32[144,128]{1,0:T(1,128)}', space=vmem, size = 0x12000, scoped, tag = 'internal scratch']
  #allocation2 [shape = 'f32[512,128]{1,0:T(8,128)}', space=vmem, size = 0x40000, scoped, tag = 'scratch operand']
  %s0 = inlined_call_operand.vmem [shape: bf16[1536,128], index: 0, kind: input, shape index: {}]
  %s1 = inlined_call_operand.vmem [shape: bf16[128,128], index: 1, kind: input, shape index: {}]
  %s2 = inlined_call_operand.vmem [shape: bf16[1536,128], index: 2, kind: output, shape index: {}]
  %s3 = sld [smem:[#allocation0]]
  $region49: #{g_forward.5} parent=0
    _
  %s5 = ssub.s32 1, %s3
  %s6 = scalar_select 0, %s5, %s3
  loop: start=0, step=1, limit=5
  $region2: #{g_forward.5} parent=0 // loop_pre_header
    _
  $region3: #{g_forward.5} parent=0 // loop_header
    %s8 = sphi 0, %s12
    %p9 = scmp.ge.s32.totalorder %s8, 5
    %s15 = sphi 0, %s34
    %s16 = sphi 0, %s30
    %s17 = sphi 0, %s26
    %s18 = sphi 0, %s15
    %s19 = sphi 0, %s16
    %s20 = sphi 0, %s17
    %s21 = sphi 0, %s18
    %s22 = sphi 0, %s19
    %s23 = sphi 0, %s20
    %s39 = sphi 0, %s41
    %s42 = sphi 0, %s39
    %s43 = sphi 0, %s42
    %s59 = sphi 0, %s43
    %s67 = sphi 0, %s69
    %s70 = sphi 0, %s67
    %s71 = sphi 0, %s70
    %s87 = sphi 0, %s71
    %s95 = sphi 0, %s97
    %s98 = sphi 0, %s95
    %s99 = sphi 0, %s98
    %s115 = sphi 0, %s99
  $region4: #{g_forward.5} parent=0 // loop_header_branch
    %11 = sbr.rel (%p9) target = $region8
  $region5: #{g_forward.5} parent=0 // loop_body
    %s13 = ssub.s32 %s8, 1
    %s14 = ssub.s32 %s8, 2
    %s24 = sadd.s32 1, %s17
    %p25 = scmp.ge.s32.totalorder %s24, 1
    %s26 = scalar_select %p25, 0, %s24
    %s27 = sadd.s32 1, %s16
    %s28 = scalar_select %p25, %s27, %s16
    %p29 = scmp.ge.s32.totalorder %s28, 1
    %s30 = scalar_select %p29, 0, %s28
    %s31 = sadd.s32 1, %s15
    %s32 = scalar_select %p29, %s31, %s15
    %p33 = scmp.ge.s32.totalorder %s32, 3
    %s34 = scalar_select %p33, 0, %s32
    %s35 = ssub.s32 %s15, %s34
    %s36 = ssub.s32 %s17, %s26
    %s37 = sor.u32 %s35, %s36
    %p38 = scmp.eq.s32.totalorder %s37, 0
    %s40 = sadd.s32 %s39, 1
    %s41 = scalar_select %p38, %s39, %s40
    %p44 = pneg %p38
    %p45 = scmp.eq.s32.totalorder %s8, 2
    %p46 = por %p44, %p45
    %p47 = scmp.ne.s32.totalorder %s39, %s42
    %p48 = scmp.eq.s32.totalorder %s8, 0
    %p49 = por %p47, %p48
    %p50 = scmp.ne.s32.totalorder %s39, %s42
    %p51 = scmp.eq.s32.totalorder %s13, 2
    %p52 = por %p50, %p51
    %p53 = scmp.ne.s32.totalorder %s42, %s43
    %p54 = scmp.eq.s32.totalorder %s13, 0
    %p55 = por %p53, %p54
    %p56 = scmp.ne.s32.totalorder %s42, %s43
    %p57 = scmp.eq.s32.totalorder %s14, 2
    %p58 = por %p56, %p57
    %p60 = scmp.ne.s32.totalorder %s43, %s59
    %p61 = scmp.eq.s32.totalorder %s14, 0
    %p62 = por %p60, %p61
    %s63 = ssub.s32 %s17, %s26
    %s64 = ssub.s32 %s16, %s30
    %s65 = sor.u32 %s63, %s64
    %p66 = scmp.eq.s32.totalorder %s65, 0
    %s68 = sadd.s32 %s67, 1
    %s69 = scalar_select %p66, %s67, %s68
    %p72 = pneg %p66
    %p73 = scmp.eq.s32.totalorder %s8, 2
    %p74 = por %p72, %p73
    %p75 = scmp.ne.s32.totalorder %s67, %s70
    %p76 = scmp.eq.s32.totalorder %s8, 0
    %p77 = por %p75, %p76
    %p78 = scmp.ne.s32.totalorder %s67, %s70
    %p79 = scmp.eq.s32.totalorder %s13, 2
    %p80 = por %p78, %p79
    %p81 = scmp.ne.s32.totalorder %s70, %s71
    %p82 = scmp.eq.s32.totalorder %s13, 0
    %p83 = por %p81, %p82
    %p84 = scmp.ne.s32.totalorder %s70, %s71
    %p85 = scmp.eq.s32.totalorder %s14, 2
    %p86 = por %p84, %p85
    %p88 = scmp.ne.s32.totalorder %s71, %s87
    %p89 = scmp.eq.s32.totalorder %s14, 0
    %p90 = por %p88, %p89
    %s91 = ssub.s32 %s15, %s34
    %s92 = ssub.s32 %s16, %s30
    %s93 = sor.u32 %s91, %s92
    %p94 = scmp.eq.s32.totalorder %s93, 0
    %s96 = sadd.s32 %s95, 1
    %s97 = scalar_select %p94, %s95, %s96
    %p100 = pneg %p94
    %p101 = scmp.eq.s32.totalorder %s8, 2
    %p102 = por %p100, %p101
    %p103 = scmp.ne.s32.totalorder %s95, %s98
    %p104 = scmp.eq.s32.totalorder %s8, 0
    %p105 = por %p103, %p104
    %p106 = scmp.ne.s32.totalorder %s95, %s98
    %p107 = scmp.eq.s32.totalorder %s13, 2
    %p108 = por %p106, %p107
    %p109 = scmp.ne.s32.totalorder %s98, %s99
    %p110 = scmp.eq.s32.totalorder %s13, 0
    %p111 = por %p109, %p110
    %p112 = scmp.ne.s32.totalorder %s98, %s99
    %p113 = scmp.eq.s32.totalorder %s14, 2
    %p114 = por %p112, %p113
    %p116 = scmp.ne.s32.totalorder %s99, %s115
    %p117 = scmp.eq.s32.totalorder %s14, 0
    %p118 = por %p116, %p117
    %p119 = scmp.le.s32.totalorder 1, %s8
    %p120 = scmp.lt.s32.totalorder %s8, 4
    %p121 = pnand %p119, %p120
    %p122 = pneg %p121
    // Predicated region
    $region9: #{g_forward.5} parent=5 // pred_check
      _
    $region10: #{g_forward.5} parent=5 // pred_check_branch
      %124 = sbr.rel (%p121) target = $region12
    $region11: #{g_forward.5} parent=5 // pred_region
      %s125 = ssub.s32 %s8, 1
      // Predicated region
      $region13: #{g_forward.5} parent=11 // pred_check
        %p126 = pneg %p83
      $region14: #{g_forward.5} parent=11 // pred_check_branch
        %128 = sbr.rel (%p126) target = $region16
      $region15: #{g_forward.5} parent=11 // pred_region
        %s129 = smul.u32 16, %s20
        %p130 = scmp.lt.s32.totalorder %s129, 15
        %s131 = scalar_select %p130, %s129, 15
        %p132 = scmp.lt.s32.totalorder %s19, 0
        %s133 = scalar_select %p132, %s19, 0
        %s134 = sadd.s32 %s133, %s131
        %s135 = smul.addr %s134, 4
        %s136 = scalar_lea.vmem %s1, %s135
        %s137 = smul.u32 16, %s20
      $region16: #{g_forward.5} parent=11 // pred_fallthru
        _
    $region12: #{g_forward.5} parent=5 // pred_fallthru
      _
    %p138 = scmp.lt.s32.totalorder %s8, 3
    // Predicated region
    $region17: #{g_forward.5} parent=5 // pred_check
      %p139 = pneg %p138
    $region18: #{g_forward.5} parent=5 // pred_check_branch
      %141 = sbr.rel (%p139) target = $region20
    $region19: #{g_forward.5} parent=5 // pred_region
      // Predicated region
      $region21: #{g_forward.5} parent=19 // pred_check
        %p142 = pneg %p49
      $region22: #{g_forward.5} parent=19 // pred_check_branch
        %144 = sbr.rel (%p142) target = $region24
      $region23: #{g_forward.5} parent=19 // pred_region
        %s145 = smul.u32 64, %s15
        %p146 = scmp.lt.s32.totalorder %s145, 191
        %s147 = scalar_select %p146, %s145, 191
        %p148 = scmp.lt.s32.totalorder %s17, 0
        %s149 = scalar_select %p148, %s17, 0
        %s150 = sadd.s32 %s149, %s147
        %s151 = smul.addr %s150, 4
        %s152 = scalar_lea.vmem %s0, %s151
        %s153 = smul.u32 64, %s15
      $region24: #{g_forward.5} parent=19 // pred_fallthru
        _
    $region20: #{g_forward.5} parent=5 // pred_fallthru
      _
    %p154 = scmp.le.s32.totalorder 1, %s8
    %p155 = scmp.lt.s32.totalorder %s8, 4
    %p156 = pnand %p154, %p155
    %p157 = pneg %p156
    // Predicated region
    $region25: #{g_forward.5} parent=5 // pred_check
      _
    $region26: #{g_forward.5} parent=5 // pred_check_branch
      %159 = sbr.rel (%p156) target = $region28
    $region27: #{g_forward.5} parent=5 // pred_region
      %s160 = ssub.s32 %s8, 1
      %s161 = smul.u32 64, %s18
      %p162 = scmp.lt.s32.totalorder %s161, 191
      %s163 = scalar_select %p162, %s161, 191
      %p164 = scmp.lt.s32.totalorder %s20, 0
      %s165 = scalar_select %p164, %s20, 0
      %s166 = sadd.s32 %s165, %s163
      %s167 = smul.addr %s166, 4
      %s168 = scalar_lea.vmem %s0, %s167
      %p169 = pneg %p55
      %p170 = pneg %p52
      %s171 = smul.u32 16, %s20
      %p172 = scmp.lt.s32.totalorder %s171, 15
      %s173 = scalar_select %p172, %s171, 15
      %p174 = scmp.lt.s32.totalorder %s19, 0
      %s175 = scalar_select %p174, %s19, 0
      %s176 = sadd.s32 %s175, %s173
      %s177 = smul.addr %s176, 4
      %s178 = scalar_lea.vmem %s1, %s177
      %p179 = pneg %p83
      %p180 = pneg %p80
      %p181 = pneg %p111
      %p182 = pneg %p108
      %s183 = smul.u32 64, %s18
      %p184 = scmp.lt.s32.totalorder %s183, 191
      %s185 = scalar_select %p184, %s183, 191
      %p186 = scmp.lt.s32.totalorder %s19, 0
      %s187 = scalar_select %p186, %s19, 0
      %s188 = sadd.s32 %s187, %s185
      %s189 = smul.addr %s188, 4
      %s190 = scalar_lea.vmem %s2, %s189
      %s191 = smul.u32 64, %s18
      %p192 = scmp.lt.s32.totalorder %s191, 191
      %s193 = scalar_select %p192, %s191, 191
      %p194 = scmp.lt.s32.totalorder %s20, 0
      %s195 = scalar_select %p194, %s20, 0
      %s196 = sadd.s32 %s195, %s193
      %s197 = smul.addr %s196, 4
      %s198 = scalar_lea.vmem %s0, %s197
      %s199 = smul.u32 64, %s18
      %s200 = smul.u32 16, %s20
      %p201 = scmp.lt.s32.totalorder %s200, 15
      %s202 = scalar_select %p201, %s200, 15
      %p203 = scmp.lt.s32.totalorder %s19, 0
      %s204 = scalar_select %p203, %s19, 0
      %s205 = sadd.s32 %s204, %s202
      %s206 = smul.addr %s205, 4
      %s207 = scalar_lea.vmem %s1, %s206
      %s208 = smul.u32 16, %s20
      %s209 = smul.u32 64, %s18
      %p210 = scmp.lt.s32.totalorder %s209, 191
      %s211 = scalar_select %p210, %s209, 191
      %p212 = scmp.lt.s32.totalorder %s19, 0
      %s213 = scalar_select %p212, %s19, 0
      %s214 = sadd.s32 %s213, %s211
      %s215 = smul.addr %s214, 4
      %s216 = scalar_lea.vmem %s2, %s215
      %s217 = smul.u32 64, %s18
      %p219 = scmp.eq.s32.totalorder %s20, 0
      // Predicated region
      $region29: #{g_forward.5} parent=27 // pred_check
        %p220 = pneg %p219
      $region30: #{g_forward.5} parent=27 // pred_check_branch
        %222 = sbr.rel (%p220) target = $region32
      $region31: #{g_forward.5} parent=27 // pred_region
        %223 = vst [vmem:[#allocation2] sm:$0xff] 0.0
        %224 = vst [vmem:[#allocation2 + $0x8] sm:$0xff] 0.0
        %225 = vst [vmem:[#allocation2 + $0x10] sm:$0xff] 0.0
        %226 = vst [vmem:[#allocation2 + $0x18] sm:$0xff] 0.0
        %227 = vst [vmem:[#allocation2 + $0x20] sm:$0xff] 0.0
        %228 = vst [vmem:[#allocation2 + $0x28] sm:$0xff] 0.0
        %229 = vst [vmem:[#allocation2 + $0x30] sm:$0xff] 0.0
        %230 = vst [vmem:[#allocation2 + $0x38] sm:$0xff] 0.0
        %231 = vst [vmem:[#allocation2 + $0x40] sm:$0xff] 0.0
        %232 = vst [vmem:[#allocation2 + $0x48] sm:$0xff] 0.0
        %233 = vst [vmem:[#allocation2 + $0x50] sm:$0xff] 0.0
        %234 = vst [vmem:[#allocation2 + $0x58] sm:$0xff] 0.0
        %235 = vst [vmem:[#allocation2 + $0x60] sm:$0xff] 0.0
        %236 = vst [vmem:[#allocation2 + $0x68] sm:$0xff] 0.0
        %237 = vst [vmem:[#allocation2 + $0x70] sm:$0xff] 0.0
        %238 = vst [vmem:[#allocation2 + $0x78] sm:$0xff] 0.0
        %239 = vst [vmem:[#allocation2 + $0x80] sm:$0xff] 0.0
        %240 = vst [vmem:[#allocation2 + $0x88] sm:$0xff] 0.0
        %241 = vst [vmem:[#allocation2 + $0x90] sm:$0xff] 0.0
        %242 = vst [vmem:[#allocation2 + $0x98] sm:$0xff] 0.0
        %243 = vst [vmem:[#allocation2 + $0xa0] sm:$0xff] 0.0
        %244 = vst [vmem:[#allocation2 + $0xa8] sm:$0xff] 0.0
        %245 = vst [vmem:[#allocation2 + $0xb0] sm:$0xff] 0.0
        %246 = vst [vmem:[#allocation2 + $0xb8] sm:$0xff] 0.0
        %247 = vst [vmem:[#allocation2 + $0xc0] sm:$0xff] 0.0
        %248 = vst [vmem:[#allocation2 + $0xc8] sm:$0xff] 0.0
        %249 = vst [vmem:[#allocation2 + $0xd0] sm:$0xff] 0.0
        %250 = vst [vmem:[#allocation2 + $0xd8] sm:$0xff] 0.0
        %251 = vst [vmem:[#allocation2 + $0xe0] sm:$0xff] 0.0
        %252 = vst [vmem:[#allocation2 + $0xe8] sm:$0xff] 0.0
        %253 = vst [vmem:[#allocation2 + $0xf0] sm:$0xff] 0.0
        %254 = vst [vmem:[#allocation2 + $0xf8] sm:$0xff] 0.0
        %255 = vst [vmem:[#allocation2 + $0x100] sm:$0xff] 0.0
        %256 = vst [vmem:[#allocation2 + $0x108] sm:$0xff] 0.0
        %257 = vst [vmem:[#allocation2 + $0x110] sm:$0xff] 0.0
        %258 = vst [vmem:[#allocation2 + $0x118] sm:$0xff] 0.0
        %259 = vst [vmem:[#allocation2 + $0x120] sm:$0xff] 0.0
        %260 = vst [vmem:[#allocation2 + $0x128] sm:$0xff] 0.0
        %261 = vst [vmem:[#allocation2 + $0x130] sm:$0xff] 0.0
        %262 = vst [vmem:[#allocation2 + $0x138] sm:$0xff] 0.0
        %263 = vst [vmem:[#allocation2 + $0x140] sm:$0xff] 0.0
        %264 = vst [vmem:[#allocation2 + $0x148] sm:$0xff] 0.0
        %265 = vst [vmem:[#allocation2 + $0x150] sm:$0xff] 0.0
        %266 = vst [vmem:[#allocation2 + $0x158] sm:$0xff] 0.0
        %267 = vst [vmem:[#allocation2 + $0x160] sm:$0xff] 0.0
        %268 = vst [vmem:[#allocation2 + $0x168] sm:$0xff] 0.0
        %269 = vst [vmem:[#allocation2 + $0x170] sm:$0xff] 0.0
        %270 = vst [vmem:[#allocation2 + $0x178] sm:$0xff] 0.0
        %271 = vst [vmem:[#allocation2 + $0x180] sm:$0xff] 0.0
        %272 = vst [vmem:[#allocation2 + $0x188] sm:$0xff] 0.0
        %273 = vst [vmem:[#allocation2 + $0x190] sm:$0xff] 0.0
        %274 = vst [vmem:[#allocation2 + $0x198] sm:$0xff] 0.0
        %275 = vst [vmem:[#allocation2 + $0x1a0] sm:$0xff] 0.0
        %276 = vst [vmem:[#allocation2 + $0x1a8] sm:$0xff] 0.0
        %277 = vst [vmem:[#allocation2 + $0x1b0] sm:$0xff] 0.0
        %278 = vst [vmem:[#allocation2 + $0x1b8] sm:$0xff] 0.0
        %279 = vst [vmem:[#allocation2 + $0x1c0] sm:$0xff] 0.0
        %280 = vst [vmem:[#allocation2 + $0x1c8] sm:$0xff] 0.0
        %281 = vst [vmem:[#allocation2 + $0x1d0] sm:$0xff] 0.0
        %282 = vst [vmem:[#allocation2 + $0x1d8] sm:$0xff] 0.0
        %283 = vst [vmem:[#allocation2 + $0x1e0] sm:$0xff] 0.0
        %284 = vst [vmem:[#allocation2 + $0x1e8] sm:$0xff] 0.0
        %285 = vst [vmem:[#allocation2 + $0x1f0] sm:$0xff] 0.0
        %286 = vst [vmem:[#allocation2 + $0x1f8] sm:$0xff] 0.0
      $region32: #{g_forward.5} parent=27 // pred_fallthru
        _
      %v287 = vld [vmem:[#allocation2] sm:$0xff]
      %v288 = vld [vmem:[#allocation2 + $0x8] sm:$0xff]
      %v289 = vld [vmem:[#allocation2 + $0x10] sm:$0xff]
      %v290 = vld [vmem:[#allocation2 + $0x18] sm:$0xff]
      %v291 = vld [vmem:[#allocation2 + $0x20] sm:$0xff]
      %v292 = vld [vmem:[#allocation2 + $0x28] sm:$0xff]
      %v293 = vld [vmem:[#allocation2 + $0x30] sm:$0xff]
      %v294 = vld [vmem:[#allocation2 + $0x38] sm:$0xff]
      %v295 = vld [vmem:[#allocation2 + $0x40] sm:$0xff]
      %v296 = vld [vmem:[#allocation2 + $0x48] sm:$0xff]
      %v297 = vld [vmem:[#allocation2 + $0x50] sm:$0xff]
      %v298 = vld [vmem:[#allocation2 + $0x58] sm:$0xff]
      %v299 = vld [vmem:[#allocation2 + $0x60] sm:$0xff]
      %v300 = vld [vmem:[#allocation2 + $0x68] sm:$0xff]
      %v301 = vld [vmem:[#allocation2 + $0x70] sm:$0xff]
      %v302 = vld [vmem:[#allocation2 + $0x78] sm:$0xff]
      %v303 = vld [vmem:[#allocation2 + $0x80] sm:$0xff]
      %v304 = vld [vmem:[#allocation2 + $0x88] sm:$0xff]
      %v305 = vld [vmem:[#allocation2 + $0x90] sm:$0xff]
      %v306 = vld [vmem:[#allocation2 + $0x98] sm:$0xff]
      %v307 = vld [vmem:[#allocation2 + $0xa0] sm:$0xff]
      %v308 = vld [vmem:[#allocation2 + $0xa8] sm:$0xff]
      %v309 = vld [vmem:[#allocation2 + $0xb0] sm:$0xff]
      %v310 = vld [vmem:[#allocation2 + $0xb8] sm:$0xff]
      %v311 = vld [vmem:[#allocation2 + $0xc0] sm:$0xff]
      %v312 = vld [vmem:[#allocation2 + $0xc8] sm:$0xff]
      %v313 = vld [vmem:[#allocation2 + $0xd0] sm:$0xff]
      %v314 = vld [vmem:[#allocation2 + $0xd8] sm:$0xff]
      %v315 = vld [vmem:[#allocation2 + $0xe0] sm:$0xff]
      %v316 = vld [vmem:[#allocation2 + $0xe8] sm:$0xff]
      %v317 = vld [vmem:[#allocation2 + $0xf0] sm:$0xff]
      %v318 = vld [vmem:[#allocation2 + $0xf8] sm:$0xff]
      %v319 = vld [vmem:[#allocation2 + $0x100] sm:$0xff]
      %v320 = vld [vmem:[#allocation2 + $0x108] sm:$0xff]
      %v321 = vld [vmem:[#allocation2 + $0x110] sm:$0xff]
      %v322 = vld [vmem:[#allocation2 + $0x118] sm:$0xff]
      %v323 = vld [vmem:[#allocation2 + $0x120] sm:$0xff]
      %v324 = vld [vmem:[#allocation2 + $0x128] sm:$0xff]
      %v325 = vld [vmem:[#allocation2 + $0x130] sm:$0xff]
      %v326 = vld [vmem:[#allocation2 + $0x138] sm:$0xff]
      %v327 = vld [vmem:[#allocation2 + $0x140] sm:$0xff]
      %v328 = vld [vmem:[#allocation2 + $0x148] sm:$0xff]
      %v329 = vld [vmem:[#allocation2 + $0x150] sm:$0xff]
      %v330 = vld [vmem:[#allocation2 + $0x158] sm:$0xff]
      %v331 = vld [vmem:[#allocation2 + $0x160] sm:$0xff]
      %v332 = vld [vmem:[#allocation2 + $0x168] sm:$0xff]
      %v333 = vld [vmem:[#allocation2 + $0x170] sm:$0xff]
      %v334 = vld [vmem:[#allocation2 + $0x178] sm:$0xff]
      %v335 = vld [vmem:[#allocation2 + $0x180] sm:$0xff]
      %v336 = vld [vmem:[#allocation2 + $0x188] sm:$0xff]
      %v337 = vld [vmem:[#allocation2 + $0x190] sm:$0xff]
      %v338 = vld [vmem:[#allocation2 + $0x198] sm:$0xff]
      %v339 = vld [vmem:[#allocation2 + $0x1a0] sm:$0xff]
      %v340 = vld [vmem:[#allocation2 + $0x1a8] sm:$0xff]
      %v341 = vld [vmem:[#allocation2 + $0x1b0] sm:$0xff]
      %v342 = vld [vmem:[#allocation2 + $0x1b8] sm:$0xff]
      %v343 = vld [vmem:[#allocation2 + $0x1c0] sm:$0xff]
      %v344 = vld [vmem:[#allocation2 + $0x1c8] sm:$0xff]
      %v345 = vld [vmem:[#allocation2 + $0x1d0] sm:$0xff]
      %v346 = vld [vmem:[#allocation2 + $0x1d8] sm:$0xff]
      %v347 = vld [vmem:[#allocation2 + $0x1e0] sm:$0xff]
      %v348 = vld [vmem:[#allocation2 + $0x1e8] sm:$0xff]
      %v349 = vld [vmem:[#allocation2 + $0x1f0] sm:$0xff]
      %v350 = vld [vmem:[#allocation2 + $0x1f8] sm:$0xff]
      %v351 = vld [vmem:[%s198] sm:$0xf]
      %v352 = vld [vmem:[%s198 + $0x4] sm:$0xf]
      %v353 = vld [vmem:[%s198 + $0x8] sm:$0xf]
      %v354 = vld [vmem:[%s198 + $0xc] sm:$0xf]
      %v355 = vld [vmem:[%s198 + $0x10] sm:$0xf]
      %v356 = vld [vmem:[%s198 + $0x14] sm:$0xf]
      %v357 = vld [vmem:[%s198 + $0x18] sm:$0xf]
      %v358 = vld [vmem:[%s198 + $0x1c] sm:$0xf]
      %v359 = vld [vmem:[%s198 + $0x20] sm:$0xf]
      %v360 = vld [vmem:[%s198 + $0x24] sm:$0xf]
      %v361 = vld [vmem:[%s198 + $0x28] sm:$0xf]
      %v362 = vld [vmem:[%s198 + $0x2c] sm:$0xf]
      %v363 = vld [vmem:[%s198 + $0x30] sm:$0xf]
      %v364 = vld [vmem:[%s198 + $0x34] sm:$0xf]
      %v365 = vld [vmem:[%s198 + $0x38] sm:$0xf]
      %v366 = vld [vmem:[%s198 + $0x3c] sm:$0xf]
      %v367 = vld [vmem:[%s198 + $0x40] sm:$0xf]
      %v368 = vld [vmem:[%s198 + $0x44] sm:$0xf]
      %v369 = vld [vmem:[%s198 + $0x48] sm:$0xf]
      %v370 = vld [vmem:[%s198 + $0x4c] sm:$0xf]
      %v371 = vld [vmem:[%s198 + $0x50] sm:$0xf]
      %v372 = vld [vmem:[%s198 + $0x54] sm:$0xf]
      %v373 = vld [vmem:[%s198 + $0x58] sm:$0xf]
      %v374 = vld [vmem:[%s198 + $0x5c] sm:$0xf]
      %v375 = vld [vmem:[%s198 + $0x60] sm:$0xf]
      %v376 = vld [vmem:[%s198 + $0x64] sm:$0xf]
      %v377 = vld [vmem:[%s198 + $0x68] sm:$0xf]
      %v378 = vld [vmem:[%s198 + $0x6c] sm:$0xf]
      %v379 = vld [vmem:[%s198 + $0x70] sm:$0xf]
      %v380 = vld [vmem:[%s198 + $0x74] sm:$0xf]
      %v381 = vld [vmem:[%s198 + $0x78] sm:$0xf]
      %v382 = vld [vmem:[%s198 + $0x7c] sm:$0xf]
      %v383 = vld [vmem:[%s198 + $0x80] sm:$0xf]
      %v384 = vld [vmem:[%s198 + $0x84] sm:$0xf]
      %v385 = vld [vmem:[%s198 + $0x88] sm:$0xf]
      %v386 = vld [vmem:[%s198 + $0x8c] sm:$0xf]
      %v387 = vld [vmem:[%s198 + $0x90] sm:$0xf]
      %v388 = vld [vmem:[%s198 + $0x94] sm:$0xf]
      %v389 = vld [vmem:[%s198 + $0x98] sm:$0xf]
      %v390 = vld [vmem:[%s198 + $0x9c] sm:$0xf]
      %v391 = vld [vmem:[%s198 + $0xa0] sm:$0xf]
      %v392 = vld [vmem:[%s198 + $0xa4] sm:$0xf]
      %v393 = vld [vmem:[%s198 + $0xa8] sm:$0xf]
      %v394 = vld [vmem:[%s198 + $0xac] sm:$0xf]
      %v395 = vld [vmem:[%s198 + $0xb0] sm:$0xf]
      %v396 = vld [vmem:[%s198 + $0xb4] sm:$0xf]
      %v397 = vld [vmem:[%s198 + $0xb8] sm:$0xf]
      %v398 = vld [vmem:[%s198 + $0xbc] sm:$0xf]
      %v399 = vld [vmem:[%s198 + $0xc0] sm:$0xf]
      %v400 = vld [vmem:[%s198 + $0xc4] sm:$0xf]
      %v401 = vld [vmem:[%s198 + $0xc8] sm:$0xf]
      %v402 = vld [vmem:[%s198 + $0xcc] sm:$0xf]
      %v403 = vld [vmem:[%s198 + $0xd0] sm:$0xf]
      %v404 = vld [vmem:[%s198 + $0xd4] sm:$0xf]
      %v405 = vld [vmem:[%s198 + $0xd8] sm:$0xf]
      %v406 = vld [vmem:[%s198 + $0xdc] sm:$0xf]
      %v407 = vld [vmem:[%s198 + $0xe0] sm:$0xf]
      %v408 = vld [vmem:[%s198 + $0xe4] sm:$0xf]
      %v409 = vld [vmem:[%s198 + $0xe8] sm:$0xf]
      %v410 = vld [vmem:[%s198 + $0xec] sm:$0xf]
      %v411 = vld [vmem:[%s198 + $0xf0] sm:$0xf]
      %v412 = vld [vmem:[%s198 + $0xf4] sm:$0xf]
      %v413 = vld [vmem:[%s198 + $0xf8] sm:$0xf]
      %v414 = vld [vmem:[%s198 + $0xfc] sm:$0xf]
      %v415 = vld [vmem:[%s207] sm:$0xf]
      %v416 = vld [vmem:[%s207 + $0x4] sm:$0xf]
      %v417 = vld [vmem:[%s207 + $0x8] sm:$0xf]
      %v418 = vld [vmem:[%s207 + $0xc] sm:$0xf]
      %v419 = vld [vmem:[%s207 + $0x10] sm:$0xf]
      %v420 = vld [vmem:[%s207 + $0x14] sm:$0xf]
      %v421 = vld [vmem:[%s207 + $0x18] sm:$0xf]
      %v422 = vld [vmem:[%s207 + $0x1c] sm:$0xf]
      %v423 = vld [vmem:[%s207 + $0x20] sm:$0xf]
      %v424 = vld [vmem:[%s207 + $0x24] sm:$0xf]
      %v425 = vld [vmem:[%s207 + $0x28] sm:$0xf]
      %v426 = vld [vmem:[%s207 + $0x2c] sm:$0xf]
      %v427 = vld [vmem:[%s207 + $0x30] sm:$0xf]
      %v428 = vld [vmem:[%s207 + $0x34] sm:$0xf]
      %v429 = vld [vmem:[%s207 + $0x38] sm:$0xf]
      %v430 = vld [vmem:[%s207 + $0x3c] sm:$0xf]
      %v495 = vunpack.c.l.b16 %v351
      %v496 = vunpack.c.l.b16 %v352
      %v497 = vunpack.c.l.b16 %v353
      %v498 = vunpack.c.l.b16 %v354
      %v499 = vunpack.c.l.b16 %v355
      %v500 = vunpack.c.l.b16 %v356
      %v501 = vunpack.c.l.b16 %v357
      %v502 = vunpack.c.l.b16 %v358
      %v503 = vunpack.c.l.b16 %v359
      %v504 = vunpack.c.l.b16 %v360
      %v505 = vunpack.c.l.b16 %v361
      %v506 = vunpack.c.l.b16 %v362
      %v507 = vunpack.c.l.b16 %v363
      %v508 = vunpack.c.l.b16 %v364
      %v509 = vunpack.c.l.b16 %v365
      %v510 = vunpack.c.l.b16 %v366
      %v511 = vunpack.c.l.b16 %v367
      %v512 = vunpack.c.l.b16 %v368
      %v513 = vunpack.c.l.b16 %v369
      %v514 = vunpack.c.l.b16 %v370
      %v515 = vunpack.c.l.b16 %v371
      %v516 = vunpack.c.l.b16 %v372
      %v517 = vunpack.c.l.b16 %v373
      %v518 = vunpack.c.l.b16 %v374
      %v519 = vunpack.c.l.b16 %v375
      %v520 = vunpack.c.l.b16 %v376
      %v521 = vunpack.c.l.b16 %v377
      %v522 = vunpack.c.l.b16 %v378
      %v523 = vunpack.c.l.b16 %v379
      %v524 = vunpack.c.l.b16 %v380
      %v525 = vunpack.c.l.b16 %v381
      %v526 = vunpack.c.l.b16 %v382
      %v527 = vunpack.c.l.b16 %v383
      %v528 = vunpack.c.l.b16 %v384
      %v529 = vunpack.c.l.b16 %v385
      %v530 = vunpack.c.l.b16 %v386
      %v531 = vunpack.c.l.b16 %v387
      %v532 = vunpack.c.l.b16 %v388
      %v533 = vunpack.c.l.b16 %v389
      %v534 = vunpack.c.l.b16 %v390
      %v535 = vunpack.c.l.b16 %v391
      %v536 = vunpack.c.l.b16 %v392
      %v537 = vunpack.c.l.b16 %v393
      %v538 = vunpack.c.l.b16 %v394
      %v539 = vunpack.c.l.b16 %v395
      %v540 = vunpack.c.l.b16 %v396
      %v541 = vunpack.c.l.b16 %v397
      %v542 = vunpack.c.l.b16 %v398
      %v543 = vunpack.c.l.b16 %v399
      %v544 = vunpack.c.l.b16 %v400
      %v545 = vunpack.c.l.b16 %v401
      %v546 = vunpack.c.l.b16 %v402
      %v547 = vunpack.c.l.b16 %v403
      %v548 = vunpack.c.l.b16 %v404
      %v549 = vunpack.c.l.b16 %v405
      %v550 = vunpack.c.l.b16 %v406
      %v551 = vunpack.c.l.b16 %v407
      %v552 = vunpack.c.l.b16 %v408
      %v553 = vunpack.c.l.b16 %v409
      %v554 = vunpack.c.l.b16 %v410
      %v555 = vunpack.c.l.b16 %v411
      %v556 = vunpack.c.l.b16 %v412
      %v557 = vunpack.c.l.b16 %v413
      %v558 = vunpack.c.l.b16 %v414
      %v559 = vpack.c.b16 %v496, %v495
      %v560 = vpack.c.b16 %v498, %v497
      %v561 = vpack.c.b16 %v500, %v499
      %v562 = vpack.c.b16 %v502, %v501
      %v563 = vpack.c.b16 %v504, %v503
      %v564 = vpack.c.b16 %v506, %v505
      %v565 = vpack.c.b16 %v508, %v507
      %v566 = vpack.c.b16 %v510, %v509
      %v567 = vpack.c.b16 %v512, %v511
      %v568 = vpack.c.b16 %v514, %v513
      %v569 = vpack.c.b16 %v516, %v515
      %v570 = vpack.c.b16 %v518, %v517
      %v571 = vpack.c.b16 %v520, %v519
      %v572 = vpack.c.b16 %v522, %v521
      %v573 = vpack.c.b16 %v524, %v523
      %v574 = vpack.c.b16 %v526, %v525
      %v575 = vpack.c.b16 %v528, %v527
      %v576 = vpack.c.b16 %v530, %v529
      %v577 = vpack.c.b16 %v532, %v531
      %v578 = vpack.c.b16 %v534, %v533
      %v579 = vpack.c.b16 %v536, %v535
      %v580 = vpack.c.b16 %v538, %v537
      %v581 = vpack.c.b16 %v540, %v539
      %v582 = vpack.c.b16 %v542, %v541
      %v583 = vpack.c.b16 %v544, %v543
      %v584 = vpack.c.b16 %v546, %v545
      %v585 = vpack.c.b16 %v548, %v547
      %v586 = vpack.c.b16 %v550, %v549
      %v587 = vpack.c.b16 %v552, %v551
      %v588 = vpack.c.b16 %v554, %v553
      %v589 = vpack.c.b16 %v556, %v555
      %v590 = vpack.c.b16 %v558, %v557
      %v639 = vunpack.c.l.b16 %v415
      %v640 = vunpack.c.l.b16 %v416
      %v641 = vunpack.c.l.b16 %v417
      %v642 = vunpack.c.l.b16 %v418
      %v643 = vunpack.c.l.b16 %v419
      %v644 = vunpack.c.l.b16 %v420
      %v645 = vunpack.c.l.b16 %v421
      %v646 = vunpack.c.l.b16 %v422
      %v647 = vunpack.c.l.b16 %v423
      %v648 = vunpack.c.l.b16 %v424
      %v649 = vunpack.c.l.b16 %v425
      %v650 = vunpack.c.l.b16 %v426
      %v651 = vunpack.c.l.b16 %v427
      %v652 = vunpack.c.l.b16 %v428
      %v653 = vunpack.c.l.b16 %v429
      %v654 = vunpack.c.l.b16 %v430
      %v655 = vpack.c.b16 %v640, %v639
      %v656 = vpack.c.b16 %v642, %v641
      %v657 = vpack.c.b16 %v644, %v643
      %v658 = vpack.c.b16 %v646, %v645
      %v659 = vpack.c.b16 %v648, %v647
      %v660 = vpack.c.b16 %v650, %v649
      %v661 = vpack.c.b16 %v652, %v651
      %v662 = vpack.c.b16 %v654, %v653
      %671 = vmatprep.subr.bf16.mxu0 0
      %672 = vmatpush1.bf16.msra.mxu0 %v662
      %673 = vmatprep.subr.bf16.mxu0 0
      %674 = vmatpush1.bf16.msra.mxu0 %v661
      %675 = vmatprep.subr.bf16.mxu0 0
      %676 = vmatpush1.bf16.msra.mxu0 %v660
      %677 = vmatprep.subr.bf16.mxu0 0
      %678 = vmatpush1.bf16.msra.mxu0 %v659
      %679 = vmatprep.subr.bf16.mxu0 0
      %680 = vmatpush1.bf16.msra.mxu0 %v658
      %681 = vmatprep.subr.bf16.mxu0 0
      %682 = vmatpush1.bf16.msra.mxu0 %v657
      %683 = vmatprep.subr.bf16.mxu0 0
      %684 = vmatpush1.bf16.msra.mxu0 %v656
      %685 = vmatprep.subr.bf16.mxu0 0
      %686 = vmatpush1.bf16.msra.mxu0 %v655
      %687 = vmatprep.subr.bf16.mxu0 0
      %688 = vmatpush2.bf16.msra.mxu0 0
      %689 = vmatprep.subr.bf16.mxu0 0
      %690 = vmatpush2.bf16.msra.mxu0 0
      %691 = vmatprep.subr.bf16.mxu0 0
      %692 = vmatpush2.bf16.msra.mxu0 0
      %693 = vmatprep.subr.bf16.mxu0 0
      %694 = vmatpush2.bf16.msra.mxu0 0
      %695 = vmatprep.subr.bf16.mxu0 0
      %696 = vmatpush2.bf16.msra.mxu0 0
      %697 = vmatprep.subr.bf16.mxu0 0
      %698 = vmatpush2.bf16.msra.mxu0 0
      %699 = vmatprep.subr.bf16.mxu0 0
      %700 = vmatpush2.bf16.msra.mxu0 0
      %701 = vmatprep.subr.bf16.mxu0 0
      %702 = vmatpush2.bf16.msra.mxu0 0
      %703 = vmatprep.mubr.bf16.mxu0 0
      %704 = vmatmul.mubr.bf16.gmra.mxu0 %v559
      %v705 = vpop.f32.mrf.mxu0
      %v706 = vadd.f32 0.0, %v705
      %v707 = vpop.f32.mrf.mxu0
      %v708 = vpop.f32.mrf.mxu0
      %v709 = vadd.f32 0.0, %v708
      %v710 = vpop.f32.mrf.mxu0
      %711 = vmatprep.mubr.bf16.mxu0 0
      %712 = vmatmul.mubr.bf16.gmra.mxu0 %v560
      %v713 = vpop.f32.mrf.mxu0
      %v714 = vadd.f32 0.0, %v713
      %v715 = vpop.f32.mrf.mxu0
      %v716 = vpop.f32.mrf.mxu0
      %v717 = vadd.f32 0.0, %v716
      %v718 = vpop.f32.mrf.mxu0
      %719 = vmatprep.mubr.bf16.mxu0 0
      %720 = vmatmul.mubr.bf16.gmra.mxu0 %v561
      %v721 = vpop.f32.mrf.mxu0
      %v722 = vadd.f32 0.0, %v721
      %v723 = vpop.f32.mrf.mxu0
      %v724 = vpop.f32.mrf.mxu0
      %v725 = vadd.f32 0.0, %v724
      %v726 = vpop.f32.mrf.mxu0
      %727 = vmatprep.mubr.bf16.mxu0 0
      %728 = vmatmul.mubr.bf16.gmra.mxu0 %v562
      %v729 = vpop.f32.mrf.mxu0
      %v730 = vadd.f32 0.0, %v729
      %v731 = vpop.f32.mrf.mxu0
      %v732 = vpop.f32.mrf.mxu0
      %v733 = vadd.f32 0.0, %v732
      %v734 = vpop.f32.mrf.mxu0
      %735 = vmatprep.mubr.bf16.mxu0 0
      %736 = vmatmul.mubr.bf16.gmra.mxu0 %v563
      %v737 = vpop.f32.mrf.mxu0
      %v738 = vadd.f32 0.0, %v737
      %v739 = vpop.f32.mrf.mxu0
      %v740 = vpop.f32.mrf.mxu0
      %v741 = vadd.f32 0.0, %v740
      %v742 = vpop.f32.mrf.mxu0
      %743 = vmatprep.mubr.bf16.mxu0 0
      %744 = vmatmul.mubr.bf16.gmra.mxu0 %v564
      %v745 = vpop.f32.mrf.mxu0
      %v746 = vadd.f32 0.0, %v745
      %v747 = vpop.f32.mrf.mxu0
      %v748 = vpop.f32.mrf.mxu0
      %v749 = vadd.f32 0.0, %v748
      %v750 = vpop.f32.mrf.mxu0
      %751 = vmatprep.mubr.bf16.mxu0 0
      %752 = vmatmul.mubr.bf16.gmra.mxu0 %v565
      %v753 = vpop.f32.mrf.mxu0
      %v754 = vadd.f32 0.0, %v753
      %v755 = vpop.f32.mrf.mxu0
      %v756 = vpop.f32.mrf.mxu0
      %v757 = vadd.f32 0.0, %v756
      %v758 = vpop.f32.mrf.mxu0
      %759 = vmatprep.mubr.bf16.mxu0 0
      %760 = vmatmul.mubr.bf16.gmra.mxu0 %v566
      %v761 = vpop.f32.mrf.mxu0
      %v762 = vadd.f32 0.0, %v761
      %v763 = vpop.f32.mrf.mxu0
      %v764 = vpop.f32.mrf.mxu0
      %v765 = vadd.f32 0.0, %v764
      %v766 = vpop.f32.mrf.mxu0
      %767 = vmatprep.mubr.bf16.mxu0 0
      %768 = vmatmul.mubr.bf16.gmra.mxu0 %v567
      %v769 = vpop.f32.mrf.mxu0
      %v770 = vadd.f32 0.0, %v769
      %v771 = vpop.f32.mrf.mxu0
      %v772 = vpop.f32.mrf.mxu0
      %v773 = vadd.f32 0.0, %v772
      %v774 = vpop.f32.mrf.mxu0
      %775 = vmatprep.mubr.bf16.mxu0 0
      %776 = vmatmul.mubr.bf16.gmra.mxu0 %v568
      %v777 = vpop.f32.mrf.mxu0
      %v778 = vadd.f32 0.0, %v777
      %v779 = vpop.f32.mrf.mxu0
      %v780 = vpop.f32.mrf.mxu0
      %v781 = vadd.f32 0.0, %v780
      %v782 = vpop.f32.mrf.mxu0
      %783 = vmatprep.mubr.bf16.mxu0 0
      %784 = vmatmul.mubr.bf16.gmra.mxu0 %v569
      %v785 = vpop.f32.mrf.mxu0
      %v786 = vadd.f32 0.0, %v785
      %v787 = vpop.f32.mrf.mxu0
      %v788 = vpop.f32.mrf.mxu0
      %v789 = vadd.f32 0.0, %v788
      %v790 = vpop.f32.mrf.mxu0
      %791 = vmatprep.mubr.bf16.mxu0 0
      %792 = vmatmul.mubr.bf16.gmra.mxu0 %v570
      %v793 = vpop.f32.mrf.mxu0
      %v794 = vadd.f32 0.0, %v793
      %v795 = vpop.f32.mrf.mxu0
      %v796 = vpop.f32.mrf.mxu0
      %v797 = vadd.f32 0.0, %v796
      %v798 = vpop.f32.mrf.mxu0
      %799 = vmatprep.mubr.bf16.mxu0 0
      %800 = vmatmul.mubr.bf16.gmra.mxu0 %v571
      %v801 = vpop.f32.mrf.mxu0
      %v802 = vadd.f32 0.0, %v801
      %v803 = vpop.f32.mrf.mxu0
      %v804 = vpop.f32.mrf.mxu0
      %v805 = vadd.f32 0.0, %v804
      %v806 = vpop.f32.mrf.mxu0
      %807 = vmatprep.mubr.bf16.mxu0 0
      %808 = vmatmul.mubr.bf16.gmra.mxu0 %v572
      %v809 = vpop.f32.mrf.mxu0
      %v810 = vadd.f32 0.0, %v809
      %v811 = vpop.f32.mrf.mxu0
      %v812 = vpop.f32.mrf.mxu0
      %v813 = vadd.f32 0.0, %v812
      %v814 = vpop.f32.mrf.mxu0
      %815 = vmatprep.mubr.bf16.mxu0 0
      %816 = vmatmul.mubr.bf16.gmra.mxu0 %v573
      %v817 = vpop.f32.mrf.mxu0
      %v818 = vadd.f32 0.0, %v817
      %v819 = vpop.f32.mrf.mxu0
      %v820 = vpop.f32.mrf.mxu0
      %v821 = vadd.f32 0.0, %v820
      %v822 = vpop.f32.mrf.mxu0
      %823 = vmatprep.mubr.bf16.mxu0 0
      %824 = vmatmul.mubr.bf16.gmra.mxu0 %v574
      %v825 = vpop.f32.mrf.mxu0
      %v826 = vadd.f32 0.0, %v825
      %v827 = vpop.f32.mrf.mxu0
      %v828 = vpop.f32.mrf.mxu0
      %v829 = vadd.f32 0.0, %v828
      %v830 = vpop.f32.mrf.mxu0
      %831 = vmatprep.mubr.bf16.mxu0 0
      %832 = vmatmul.mubr.bf16.gmra.mxu0 %v575
      %v833 = vpop.f32.mrf.mxu0
      %v834 = vadd.f32 0.0, %v833
      %v835 = vpop.f32.mrf.mxu0
      %v836 = vpop.f32.mrf.mxu0
      %v837 = vadd.f32 0.0, %v836
      %v838 = vpop.f32.mrf.mxu0
      %839 = vmatprep.mubr.bf16.mxu0 0
      %840 = vmatmul.mubr.bf16.gmra.mxu0 %v576
      %v841 = vpop.f32.mrf.mxu0
      %v842 = vadd.f32 0.0, %v841
      %v843 = vpop.f32.mrf.mxu0
      %v844 = vpop.f32.mrf.mxu0
      %v845 = vadd.f32 0.0, %v844
      %v846 = vpop.f32.mrf.mxu0
      %847 = vmatprep.mubr.bf16.mxu0 0
      %848 = vmatmul.mubr.bf16.gmra.mxu0 %v577
      %v849 = vpop.f32.mrf.mxu0
      %v850 = vadd.f32 0.0, %v849
      %v851 = vpop.f32.mrf.mxu0
      %v852 = vpop.f32.mrf.mxu0
      %v853 = vadd.f32 0.0, %v852
      %v854 = vpop.f32.mrf.mxu0
      %855 = vmatprep.mubr.bf16.mxu0 0
      %856 = vmatmul.mubr.bf16.gmra.mxu0 %v578
      %v857 = vpop.f32.mrf.mxu0
      %v858 = vadd.f32 0.0, %v857
      %v859 = vpop.f32.mrf.mxu0
      %v860 = vpop.f32.mrf.mxu0
      %v861 = vadd.f32 0.0, %v860
      %v862 = vpop.f32.mrf.mxu0
      %863 = vmatprep.mubr.bf16.mxu0 0
      %864 = vmatmul.mubr.bf16.gmra.mxu0 %v579
      %v865 = vpop.f32.mrf.mxu0
      %v866 = vadd.f32 0.0, %v865
      %v867 = vpop.f32.mrf.mxu0
      %v868 = vpop.f32.mrf.mxu0
      %v869 = vadd.f32 0.0, %v868
      %v870 = vpop.f32.mrf.mxu0
      %871 = vmatprep.mubr.bf16.mxu0 0
      %872 = vmatmul.mubr.bf16.gmra.mxu0 %v580
      %v873 = vpop.f32.mrf.mxu0
      %v874 = vadd.f32 0.0, %v873
      %v875 = vpop.f32.mrf.mxu0
      %v876 = vpop.f32.mrf.mxu0
      %v877 = vadd.f32 0.0, %v876
      %v878 = vpop.f32.mrf.mxu0
      %879 = vmatprep.mubr.bf16.mxu0 0
      %880 = vmatmul.mubr.bf16.gmra.mxu0 %v581
      %v881 = vpop.f32.mrf.mxu0
      %v882 = vadd.f32 0.0, %v881
      %v883 = vpop.f32.mrf.mxu0
      %v884 = vpop.f32.mrf.mxu0
      %v885 = vadd.f32 0.0, %v884
      %v886 = vpop.f32.mrf.mxu0
      %887 = vmatprep.mubr.bf16.mxu0 0
      %888 = vmatmul.mubr.bf16.gmra.mxu0 %v582
      %v889 = vpop.f32.mrf.mxu0
      %v890 = vadd.f32 0.0, %v889
      %v891 = vpop.f32.mrf.mxu0
      %v892 = vpop.f32.mrf.mxu0
      %v893 = vadd.f32 0.0, %v892
      %v894 = vpop.f32.mrf.mxu0
      %895 = vmatprep.mubr.bf16.mxu0 0
      %896 = vmatmul.mubr.bf16.gmra.mxu0 %v583
      %v897 = vpop.f32.mrf.mxu0
      %v898 = vadd.f32 0.0, %v897
      %v899 = vpop.f32.mrf.mxu0
      %v900 = vpop.f32.mrf.mxu0
      %v901 = vadd.f32 0.0, %v900
      %v902 = vpop.f32.mrf.mxu0
      %903 = vmatprep.mubr.bf16.mxu0 0
      %904 = vmatmul.mubr.bf16.gmra.mxu0 %v584
      %v905 = vpop.f32.mrf.mxu0
      %v906 = vadd.f32 0.0, %v905
      %v907 = vpop.f32.mrf.mxu0
      %v908 = vpop.f32.mrf.mxu0
      %v909 = vadd.f32 0.0, %v908
      %v910 = vpop.f32.mrf.mxu0
      %911 = vmatprep.mubr.bf16.mxu0 0
      %912 = vmatmul.mubr.bf16.gmra.mxu0 %v585
      %v913 = vpop.f32.mrf.mxu0
      %v914 = vadd.f32 0.0, %v913
      %v915 = vpop.f32.mrf.mxu0
      %v916 = vpop.f32.mrf.mxu0
      %v917 = vadd.f32 0.0, %v916
      %v918 = vpop.f32.mrf.mxu0
      %919 = vmatprep.mubr.bf16.mxu0 0
      %920 = vmatmul.mubr.bf16.gmra.mxu0 %v586
      %v921 = vpop.f32.mrf.mxu0
      %v922 = vadd.f32 0.0, %v921
      %v923 = vpop.f32.mrf.mxu0
      %v924 = vpop.f32.mrf.mxu0
      %v925 = vadd.f32 0.0, %v924
      %v926 = vpop.f32.mrf.mxu0
      %927 = vmatprep.mubr.bf16.mxu0 0
      %928 = vmatmul.mubr.bf16.gmra.mxu0 %v587
      %v929 = vpop.f32.mrf.mxu0
      %v930 = vadd.f32 0.0, %v929
      %v931 = vpop.f32.mrf.mxu0
      %v932 = vpop.f32.mrf.mxu0
      %v933 = vadd.f32 0.0, %v932
      %v934 = vpop.f32.mrf.mxu0
      %935 = vmatprep.mubr.bf16.mxu0 0
      %936 = vmatmul.mubr.bf16.gmra.mxu0 %v588
      %v937 = vpop.f32.mrf.mxu0
      %v938 = vadd.f32 0.0, %v937
      %v939 = vpop.f32.mrf.mxu0
      %v940 = vpop.f32.mrf.mxu0
      %v941 = vadd.f32 0.0, %v940
      %v942 = vpop.f32.mrf.mxu0
      %943 = vmatprep.mubr.bf16.mxu0 0
      %944 = vmatmul.mubr.bf16.gmra.mxu0 %v589
      %v945 = vpop.f32.mrf.mxu0
      %v946 = vadd.f32 0.0, %v945
      %v947 = vpop.f32.mrf.mxu0
      %v948 = vpop.f32.mrf.mxu0
      %v949 = vadd.f32 0.0, %v948
      %v950 = vpop.f32.mrf.mxu0
      %951 = vmatprep.mubr.bf16.mxu0 0
      %952 = vmatmul.mubr.bf16.gmra.mxu0 %v590
      %v953 = vpop.f32.mrf.mxu0
      %v954 = vadd.f32 0.0, %v953
      %v955 = vpop.f32.mrf.mxu0
      %v956 = vpop.f32.mrf.mxu0
      %v957 = vadd.f32 0.0, %v956
      %v958 = vpop.f32.mrf.mxu0
      %959 = vdwg.mxu0
      %v960 = vadd.f32 %v287, %v706
      %v961 = vadd.f32 %v288, %v709
      %v962 = vadd.f32 %v289, %v714
      %v963 = vadd.f32 %v290, %v717
      %v964 = vadd.f32 %v291, %v722
      %v965 = vadd.f32 %v292, %v725
      %v966 = vadd.f32 %v293, %v730
      %v967 = vadd.f32 %v294, %v733
      %v968 = vadd.f32 %v295, %v738
      %v969 = vadd.f32 %v296, %v741
      %v970 = vadd.f32 %v297, %v746
      %v971 = vadd.f32 %v298, %v749
      %v972 = vadd.f32 %v299, %v754
      %v973 = vadd.f32 %v300, %v757
      %v974 = vadd.f32 %v301, %v762
      %v975 = vadd.f32 %v302, %v765
      %v976 = vadd.f32 %v303, %v770
      %v977 = vadd.f32 %v304, %v773
      %v978 = vadd.f32 %v305, %v778
      %v979 = vadd.f32 %v306, %v781
      %v980 = vadd.f32 %v307, %v786
      %v981 = vadd.f32 %v308, %v789
      %v982 = vadd.f32 %v309, %v794
      %v983 = vadd.f32 %v310, %v797
      %v984 = vadd.f32 %v311, %v802
      %v985 = vadd.f32 %v312, %v805
      %v986 = vadd.f32 %v313, %v810
      %v987 = vadd.f32 %v314, %v813
      %v988 = vadd.f32 %v315, %v818
      %v989 = vadd.f32 %v316, %v821
      %v990 = vadd.f32 %v317, %v826
      %v991 = vadd.f32 %v318, %v829
      %v992 = vadd.f32 %v319, %v834
      %v993 = vadd.f32 %v320, %v837
      %v994 = vadd.f32 %v321, %v842
      %v995 = vadd.f32 %v322, %v845
      %v996 = vadd.f32 %v323, %v850
      %v997 = vadd.f32 %v324, %v853
      %v998 = vadd.f32 %v325, %v858
      %v999 = vadd.f32 %v326, %v861
      %v1000 = vadd.f32 %v327, %v866
      %v1001 = vadd.f32 %v328, %v869
      %v1002 = vadd.f32 %v329, %v874
      %v1003 = vadd.f32 %v330, %v877
      %v1004 = vadd.f32 %v331, %v882
      %v1005 = vadd.f32 %v332, %v885
      %v1006 = vadd.f32 %v333, %v890
      %v1007 = vadd.f32 %v334, %v893
      %v1008 = vadd.f32 %v335, %v898
      %v1009 = vadd.f32 %v336, %v901
      %v1010 = vadd.f32 %v337, %v906
      %v1011 = vadd.f32 %v338, %v909
      %v1012 = vadd.f32 %v339, %v914
      %v1013 = vadd.f32 %v340, %v917
      %v1014 = vadd.f32 %v341, %v922
      %v1015 = vadd.f32 %v342, %v925
      %v1016 = vadd.f32 %v343, %v930
      %v1017 = vadd.f32 %v344, %v933
      %v1018 = vadd.f32 %v345, %v938
      %v1019 = vadd.f32 %v346, %v941
      %v1020 = vadd.f32 %v347, %v946
      %v1021 = vadd.f32 %v348, %v949
      %v1022 = vadd.f32 %v349, %v954
      %v1023 = vadd.f32 %v350, %v957
      %1024 = vst [vmem:[#allocation2] sm:$0xff] %v960
      %1025 = vst [vmem:[#allocation2 + $0x8] sm:$0xff] %v961
      %1026 = vst [vmem:[#allocation2 + $0x10] sm:$0xff] %v962
      %1027 = vst [vmem:[#allocation2 + $0x18] sm:$0xff] %v963
      %1028 = vst [vmem:[#allocation2 + $0x20] sm:$0xff] %v964
      %1029 = vst [vmem:[#allocation2 + $0x28] sm:$0xff] %v965
      %1030 = vst [vmem:[#allocation2 + $0x30] sm:$0xff] %v966
      %1031 = vst [vmem:[#allocation2 + $0x38] sm:$0xff] %v967
      %1032 = vst [vmem:[#allocation2 + $0x40] sm:$0xff] %v968
      %1033 = vst [vmem:[#allocation2 + $0x48] sm:$0xff] %v969
      %1034 = vst [vmem:[#allocation2 + $0x50] sm:$0xff] %v970
      %1035 = vst [vmem:[#allocation2 + $0x58] sm:$0xff] %v971
      %1036 = vst [vmem:[#allocation2 + $0x60] sm:$0xff] %v972
      %1037 = vst [vmem:[#allocation2 + $0x68] sm:$0xff] %v973
      %1038 = vst [vmem:[#allocation2 + $0x70] sm:$0xff] %v974
      %1039 = vst [vmem:[#allocation2 + $0x78] sm:$0xff] %v975
      %1040 = vst [vmem:[#allocation2 + $0x80] sm:$0xff] %v976
      %1041 = vst [vmem:[#allocation2 + $0x88] sm:$0xff] %v977
      %1042 = vst [vmem:[#allocation2 + $0x90] sm:$0xff] %v978
      %1043 = vst [vmem:[#allocation2 + $0x98] sm:$0xff] %v979
      %1044 = vst [vmem:[#allocation2 + $0xa0] sm:$0xff] %v980
      %1045 = vst [vmem:[#allocation2 + $0xa8] sm:$0xff] %v981
      %1046 = vst [vmem:[#allocation2 + $0xb0] sm:$0xff] %v982
      %1047 = vst [vmem:[#allocation2 + $0xb8] sm:$0xff] %v983
      %1048 = vst [vmem:[#allocation2 + $0xc0] sm:$0xff] %v984
      %1049 = vst [vmem:[#allocation2 + $0xc8] sm:$0xff] %v985
      %1050 = vst [vmem:[#allocation2 + $0xd0] sm:$0xff] %v986
      %1051 = vst [vmem:[#allocation2 + $0xd8] sm:$0xff] %v987
      %1052 = vst [vmem:[#allocation2 + $0xe0] sm:$0xff] %v988
      %1053 = vst [vmem:[#allocation2 + $0xe8] sm:$0xff] %v989
      %1054 = vst [vmem:[#allocation2 + $0xf0] sm:$0xff] %v990
      %1055 = vst [vmem:[#allocation2 + $0xf8] sm:$0xff] %v991
      %1056 = vst [vmem:[#allocation2 + $0x100] sm:$0xff] %v992
      %1057 = vst [vmem:[#allocation2 + $0x108] sm:$0xff] %v993
      %1058 = vst [vmem:[#allocation2 + $0x110] sm:$0xff] %v994
      %1059 = vst [vmem:[#allocation2 + $0x118] sm:$0xff] %v995
      %1060 = vst [vmem:[#allocation2 + $0x120] sm:$0xff] %v996
      %1061 = vst [vmem:[#allocation2 + $0x128] sm:$0xff] %v997
      %1062 = vst [vmem:[#allocation2 + $0x130] sm:$0xff] %v998
      %1063 = vst [vmem:[#allocation2 + $0x138] sm:$0xff] %v999
      %1064 = vst [vmem:[#allocation2 + $0x140] sm:$0xff] %v1000
      %1065 = vst [vmem:[#allocation2 + $0x148] sm:$0xff] %v1001
      %1066 = vst [vmem:[#allocation2 + $0x150] sm:$0xff] %v1002
      %1067 = vst [vmem:[#allocation2 + $0x158] sm:$0xff] %v1003
      %1068 = vst [vmem:[#allocation2 + $0x160] sm:$0xff] %v1004
      %1069 = vst [vmem:[#allocation2 + $0x168] sm:$0xff] %v1005
      %1070 = vst [vmem:[#allocation2 + $0x170] sm:$0xff] %v1006
      %1071 = vst [vmem:[#allocation2 + $0x178] sm:$0xff] %v1007
      %1072 = vst [vmem:[#allocation2 + $0x180] sm:$0xff] %v1008
      %1073 = vst [vmem:[#allocation2 + $0x188] sm:$0xff] %v1009
      %1074 = vst [vmem:[#allocation2 + $0x190] sm:$0xff] %v1010
      %1075 = vst [vmem:[#allocation2 + $0x198] sm:$0xff] %v1011
      %1076 = vst [vmem:[#allocation2 + $0x1a0] sm:$0xff] %v1012
      %1077 = vst [vmem:[#allocation2 + $0x1a8] sm:$0xff] %v1013
      %1078 = vst [vmem:[#allocation2 + $0x1b0] sm:$0xff] %v1014
      %1079 = vst [vmem:[#allocation2 + $0x1b8] sm:$0xff] %v1015
      %1080 = vst [vmem:[#allocation2 + $0x1c0] sm:$0xff] %v1016
      %1081 = vst [vmem:[#allocation2 + $0x1c8] sm:$0xff] %v1017
      %1082 = vst [vmem:[#allocation2 + $0x1d0] sm:$0xff] %v1018
      %1083 = vst [vmem:[#allocation2 + $0x1d8] sm:$0xff] %v1019
      %1084 = vst [vmem:[#allocation2 + $0x1e0] sm:$0xff] %v1020
      %1085 = vst [vmem:[#allocation2 + $0x1e8] sm:$0xff] %v1021
      %1086 = vst [vmem:[#allocation2 + $0x1f0] sm:$0xff] %v1022
      %1087 = vst [vmem:[#allocation2 + $0x1f8] sm:$0xff] %v1023
      // Predicated region
      $region33: #{g_forward.5} parent=27 // pred_check
        %p1088 = pneg %p219
      $region34: #{g_forward.5} parent=27 // pred_check_branch
        %1090 = sbr.rel (%p1088) target = $region36
      $region35: #{g_forward.5} parent=27 // pred_region
        %v1091 = vld [vmem:[#allocation2] sm:$0xff]
        %v1092 = vld [vmem:[#allocation2 + $0x8] sm:$0xff]
        %v1093 = vld [vmem:[#allocation2 + $0x10] sm:$0xff]
        %v1094 = vld [vmem:[#allocation2 + $0x18] sm:$0xff]
        %v1095 = vld [vmem:[#allocation2 + $0x20] sm:$0xff]
        %v1096 = vld [vmem:[#allocation2 + $0x28] sm:$0xff]
        %v1097 = vld [vmem:[#allocation2 + $0x30] sm:$0xff]
        %v1098 = vld [vmem:[#allocation2 + $0x38] sm:$0xff]
        %v1099 = vld [vmem:[#allocation2 + $0x40] sm:$0xff]
        %v1100 = vld [vmem:[#allocation2 + $0x48] sm:$0xff]
        %v1101 = vld [vmem:[#allocation2 + $0x50] sm:$0xff]
        %v1102 = vld [vmem:[#allocation2 + $0x58] sm:$0xff]
        %v1103 = vld [vmem:[#allocation2 + $0x60] sm:$0xff]
        %v1104 = vld [vmem:[#allocation2 + $0x68] sm:$0xff]
        %v1105 = vld [vmem:[#allocation2 + $0x70] sm:$0xff]
        %v1106 = vld [vmem:[#allocation2 + $0x78] sm:$0xff]
        %v1107 = vld [vmem:[#allocation2 + $0x80] sm:$0xff]
        %v1108 = vld [vmem:[#allocation2 + $0x88] sm:$0xff]
        %v1109 = vld [vmem:[#allocation2 + $0x90] sm:$0xff]
        %v1110 = vld [vmem:[#allocation2 + $0x98] sm:$0xff]
        %v1111 = vld [vmem:[#allocation2 + $0xa0] sm:$0xff]
        %v1112 = vld [vmem:[#allocation2 + $0xa8] sm:$0xff]
        %v1113 = vld [vmem:[#allocation2 + $0xb0] sm:$0xff]
        %v1114 = vld [vmem:[#allocation2 + $0xb8] sm:$0xff]
        %v1115 = vld [vmem:[#allocation2 + $0xc0] sm:$0xff]
        %v1116 = vld [vmem:[#allocation2 + $0xc8] sm:$0xff]
        %v1117 = vld [vmem:[#allocation2 + $0xd0] sm:$0xff]
        %v1118 = vld [vmem:[#allocation2 + $0xd8] sm:$0xff]
        %v1119 = vld [vmem:[#allocation2 + $0xe0] sm:$0xff]
        %v1120 = vld [vmem:[#allocation2 + $0xe8] sm:$0xff]
        %v1121 = vld [vmem:[#allocation2 + $0xf0] sm:$0xff]
        %v1122 = vld [vmem:[#allocation2 + $0xf8] sm:$0xff]
        %v1123 = vld [vmem:[#allocation2 + $0x100] sm:$0xff]
        %v1124 = vld [vmem:[#allocation2 + $0x108] sm:$0xff]
        %v1125 = vld [vmem:[#allocation2 + $0x110] sm:$0xff]
        %v1126 = vld [vmem:[#allocation2 + $0x118] sm:$0xff]
        %v1127 = vld [vmem:[#allocation2 + $0x120] sm:$0xff]
        %v1128 = vld [vmem:[#allocation2 + $0x128] sm:$0xff]
        %v1129 = vld [vmem:[#allocation2 + $0x130] sm:$0xff]
        %v1130 = vld [vmem:[#allocation2 + $0x138] sm:$0xff]
        %v1131 = vld [vmem:[#allocation2 + $0x140] sm:$0xff]
        %v1132 = vld [vmem:[#allocation2 + $0x148] sm:$0xff]
        %v1133 = vld [vmem:[#allocation2 + $0x150] sm:$0xff]
        %v1134 = vld [vmem:[#allocation2 + $0x158] sm:$0xff]
        %v1135 = vld [vmem:[#allocation2 + $0x160] sm:$0xff]
        %v1136 = vld [vmem:[#allocation2 + $0x168] sm:$0xff]
        %v1137 = vld [vmem:[#allocation2 + $0x170] sm:$0xff]
        %v1138 = vld [vmem:[#allocation2 + $0x178] sm:$0xff]
        %v1139 = vld [vmem:[#allocation2 + $0x180] sm:$0xff]
        %v1140 = vld [vmem:[#allocation2 + $0x188] sm:$0xff]
        %v1141 = vld [vmem:[#allocation2 + $0x190] sm:$0xff]
        %v1142 = vld [vmem:[#allocation2 + $0x198] sm:$0xff]
        %v1143 = vld [vmem:[#allocation2 + $0x1a0] sm:$0xff]
        %v1144 = vld [vmem:[#allocation2 + $0x1a8] sm:$0xff]
        %v1145 = vld [vmem:[#allocation2 + $0x1b0] sm:$0xff]
        %v1146 = vld [vmem:[#allocation2 + $0x1b8] sm:$0xff]
        %v1147 = vld [vmem:[#allocation2 + $0x1c0] sm:$0xff]
        %v1148 = vld [vmem:[#allocation2 + $0x1c8] sm:$0xff]
        %v1149 = vld [vmem:[#allocation2 + $0x1d0] sm:$0xff]
        %v1150 = vld [vmem:[#allocation2 + $0x1d8] sm:$0xff]
        %v1151 = vld [vmem:[#allocation2 + $0x1e0] sm:$0xff]
        %v1152 = vld [vmem:[#allocation2 + $0x1e8] sm:$0xff]
        %v1153 = vld [vmem:[#allocation2 + $0x1f0] sm:$0xff]
        %v1154 = vld [vmem:[#allocation2 + $0x1f8] sm:$0xff]
        %v1155 = vpack.c.bf16 %v1092, %v1091
        %v1156 = vpack.c.bf16 %v1094, %v1093
        %v1157 = vpack.c.bf16 %v1096, %v1095
        %v1158 = vpack.c.bf16 %v1098, %v1097
        %v1159 = vpack.c.bf16 %v1100, %v1099
        %v1160 = vpack.c.bf16 %v1102, %v1101
        %v1161 = vpack.c.bf16 %v1104, %v1103
        %v1162 = vpack.c.bf16 %v1106, %v1105
        %v1163 = vpack.c.bf16 %v1108, %v1107
        %v1164 = vpack.c.bf16 %v1110, %v1109
        %v1165 = vpack.c.bf16 %v1112, %v1111
        %v1166 = vpack.c.bf16 %v1114, %v1113
        %v1167 = vpack.c.bf16 %v1116, %v1115
        %v1168 = vpack.c.bf16 %v1118, %v1117
        %v1169 = vpack.c.bf16 %v1120, %v1119
        %v1170 = vpack.c.bf16 %v1122, %v1121
        %v1171 = vpack.c.bf16 %v1124, %v1123
        %v1172 = vpack.c.bf16 %v1126, %v1125
        %v1173 = vpack.c.bf16 %v1128, %v1127
        %v1174 = vpack.c.bf16 %v1130, %v1129
        %v1175 = vpack.c.bf16 %v1132, %v1131
        %v1176 = vpack.c.bf16 %v1134, %v1133
        %v1177 = vpack.c.bf16 %v1136, %v1135
        %v1178 = vpack.c.bf16 %v1138, %v1137
        %v1179 = vpack.c.bf16 %v1140, %v1139
        %v1180 = vpack.c.bf16 %v1142, %v1141
        %v1181 = vpack.c.bf16 %v1144, %v1143
        %v1182 = vpack.c.bf16 %v1146, %v1145
        %v1183 = vpack.c.bf16 %v1148, %v1147
        %v1184 = vpack.c.bf16 %v1150, %v1149
        %v1185 = vpack.c.bf16 %v1152, %v1151
        %v1186 = vpack.c.bf16 %v1154, %v1153
        %v1219 = vunpack.c.l.b16 %v1155
        %v1220 = vunpack.c.h.b16 %v1155
        %v1221 = vunpack.c.l.b16 %v1156
        %v1222 = vunpack.c.h.b16 %v1156
        %v1223 = vunpack.c.l.b16 %v1157
        %v1224 = vunpack.c.h.b16 %v1157
        %v1225 = vunpack.c.l.b16 %v1158
        %v1226 = vunpack.c.h.b16 %v1158
        %v1227 = vunpack.c.l.b16 %v1159
        %v1228 = vunpack.c.h.b16 %v1159
        %v1229 = vunpack.c.l.b16 %v1160
        %v1230 = vunpack.c.h.b16 %v1160
        %v1231 = vunpack.c.l.b16 %v1161
        %v1232 = vunpack.c.h.b16 %v1161
        %v1233 = vunpack.c.l.b16 %v1162
        %v1234 = vunpack.c.h.b16 %v1162
        %v1235 = vunpack.c.l.b16 %v1163
        %v1236 = vunpack.c.h.b16 %v1163
        %v1237 = vunpack.c.l.b16 %v1164
        %v1238 = vunpack.c.h.b16 %v1164
        %v1239 = vunpack.c.l.b16 %v1165
        %v1240 = vunpack.c.h.b16 %v1165
        %v1241 = vunpack.c.l.b16 %v1166
        %v1242 = vunpack.c.h.b16 %v1166
        %v1243 = vunpack.c.l.b16 %v1167
        %v1244 = vunpack.c.h.b16 %v1167
        %v1245 = vunpack.c.l.b16 %v1168
        %v1246 = vunpack.c.h.b16 %v1168
        %v1247 = vunpack.c.l.b16 %v1169
        %v1248 = vunpack.c.h.b16 %v1169
        %v1249 = vunpack.c.l.b16 %v1170
        %v1250 = vunpack.c.h.b16 %v1170
        %v1251 = vunpack.c.l.b16 %v1171
        %v1252 = vunpack.c.h.b16 %v1171
        %v1253 = vunpack.c.l.b16 %v1172
        %v1254 = vunpack.c.h.b16 %v1172
        %v1255 = vunpack.c.l.b16 %v1173
        %v1256 = vunpack.c.h.b16 %v1173
        %v1257 = vunpack.c.l.b16 %v1174
        %v1258 = vunpack.c.h.b16 %v1174
        %v1259 = vunpack.c.l.b16 %v1175
        %v1260 = vunpack.c.h.b16 %v1175
        %v1261 = vunpack.c.l.b16 %v1176
        %v1262 = vunpack.c.h.b16 %v1176
        %v1263 = vunpack.c.l.b16 %v1177
        %v1264 = vunpack.c.h.b16 %v1177
        %v1265 = vunpack.c.l.b16 %v1178
        %v1266 = vunpack.c.h.b16 %v1178
        %v1267 = vunpack.c.l.b16 %v1179
        %v1268 = vunpack.c.h.b16 %v1179
        %v1269 = vunpack.c.l.b16 %v1180
        %v1270 = vunpack.c.h.b16 %v1180
        %v1271 = vunpack.c.l.b16 %v1181
        %v1272 = vunpack.c.h.b16 %v1181
        %v1273 = vunpack.c.l.b16 %v1182
        %v1274 = vunpack.c.h.b16 %v1182
        %v1275 = vunpack.c.l.b16 %v1183
        %v1276 = vunpack.c.h.b16 %v1183
        %v1277 = vunpack.c.l.b16 %v1184
        %v1278 = vunpack.c.h.b16 %v1184
        %v1279 = vunpack.c.l.b16 %v1185
        %v1280 = vunpack.c.h.b16 %v1185
        %v1281 = vunpack.c.l.b16 %v1186
        %v1282 = vunpack.c.h.b16 %v1186
        %v1283 = vpack.c.b16 %v1219, %v1219
        %v1284 = vpack.c.b16 %v1220, %v1220
        %v1285 = vpack.c.b16 %v1221, %v1221
        %v1286 = vpack.c.b16 %v1222, %v1222
        %v1287 = vpack.c.b16 %v1223, %v1223
        %v1288 = vpack.c.b16 %v1224, %v1224
        %v1289 = vpack.c.b16 %v1225, %v1225
        %v1290 = vpack.c.b16 %v1226, %v1226
        %v1291 = vpack.c.b16 %v1227, %v1227
        %v1292 = vpack.c.b16 %v1228, %v1228
        %v1293 = vpack.c.b16 %v1229, %v1229
        %v1294 = vpack.c.b16 %v1230, %v1230
        %v1295 = vpack.c.b16 %v1231, %v1231
        %v1296 = vpack.c.b16 %v1232, %v1232
        %v1297 = vpack.c.b16 %v1233, %v1233
        %v1298 = vpack.c.b16 %v1234, %v1234
        %v1299 = vpack.c.b16 %v1235, %v1235
        %v1300 = vpack.c.b16 %v1236, %v1236
        %v1301 = vpack.c.b16 %v1237, %v1237
        %v1302 = vpack.c.b16 %v1238, %v1238
        %v1303 = vpack.c.b16 %v1239, %v1239
        %v1304 = vpack.c.b16 %v1240, %v1240
        %v1305 = vpack.c.b16 %v1241, %v1241
        %v1306 = vpack.c.b16 %v1242, %v1242
        %v1307 = vpack.c.b16 %v1243, %v1243
        %v1308 = vpack.c.b16 %v1244, %v1244
        %v1309 = vpack.c.b16 %v1245, %v1245
        %v1310 = vpack.c.b16 %v1246, %v1246
        %v1311 = vpack.c.b16 %v1247, %v1247
        %v1312 = vpack.c.b16 %v1248, %v1248
        %v1313 = vpack.c.b16 %v1249, %v1249
        %v1314 = vpack.c.b16 %v1250, %v1250
        %v1315 = vpack.c.b16 %v1251, %v1251
        %v1316 = vpack.c.b16 %v1252, %v1252
        %v1317 = vpack.c.b16 %v1253, %v1253
        %v1318 = vpack.c.b16 %v1254, %v1254
        %v1319 = vpack.c.b16 %v1255, %v1255
        %v1320 = vpack.c.b16 %v1256, %v1256
        %v1321 = vpack.c.b16 %v1257, %v1257
        %v1322 = vpack.c.b16 %v1258, %v1258
        %v1323 = vpack.c.b16 %v1259, %v1259
        %v1324 = vpack.c.b16 %v1260, %v1260
        %v1325 = vpack.c.b16 %v1261, %v1261
        %v1326 = vpack.c.b16 %v1262, %v1262
        %v1327 = vpack.c.b16 %v1263, %v1263
        %v1328 = vpack.c.b16 %v1264, %v1264
        %v1329 = vpack.c.b16 %v1265, %v1265
        %v1330 = vpack.c.b16 %v1266, %v1266
        %v1331 = vpack.c.b16 %v1267, %v1267
        %v1332 = vpack.c.b16 %v1268, %v1268
        %v1333 = vpack.c.b16 %v1269, %v1269
        %v1334 = vpack.c.b16 %v1270, %v1270
        %v1335 = vpack.c.b16 %v1271, %v1271
        %v1336 = vpack.c.b16 %v1272, %v1272
        %v1337 = vpack.c.b16 %v1273, %v1273
        %v1338 = vpack.c.b16 %v1274, %v1274
        %v1339 = vpack.c.b16 %v1275, %v1275
        %v1340 = vpack.c.b16 %v1276, %v1276
        %v1341 = vpack.c.b16 %v1277, %v1277
        %v1342 = vpack.c.b16 %v1278, %v1278
        %v1343 = vpack.c.b16 %v1279, %v1279
        %v1344 = vpack.c.b16 %v1280, %v1280
        %v1345 = vpack.c.b16 %v1281, %v1281
        %v1346 = vpack.c.b16 %v1282, %v1282
        %1411 = vst [vmem:[%s216] sm:$0xf] %v1283
        %1412 = vst [vmem:[%s216 + $0x4] sm:$0xf] %v1284
        %1413 = vst [vmem:[%s216 + $0x8] sm:$0xf] %v1285
        %1414 = vst [vmem:[%s216 + $0xc] sm:$0xf] %v1286
        %1415 = vst [vmem:[%s216 + $0x10] sm:$0xf] %v1287
        %1416 = vst [vmem:[%s216 + $0x14] sm:$0xf] %v1288
        %1417 = vst [vmem:[%s216 + $0x18] sm:$0xf] %v1289
        %1418 = vst [vmem:[%s216 + $0x1c] sm:$0xf] %v1290
        %1419 = vst [vmem:[%s216 + $0x20] sm:$0xf] %v1291
        %1420 = vst [vmem:[%s216 + $0x24] sm:$0xf] %v1292
        %1421 = vst [vmem:[%s216 + $0x28] sm:$0xf] %v1293
        %1422 = vst [vmem:[%s216 + $0x2c] sm:$0xf] %v1294
        %1423 = vst [vmem:[%s216 + $0x30] sm:$0xf] %v1295
        %1424 = vst [vmem:[%s216 + $0x34] sm:$0xf] %v1296
        %1425 = vst [vmem:[%s216 + $0x38] sm:$0xf] %v1297
        %1426 = vst [vmem:[%s216 + $0x3c] sm:$0xf] %v1298
        %1427 = vst [vmem:[%s216 + $0x40] sm:$0xf] %v1299
        %1428 = vst [vmem:[%s216 + $0x44] sm:$0xf] %v1300
        %1429 = vst [vmem:[%s216 + $0x48] sm:$0xf] %v1301
        %1430 = vst [vmem:[%s216 + $0x4c] sm:$0xf] %v1302
        %1431 = vst [vmem:[%s216 + $0x50] sm:$0xf] %v1303
        %1432 = vst [vmem:[%s216 + $0x54] sm:$0xf] %v1304
        %1433 = vst [vmem:[%s216 + $0x58] sm:$0xf] %v1305
        %1434 = vst [vmem:[%s216 + $0x5c] sm:$0xf] %v1306
        %1435 = vst [vmem:[%s216 + $0x60] sm:$0xf] %v1307
        %1436 = vst [vmem:[%s216 + $0x64] sm:$0xf] %v1308
        %1437 = vst [vmem:[%s216 + $0x68] sm:$0xf] %v1309
        %1438 = vst [vmem:[%s216 + $0x6c] sm:$0xf] %v1310
        %1439 = vst [vmem:[%s216 + $0x70] sm:$0xf] %v1311
        %1440 = vst [vmem:[%s216 + $0x74] sm:$0xf] %v1312
        %1441 = vst [vmem:[%s216 + $0x78] sm:$0xf] %v1313
        %1442 = vst [vmem:[%s216 + $0x7c] sm:$0xf] %v1314
        %1443 = vst [vmem:[%s216 + $0x80] sm:$0xf] %v1315
        %1444 = vst [vmem:[%s216 + $0x84] sm:$0xf] %v1316
        %1445 = vst [vmem:[%s216 + $0x88] sm:$0xf] %v1317
        %1446 = vst [vmem:[%s216 + $0x8c] sm:$0xf] %v1318
        %1447 = vst [vmem:[%s216 + $0x90] sm:$0xf] %v1319
        %1448 = vst [vmem:[%s216 + $0x94] sm:$0xf] %v1320
        %1449 = vst [vmem:[%s216 + $0x98] sm:$0xf] %v1321
        %1450 = vst [vmem:[%s216 + $0x9c] sm:$0xf] %v1322
        %1451 = vst [vmem:[%s216 + $0xa0] sm:$0xf] %v1323
        %1452 = vst [vmem:[%s216 + $0xa4] sm:$0xf] %v1324
        %1453 = vst [vmem:[%s216 + $0xa8] sm:$0xf] %v1325
        %1454 = vst [vmem:[%s216 + $0xac] sm:$0xf] %v1326
        %1455 = vst [vmem:[%s216 + $0xb0] sm:$0xf] %v1327
        %1456 = vst [vmem:[%s216 + $0xb4] sm:$0xf] %v1328
        %1457 = vst [vmem:[%s216 + $0xb8] sm:$0xf] %v1329
        %1458 = vst [vmem:[%s216 + $0xbc] sm:$0xf] %v1330
        %1459 = vst [vmem:[%s216 + $0xc0] sm:$0xf] %v1331
        %1460 = vst [vmem:[%s216 + $0xc4] sm:$0xf] %v1332
        %1461 = vst [vmem:[%s216 + $0xc8] sm:$0xf] %v1333
        %1462 = vst [vmem:[%s216 + $0xcc] sm:$0xf] %v1334
        %1463 = vst [vmem:[%s216 + $0xd0] sm:$0xf] %v1335
        %1464 = vst [vmem:[%s216 + $0xd4] sm:$0xf] %v1336
        %1465 = vst [vmem:[%s216 + $0xd8] sm:$0xf] %v1337
        %1466 = vst [vmem:[%s216 + $0xdc] sm:$0xf] %v1338
        %1467 = vst [vmem:[%s216 + $0xe0] sm:$0xf] %v1339
        %1468 = vst [vmem:[%s216 + $0xe4] sm:$0xf] %v1340
        %1469 = vst [vmem:[%s216 + $0xe8] sm:$0xf] %v1341
        %1470 = vst [vmem:[%s216 + $0xec] sm:$0xf] %v1342
        %1471 = vst [vmem:[%s216 + $0xf0] sm:$0xf] %v1343
        %1472 = vst [vmem:[%s216 + $0xf4] sm:$0xf] %v1344
        %1473 = vst [vmem:[%s216 + $0xf8] sm:$0xf] %v1345
        %1474 = vst [vmem:[%s216 + $0xfc] sm:$0xf] %v1346
      $region36: #{g_forward.5} parent=27 // pred_fallthru
        _
      %s1475 = smul.u32 64, %s18
      %p1476 = scmp.lt.s32.totalorder %s1475, 191
      %s1477 = scalar_select %p1476, %s1475, 191
      %p1478 = scmp.lt.s32.totalorder %s19, 0
      %s1479 = scalar_select %p1478, %s19, 0
      %s1480 = sadd.s32 %s1479, %s1477
      %s1481 = smul.addr %s1480, 4
      %s1482 = scalar_lea.vmem %s2, %s1481
      // Predicated region
      $region37: #{g_forward.5} parent=27 // pred_check
        %p1483 = pneg %p108
      $region38: #{g_forward.5} parent=27 // pred_check_branch
        %1485 = sbr.rel (%p1483) target = $region40
      $region39: #{g_forward.5} parent=27 // pred_region
        %s1486 = smul.u32 64, %s18
      $region40: #{g_forward.5} parent=27 // pred_fallthru
        _
    $region28: #{g_forward.5} parent=5 // pred_fallthru
      _
    %p1487 = scmp.le.s32.totalorder 2, %s8
    // Predicated region
    $region41: #{g_forward.5} parent=5 // pred_check
      %p1488 = pneg %p1487
    $region42: #{g_forward.5} parent=5 // pred_check_branch
      %1490 = sbr.rel (%p1488) target = $region44
    $region43: #{g_forward.5} parent=5 // pred_region
      %s1491 = ssub.s32 %s8, 2
      // Predicated region
      $region45: #{g_forward.5} parent=43 // pred_check
        %p1492 = pneg %p114
      $region46: #{g_forward.5} parent=43 // pred_check_branch
        %1494 = sbr.rel (%p1492) target = $region48
      $region47: #{g_forward.5} parent=43 // pred_region
        %s1495 = smul.u32 64, %s21
        %p1496 = scmp.lt.s32.totalorder %s1495, 191
        %s1497 = scalar_select %p1496, %s1495, 191
        %p1498 = scmp.lt.s32.totalorder %s22, 0
        %s1499 = scalar_select %p1498, %s22, 0
        %s1500 = sadd.s32 %s1499, %s1497
        %s1501 = smul.addr %s1500, 4
        %s1502 = scalar_lea.vmem %s2, %s1501
      $region48: #{g_forward.5} parent=43 // pred_fallthru
        _
    $region44: #{g_forward.5} parent=5 // pred_fallthru
      _
  $region6: #{g_forward.5} parent=0 // loop_footer
    %s12 = sadd.s32 1, %s8
  $region7: #{g_forward.5} parent=0 // loop_footer_branch
    %7 = sbr.rel target = $region3
  $region8: #{g_forward.5} parent=0 // loop_exit
    _

// kernel: g_forward.6
$region0: #{g_forward.6}
  #allocation0 [shape = 'u32[]', space=smem, size = 0x4, offset = 0x4, fixed_abs, tag = 'smem constant byte address 0x4 - core index']
  #allocation1 [shape = 'u32[144,128]{1,0:T(1,128)}', space=vmem, size = 0x12000, scoped, tag = 'internal scratch']
  #allocation2 [shape = 'f32[512,128]{1,0:T(8,128)}', space=vmem, size = 0x40000, scoped, tag = 'scratch operand']
  %s0 = inlined_call_operand.vmem [shape: bf16[8192,128], index: 0, kind: input, shape index: {}]
  %s1 = inlined_call_operand.vmem [shape: bf16[128,128], index: 1, kind: input, shape index: {}]
  %s2 = inlined_call_operand.vmem [shape: bf16[8192,128], index: 2, kind: output, shape index: {0}]
  %s3 = inlined_call_operand.vmem [shape: f32[16,2,128], index: 3, kind: output, shape index: {1}]
  %4 = xla_tuple %s2, %s3
  %s5 = sld [smem:[#allocation0]]
  $region57: #{g_forward.6} parent=0
    _
  %s7 = ssub.s32 1, %s5
  %s8 = scalar_select 0, %s7, %s5
  loop: start=0, step=1, limit=18
  $region2: #{g_forward.6} parent=0 // loop_pre_header
    _
  $region3: #{g_forward.6} parent=0 // loop_header
    %s10 = sphi 0, %s14
    %p11 = scmp.ge.s32.totalorder %s10, 18
    %s17 = sphi 0, %s29
    %s18 = sphi 0, %s25
    %s19 = sphi 0, %s17
    %s20 = sphi 0, %s18
    %s21 = sphi 0, %s19
    %s22 = sphi 0, %s20
    %s34 = sphi 0, %s36
    %s37 = sphi 0, %s34
    %s38 = sphi 0, %s37
    %s54 = sphi 0, %s38
    %s60 = sphi 0, %s62
    %s63 = sphi 0, %s60
    %s64 = sphi 0, %s63
    %s80 = sphi 0, %s64
    %s86 = sphi 0, %s88
    %s89 = sphi 0, %s86
    %s90 = sphi 0, %s89
    %s106 = sphi 0, %s90
    %s112 = sphi 0, %s114
    %s115 = sphi 0, %s112
    %s116 = sphi 0, %s115
    %s132 = sphi 0, %s116
  $region4: #{g_forward.6} parent=0 // loop_header_branch
    %13 = sbr.rel (%p11) target = $region8
  $region5: #{g_forward.6} parent=0 // loop_body
    %s15 = ssub.s32 %s10, 1
    %s16 = ssub.s32 %s10, 2
    %s23 = sadd.s32 1, %s18
    %p24 = scmp.ge.s32.totalorder %s23, 1
    %s25 = scalar_select %p24, 0, %s23
    %s26 = sadd.s32 1, %s17
    %s27 = scalar_select %p24, %s26, %s17
    %p28 = scmp.ge.s32.totalorder %s27, 16
    %s29 = scalar_select %p28, 0, %s27
    %s30 = ssub.s32 %s17, %s29
    %s31 = ssub.s32 %s18, %s25
    %s32 = sor.u32 %s30, %s31
    %p33 = scmp.eq.s32.totalorder %s32, 0
    %s35 = sadd.s32 %s34, 1
    %s36 = scalar_select %p33, %s34, %s35
    %p39 = pneg %p33
    %p40 = scmp.eq.s32.totalorder %s10, 15
    %p41 = por %p39, %p40
    %p42 = scmp.ne.s32.totalorder %s34, %s37
    %p43 = scmp.eq.s32.totalorder %s10, 0
    %p44 = por %p42, %p43
    %p45 = scmp.ne.s32.totalorder %s34, %s37
    %p46 = scmp.eq.s32.totalorder %s15, 15
    %p47 = por %p45, %p46
    %p48 = scmp.ne.s32.totalorder %s37, %s38
    %p49 = scmp.eq.s32.totalorder %s15, 0
    %p50 = por %p48, %p49
    %p51 = scmp.ne.s32.totalorder %s37, %s38
    %p52 = scmp.eq.s32.totalorder %s16, 15
    %p53 = por %p51, %p52
    %p55 = scmp.ne.s32.totalorder %s38, %s54
    %p56 = scmp.eq.s32.totalorder %s16, 0
    %p57 = por %p55, %p56
    %s58 = ssub.s32 %s18, %s25
    %p59 = scmp.eq.s32.totalorder %s58, 0
    %s61 = sadd.s32 %s60, 1
    %s62 = scalar_select %p59, %s60, %s61
    %p65 = pneg %p59
    %p66 = scmp.eq.s32.totalorder %s10, 15
    %p67 = por %p65, %p66
    %p68 = scmp.ne.s32.totalorder %s60, %s63
    %p69 = scmp.eq.s32.totalorder %s10, 0
    %p70 = por %p68, %p69
    %p71 = scmp.ne.s32.totalorder %s60, %s63
    %p72 = scmp.eq.s32.totalorder %s15, 15
    %p73 = por %p71, %p72
    %p74 = scmp.ne.s32.totalorder %s63, %s64
    %p75 = scmp.eq.s32.totalorder %s15, 0
    %p76 = por %p74, %p75
    %p77 = scmp.ne.s32.totalorder %s63, %s64
    %p78 = scmp.eq.s32.totalorder %s16, 15
    %p79 = por %p77, %p78
    %p81 = scmp.ne.s32.totalorder %s64, %s80
    %p82 = scmp.eq.s32.totalorder %s16, 0
    %p83 = por %p81, %p82
    %s84 = ssub.s32 %s17, %s29
    %p85 = scmp.eq.s32.totalorder %s84, 0
    %s87 = sadd.s32 %s86, 1
    %s88 = scalar_select %p85, %s86, %s87
    %p91 = pneg %p85
    %p92 = scmp.eq.s32.totalorder %s10, 15
    %p93 = por %p91, %p92
    %p94 = scmp.ne.s32.totalorder %s86, %s89
    %p95 = scmp.eq.s32.totalorder %s10, 0
    %p96 = por %p94, %p95
    %p97 = scmp.ne.s32.totalorder %s86, %s89
    %p98 = scmp.eq.s32.totalorder %s15, 15
    %p99 = por %p97, %p98
    %p100 = scmp.ne.s32.totalorder %s89, %s90
    %p101 = scmp.eq.s32.totalorder %s15, 0
    %p102 = por %p100, %p101
    %p103 = scmp.ne.s32.totalorder %s89, %s90
    %p104 = scmp.eq.s32.totalorder %s16, 15
    %p105 = por %p103, %p104
    %p107 = scmp.ne.s32.totalorder %s90, %s106
    %p108 = scmp.eq.s32.totalorder %s16, 0
    %p109 = por %p107, %p108
    %s110 = ssub.s32 %s17, %s29
    %p111 = scmp.eq.s32.totalorder %s110, 0
    %s113 = sadd.s32 %s112, 1
    %s114 = scalar_select %p111, %s112, %s113
    %p117 = pneg %p111
    %p118 = scmp.eq.s32.totalorder %s10, 15
    %p119 = por %p117, %p118
    %p120 = scmp.ne.s32.totalorder %s112, %s115
    %p121 = scmp.eq.s32.totalorder %s10, 0
    %p122 = por %p120, %p121
    %p123 = scmp.ne.s32.totalorder %s112, %s115
    %p124 = scmp.eq.s32.totalorder %s15, 15
    %p125 = por %p123, %p124
    %p126 = scmp.ne.s32.totalorder %s115, %s116
    %p127 = scmp.eq.s32.totalorder %s15, 0
    %p128 = por %p126, %p127
    %p129 = scmp.ne.s32.totalorder %s115, %s116
    %p130 = scmp.eq.s32.totalorder %s16, 15
    %p131 = por %p129, %p130
    %p133 = scmp.ne.s32.totalorder %s116, %s132
    %p134 = scmp.eq.s32.totalorder %s16, 0
    %p135 = por %p133, %p134
    %p136 = scmp.le.s32.totalorder 1, %s10
    %p137 = scmp.lt.s32.totalorder %s10, 17
    %p138 = pnand %p136, %p137
    %p139 = pneg %p138
    // Predicated region
    $region9: #{g_forward.6} parent=5 // pred_check
      _
    $region10: #{g_forward.6} parent=5 // pred_check_branch
      %141 = sbr.rel (%p138) target = $region12
    $region11: #{g_forward.6} parent=5 // pred_region
      %s142 = ssub.s32 %s10, 1
      // Predicated region
      $region13: #{g_forward.6} parent=11 // pred_check
        %p143 = pneg %p76
      $region14: #{g_forward.6} parent=11 // pred_check_branch
        %145 = sbr.rel (%p143) target = $region16
      $region15: #{g_forward.6} parent=11 // pred_region
        %s146 = smul.u32 16, %s20
        %p147 = scmp.lt.s32.totalorder %s146, 15
        %s148 = scalar_select %p147, %s146, 15
        %s149 = smul.addr %s148, 4
        %s150 = scalar_lea.vmem %s1, %s149
        %s151 = smul.u32 16, %s20
      $region16: #{g_forward.6} parent=11 // pred_fallthru
        _
    $region12: #{g_forward.6} parent=5 // pred_fallthru
      _
    %p152 = scmp.lt.s32.totalorder %s10, 16
    // Predicated region
    $region17: #{g_forward.6} parent=5 // pred_check
      %p153 = pneg %p152
    $region18: #{g_forward.6} parent=5 // pred_check_branch
      %155 = sbr.rel (%p153) target = $region20
    $region19: #{g_forward.6} parent=5 // pred_region
      // Predicated region
      $region21: #{g_forward.6} parent=19 // pred_check
        %p156 = pneg %p44
      $region22: #{g_forward.6} parent=19 // pred_check_branch
        %158 = sbr.rel (%p156) target = $region24
      $region23: #{g_forward.6} parent=19 // pred_region
        %s159 = smul.u32 64, %s17
        %p160 = scmp.lt.s32.totalorder %s159, 1023
        %s161 = scalar_select %p160, %s159, 1023
        %p162 = scmp.lt.s32.totalorder %s18, 0
        %s163 = scalar_select %p162, %s18, 0
        %s164 = sadd.s32 %s163, %s161
        %s165 = smul.addr %s164, 4
        %s166 = scalar_lea.vmem %s0, %s165
        %s167 = smul.u32 64, %s17
      $region24: #{g_forward.6} parent=19 // pred_fallthru
        _
    $region20: #{g_forward.6} parent=5 // pred_fallthru
      _
    %p168 = scmp.le.s32.totalorder 1, %s10
    %p169 = scmp.lt.s32.totalorder %s10, 17
    %p170 = pnand %p168, %p169
    %p171 = pneg %p170
    // Predicated region
    $region25: #{g_forward.6} parent=5 // pred_check
      _
    $region26: #{g_forward.6} parent=5 // pred_check_branch
      %173 = sbr.rel (%p170) target = $region28
    $region27: #{g_forward.6} parent=5 // pred_region
      %s174 = ssub.s32 %s10, 1
      %s175 = smul.u32 64, %s19
      %p176 = scmp.lt.s32.totalorder %s175, 1023
      %s177 = scalar_select %p176, %s175, 1023
      %p178 = scmp.lt.s32.totalorder %s20, 0
      %s179 = scalar_select %p178, %s20, 0
      %s180 = sadd.s32 %s179, %s177
      %s181 = smul.addr %s180, 4
      %s182 = scalar_lea.vmem %s0, %s181
      %p183 = pneg %p50
      %p184 = pneg %p47
      %s185 = smul.u32 16, %s20
      %p186 = scmp.lt.s32.totalorder %s185, 15
      %s187 = scalar_select %p186, %s185, 15
      %s188 = smul.addr %s187, 4
      %s189 = scalar_lea.vmem %s1, %s188
      %p190 = pneg %p76
      %p191 = pneg %p73
      %p192 = pneg %p102
      %p193 = pneg %p99
      %s194 = smul.u32 64, %s19
      %p195 = scmp.lt.s32.totalorder %s194, 1023
      %s196 = scalar_select %p195, %s194, 1023
      %s197 = smul.addr %s196, 4
      %s198 = scalar_lea.vmem %s2, %s197
      %p199 = pneg %p128
      %p200 = pneg %p125
      %p201 = scmp.lt.s32.totalorder %s19, 15
      %s202 = scalar_select %p201, %s19, 15
      %s203 = smul.addr %s202, 2
      %s204 = scalar_lea.vmem %s3, %s203
      %s205 = smul.u32 64, %s19
      %p206 = scmp.lt.s32.totalorder %s205, 1023
      %s207 = scalar_select %p206, %s205, 1023
      %p208 = scmp.lt.s32.totalorder %s20, 0
      %s209 = scalar_select %p208, %s20, 0
      %s210 = sadd.s32 %s209, %s207
      %s211 = smul.addr %s210, 4
      %s212 = scalar_lea.vmem %s0, %s211
      %s213 = smul.u32 64, %s19
      %s214 = smul.u32 16, %s20
      %p215 = scmp.lt.s32.totalorder %s214, 15
      %s216 = scalar_select %p215, %s214, 15
      %s217 = smul.addr %s216, 4
      %s218 = scalar_lea.vmem %s1, %s217
      %s219 = smul.u32 16, %s20
      %s220 = smul.u32 64, %s19
      %p221 = scmp.lt.s32.totalorder %s220, 1023
      %s222 = scalar_select %p221, %s220, 1023
      %s223 = smul.addr %s222, 4
      %s224 = scalar_lea.vmem %s2, %s223
      %s225 = smul.u32 64, %s19
      %p226 = scmp.lt.s32.totalorder %s19, 15
      %s227 = scalar_select %p226, %s19, 15
      %s228 = smul.addr %s227, 2
      %s229 = scalar_lea.vmem %s3, %s228
      %p231 = scmp.eq.s32.totalorder %s20, 0
      // Predicated region
      $region29: #{g_forward.6} parent=27 // pred_check
        %p232 = pneg %p231
      $region30: #{g_forward.6} parent=27 // pred_check_branch
        %234 = sbr.rel (%p232) target = $region32
      $region31: #{g_forward.6} parent=27 // pred_region
        %235 = vst [vmem:[#allocation2] sm:$0xff] 0.0
        %236 = vst [vmem:[#allocation2 + $0x8] sm:$0xff] 0.0
        %237 = vst [vmem:[#allocation2 + $0x10] sm:$0xff] 0.0
        %238 = vst [vmem:[#allocation2 + $0x18] sm:$0xff] 0.0
        %239 = vst [vmem:[#allocation2 + $0x20] sm:$0xff] 0.0
        %240 = vst [vmem:[#allocation2 + $0x28] sm:$0xff] 0.0
        %241 = vst [vmem:[#allocation2 + $0x30] sm:$0xff] 0.0
        %242 = vst [vmem:[#allocation2 + $0x38] sm:$0xff] 0.0
        %243 = vst [vmem:[#allocation2 + $0x40] sm:$0xff] 0.0
        %244 = vst [vmem:[#allocation2 + $0x48] sm:$0xff] 0.0
        %245 = vst [vmem:[#allocation2 + $0x50] sm:$0xff] 0.0
        %246 = vst [vmem:[#allocation2 + $0x58] sm:$0xff] 0.0
        %247 = vst [vmem:[#allocation2 + $0x60] sm:$0xff] 0.0
        %248 = vst [vmem:[#allocation2 + $0x68] sm:$0xff] 0.0
        %249 = vst [vmem:[#allocation2 + $0x70] sm:$0xff] 0.0
        %250 = vst [vmem:[#allocation2 + $0x78] sm:$0xff] 0.0
        %251 = vst [vmem:[#allocation2 + $0x80] sm:$0xff] 0.0
        %252 = vst [vmem:[#allocation2 + $0x88] sm:$0xff] 0.0
        %253 = vst [vmem:[#allocation2 + $0x90] sm:$0xff] 0.0
        %254 = vst [vmem:[#allocation2 + $0x98] sm:$0xff] 0.0
        %255 = vst [vmem:[#allocation2 + $0xa0] sm:$0xff] 0.0
        %256 = vst [vmem:[#allocation2 + $0xa8] sm:$0xff] 0.0
        %257 = vst [vmem:[#allocation2 + $0xb0] sm:$0xff] 0.0
        %258 = vst [vmem:[#allocation2 + $0xb8] sm:$0xff] 0.0
        %259 = vst [vmem:[#allocation2 + $0xc0] sm:$0xff] 0.0
        %260 = vst [vmem:[#allocation2 + $0xc8] sm:$0xff] 0.0
        %261 = vst [vmem:[#allocation2 + $0xd0] sm:$0xff] 0.0
        %262 = vst [vmem:[#allocation2 + $0xd8] sm:$0xff] 0.0
        %263 = vst [vmem:[#allocation2 + $0xe0] sm:$0xff] 0.0
        %264 = vst [vmem:[#allocation2 + $0xe8] sm:$0xff] 0.0
        %265 = vst [vmem:[#allocation2 + $0xf0] sm:$0xff] 0.0
        %266 = vst [vmem:[#allocation2 + $0xf8] sm:$0xff] 0.0
        %267 = vst [vmem:[#allocation2 + $0x100] sm:$0xff] 0.0
        %268 = vst [vmem:[#allocation2 + $0x108] sm:$0xff] 0.0
        %269 = vst [vmem:[#allocation2 + $0x110] sm:$0xff] 0.0
        %270 = vst [vmem:[#allocation2 + $0x118] sm:$0xff] 0.0
        %271 = vst [vmem:[#allocation2 + $0x120] sm:$0xff] 0.0
        %272 = vst [vmem:[#allocation2 + $0x128] sm:$0xff] 0.0
        %273 = vst [vmem:[#allocation2 + $0x130] sm:$0xff] 0.0
        %274 = vst [vmem:[#allocation2 + $0x138] sm:$0xff] 0.0
        %275 = vst [vmem:[#allocation2 + $0x140] sm:$0xff] 0.0
        %276 = vst [vmem:[#allocation2 + $0x148] sm:$0xff] 0.0
        %277 = vst [vmem:[#allocation2 + $0x150] sm:$0xff] 0.0
        %278 = vst [vmem:[#allocation2 + $0x158] sm:$0xff] 0.0
        %279 = vst [vmem:[#allocation2 + $0x160] sm:$0xff] 0.0
        %280 = vst [vmem:[#allocation2 + $0x168] sm:$0xff] 0.0
        %281 = vst [vmem:[#allocation2 + $0x170] sm:$0xff] 0.0
        %282 = vst [vmem:[#allocation2 + $0x178] sm:$0xff] 0.0
        %283 = vst [vmem:[#allocation2 + $0x180] sm:$0xff] 0.0
        %284 = vst [vmem:[#allocation2 + $0x188] sm:$0xff] 0.0
        %285 = vst [vmem:[#allocation2 + $0x190] sm:$0xff] 0.0
        %286 = vst [vmem:[#allocation2 + $0x198] sm:$0xff] 0.0
        %287 = vst [vmem:[#allocation2 + $0x1a0] sm:$0xff] 0.0
        %288 = vst [vmem:[#allocation2 + $0x1a8] sm:$0xff] 0.0
        %289 = vst [vmem:[#allocation2 + $0x1b0] sm:$0xff] 0.0
        %290 = vst [vmem:[#allocation2 + $0x1b8] sm:$0xff] 0.0
        %291 = vst [vmem:[#allocation2 + $0x1c0] sm:$0xff] 0.0
        %292 = vst [vmem:[#allocation2 + $0x1c8] sm:$0xff] 0.0
        %293 = vst [vmem:[#allocation2 + $0x1d0] sm:$0xff] 0.0
        %294 = vst [vmem:[#allocation2 + $0x1d8] sm:$0xff] 0.0
        %295 = vst [vmem:[#allocation2 + $0x1e0] sm:$0xff] 0.0
        %296 = vst [vmem:[#allocation2 + $0x1e8] sm:$0xff] 0.0
        %297 = vst [vmem:[#allocation2 + $0x1f0] sm:$0xff] 0.0
        %298 = vst [vmem:[#allocation2 + $0x1f8] sm:$0xff] 0.0
      $region32: #{g_forward.6} parent=27 // pred_fallthru
        _
      %v299 = vld [vmem:[#allocation2] sm:$0xff]
      %v300 = vld [vmem:[#allocation2 + $0x8] sm:$0xff]
      %v301 = vld [vmem:[#allocation2 + $0x10] sm:$0xff]
      %v302 = vld [vmem:[#allocation2 + $0x18] sm:$0xff]
      %v303 = vld [vmem:[#allocation2 + $0x20] sm:$0xff]
      %v304 = vld [vmem:[#allocation2 + $0x28] sm:$0xff]
      %v305 = vld [vmem:[#allocation2 + $0x30] sm:$0xff]
      %v306 = vld [vmem:[#allocation2 + $0x38] sm:$0xff]
      %v307 = vld [vmem:[#allocation2 + $0x40] sm:$0xff]
      %v308 = vld [vmem:[#allocation2 + $0x48] sm:$0xff]
      %v309 = vld [vmem:[#allocation2 + $0x50] sm:$0xff]
      %v310 = vld [vmem:[#allocation2 + $0x58] sm:$0xff]
      %v311 = vld [vmem:[#allocation2 + $0x60] sm:$0xff]
      %v312 = vld [vmem:[#allocation2 + $0x68] sm:$0xff]
      %v313 = vld [vmem:[#allocation2 + $0x70] sm:$0xff]
      %v314 = vld [vmem:[#allocation2 + $0x78] sm:$0xff]
      %v315 = vld [vmem:[#allocation2 + $0x80] sm:$0xff]
      %v316 = vld [vmem:[#allocation2 + $0x88] sm:$0xff]
      %v317 = vld [vmem:[#allocation2 + $0x90] sm:$0xff]
      %v318 = vld [vmem:[#allocation2 + $0x98] sm:$0xff]
      %v319 = vld [vmem:[#allocation2 + $0xa0] sm:$0xff]
      %v320 = vld [vmem:[#allocation2 + $0xa8] sm:$0xff]
      %v321 = vld [vmem:[#allocation2 + $0xb0] sm:$0xff]
      %v322 = vld [vmem:[#allocation2 + $0xb8] sm:$0xff]
      %v323 = vld [vmem:[#allocation2 + $0xc0] sm:$0xff]
      %v324 = vld [vmem:[#allocation2 + $0xc8] sm:$0xff]
      %v325 = vld [vmem:[#allocation2 + $0xd0] sm:$0xff]
      %v326 = vld [vmem:[#allocation2 + $0xd8] sm:$0xff]
      %v327 = vld [vmem:[#allocation2 + $0xe0] sm:$0xff]
      %v328 = vld [vmem:[#allocation2 + $0xe8] sm:$0xff]
      %v329 = vld [vmem:[#allocation2 + $0xf0] sm:$0xff]
      %v330 = vld [vmem:[#allocation2 + $0xf8] sm:$0xff]
      %v331 = vld [vmem:[#allocation2 + $0x100] sm:$0xff]
      %v332 = vld [vmem:[#allocation2 + $0x108] sm:$0xff]
      %v333 = vld [vmem:[#allocation2 + $0x110] sm:$0xff]
      %v334 = vld [vmem:[#allocation2 + $0x118] sm:$0xff]
      %v335 = vld [vmem:[#allocation2 + $0x120] sm:$0xff]
      %v336 = vld [vmem:[#allocation2 + $0x128] sm:$0xff]
      %v337 = vld [vmem:[#allocation2 + $0x130] sm:$0xff]
      %v338 = vld [vmem:[#allocation2 + $0x138] sm:$0xff]
      %v339 = vld [vmem:[#allocation2 + $0x140] sm:$0xff]
      %v340 = vld [vmem:[#allocation2 + $0x148] sm:$0xff]
      %v341 = vld [vmem:[#allocation2 + $0x150] sm:$0xff]
      %v342 = vld [vmem:[#allocation2 + $0x158] sm:$0xff]
      %v343 = vld [vmem:[#allocation2 + $0x160] sm:$0xff]
      %v344 = vld [vmem:[#allocation2 + $0x168] sm:$0xff]
      %v345 = vld [vmem:[#allocation2 + $0x170] sm:$0xff]
      %v346 = vld [vmem:[#allocation2 + $0x178] sm:$0xff]
      %v347 = vld [vmem:[#allocation2 + $0x180] sm:$0xff]
      %v348 = vld [vmem:[#allocation2 + $0x188] sm:$0xff]
      %v349 = vld [vmem:[#allocation2 + $0x190] sm:$0xff]
      %v350 = vld [vmem:[#allocation2 + $0x198] sm:$0xff]
      %v351 = vld [vmem:[#allocation2 + $0x1a0] sm:$0xff]
      %v352 = vld [vmem:[#allocation2 + $0x1a8] sm:$0xff]
      %v353 = vld [vmem:[#allocation2 + $0x1b0] sm:$0xff]
      %v354 = vld [vmem:[#allocation2 + $0x1b8] sm:$0xff]
      %v355 = vld [vmem:[#allocation2 + $0x1c0] sm:$0xff]
      %v356 = vld [vmem:[#allocation2 + $0x1c8] sm:$0xff]
      %v357 = vld [vmem:[#allocation2 + $0x1d0] sm:$0xff]
      %v358 = vld [vmem:[#allocation2 + $0x1d8] sm:$0xff]
      %v359 = vld [vmem:[#allocation2 + $0x1e0] sm:$0xff]
      %v360 = vld [vmem:[#allocation2 + $0x1e8] sm:$0xff]
      %v361 = vld [vmem:[#allocation2 + $0x1f0] sm:$0xff]
      %v362 = vld [vmem:[#allocation2 + $0x1f8] sm:$0xff]
      %v363 = vld [vmem:[%s212] sm:$0xf]
      %v364 = vld [vmem:[%s212 + $0x4] sm:$0xf]
      %v365 = vld [vmem:[%s212 + $0x8] sm:$0xf]
      %v366 = vld [vmem:[%s212 + $0xc] sm:$0xf]
      %v367 = vld [vmem:[%s212 + $0x10] sm:$0xf]
      %v368 = vld [vmem:[%s212 + $0x14] sm:$0xf]
      %v369 = vld [vmem:[%s212 + $0x18] sm:$0xf]
      %v370 = vld [vmem:[%s212 + $0x1c] sm:$0xf]
      %v371 = vld [vmem:[%s212 + $0x20] sm:$0xf]
      %v372 = vld [vmem:[%s212 + $0x24] sm:$0xf]
      %v373 = vld [vmem:[%s212 + $0x28] sm:$0xf]
      %v374 = vld [vmem:[%s212 + $0x2c] sm:$0xf]
      %v375 = vld [vmem:[%s212 + $0x30] sm:$0xf]
      %v376 = vld [vmem:[%s212 + $0x34] sm:$0xf]
      %v377 = vld [vmem:[%s212 + $0x38] sm:$0xf]
      %v378 = vld [vmem:[%s212 + $0x3c] sm:$0xf]
      %v379 = vld [vmem:[%s212 + $0x40] sm:$0xf]
      %v380 = vld [vmem:[%s212 + $0x44] sm:$0xf]
      %v381 = vld [vmem:[%s212 + $0x48] sm:$0xf]
      %v382 = vld [vmem:[%s212 + $0x4c] sm:$0xf]
      %v383 = vld [vmem:[%s212 + $0x50] sm:$0xf]
      %v384 = vld [vmem:[%s212 + $0x54] sm:$0xf]
      %v385 = vld [vmem:[%s212 + $0x58] sm:$0xf]
      %v386 = vld [vmem:[%s212 + $0x5c] sm:$0xf]
      %v387 = vld [vmem:[%s212 + $0x60] sm:$0xf]
      %v388 = vld [vmem:[%s212 + $0x64] sm:$0xf]
      %v389 = vld [vmem:[%s212 + $0x68] sm:$0xf]
      %v390 = vld [vmem:[%s212 + $0x6c] sm:$0xf]
      %v391 = vld [vmem:[%s212 + $0x70] sm:$0xf]
      %v392 = vld [vmem:[%s212 + $0x74] sm:$0xf]
      %v393 = vld [vmem:[%s212 + $0x78] sm:$0xf]
      %v394 = vld [vmem:[%s212 + $0x7c] sm:$0xf]
      %v395 = vld [vmem:[%s212 + $0x80] sm:$0xf]
      %v396 = vld [vmem:[%s212 + $0x84] sm:$0xf]
      %v397 = vld [vmem:[%s212 + $0x88] sm:$0xf]
      %v398 = vld [vmem:[%s212 + $0x8c] sm:$0xf]
      %v399 = vld [vmem:[%s212 + $0x90] sm:$0xf]
      %v400 = vld [vmem:[%s212 + $0x94] sm:$0xf]
      %v401 = vld [vmem:[%s212 + $0x98] sm:$0xf]
      %v402 = vld [vmem:[%s212 + $0x9c] sm:$0xf]
      %v403 = vld [vmem:[%s212 + $0xa0] sm:$0xf]
      %v404 = vld [vmem:[%s212 + $0xa4] sm:$0xf]
      %v405 = vld [vmem:[%s212 + $0xa8] sm:$0xf]
      %v406 = vld [vmem:[%s212 + $0xac] sm:$0xf]
      %v407 = vld [vmem:[%s212 + $0xb0] sm:$0xf]
      %v408 = vld [vmem:[%s212 + $0xb4] sm:$0xf]
      %v409 = vld [vmem:[%s212 + $0xb8] sm:$0xf]
      %v410 = vld [vmem:[%s212 + $0xbc] sm:$0xf]
      %v411 = vld [vmem:[%s212 + $0xc0] sm:$0xf]
      %v412 = vld [vmem:[%s212 + $0xc4] sm:$0xf]
      %v413 = vld [vmem:[%s212 + $0xc8] sm:$0xf]
      %v414 = vld [vmem:[%s212 + $0xcc] sm:$0xf]
      %v415 = vld [vmem:[%s212 + $0xd0] sm:$0xf]
      %v416 = vld [vmem:[%s212 + $0xd4] sm:$0xf]
      %v417 = vld [vmem:[%s212 + $0xd8] sm:$0xf]
      %v418 = vld [vmem:[%s212 + $0xdc] sm:$0xf]
      %v419 = vld [vmem:[%s212 + $0xe0] sm:$0xf]
      %v420 = vld [vmem:[%s212 + $0xe4] sm:$0xf]
      %v421 = vld [vmem:[%s212 + $0xe8] sm:$0xf]
      %v422 = vld [vmem:[%s212 + $0xec] sm:$0xf]
      %v423 = vld [vmem:[%s212 + $0xf0] sm:$0xf]
      %v424 = vld [vmem:[%s212 + $0xf4] sm:$0xf]
      %v425 = vld [vmem:[%s212 + $0xf8] sm:$0xf]
      %v426 = vld [vmem:[%s212 + $0xfc] sm:$0xf]
      %v427 = vld [vmem:[%s218] sm:$0xf]
      %v428 = vld [vmem:[%s218 + $0x4] sm:$0xf]
      %v429 = vld [vmem:[%s218 + $0x8] sm:$0xf]
      %v430 = vld [vmem:[%s218 + $0xc] sm:$0xf]
      %v431 = vld [vmem:[%s218 + $0x10] sm:$0xf]
      %v432 = vld [vmem:[%s218 + $0x14] sm:$0xf]
      %v433 = vld [vmem:[%s218 + $0x18] sm:$0xf]
      %v434 = vld [vmem:[%s218 + $0x1c] sm:$0xf]
      %v435 = vld [vmem:[%s218 + $0x20] sm:$0xf]
      %v436 = vld [vmem:[%s218 + $0x24] sm:$0xf]
      %v437 = vld [vmem:[%s218 + $0x28] sm:$0xf]
      %v438 = vld [vmem:[%s218 + $0x2c] sm:$0xf]
      %v439 = vld [vmem:[%s218 + $0x30] sm:$0xf]
      %v440 = vld [vmem:[%s218 + $0x34] sm:$0xf]
      %v441 = vld [vmem:[%s218 + $0x38] sm:$0xf]
      %v442 = vld [vmem:[%s218 + $0x3c] sm:$0xf]
      %v507 = vunpack.c.l.b16 %v363
      %v508 = vunpack.c.l.b16 %v364
      %v509 = vunpack.c.l.b16 %v365
      %v510 = vunpack.c.l.b16 %v366
      %v511 = vunpack.c.l.b16 %v367
      %v512 = vunpack.c.l.b16 %v368
      %v513 = vunpack.c.l.b16 %v369
      %v514 = vunpack.c.l.b16 %v370
      %v515 = vunpack.c.l.b16 %v371
      %v516 = vunpack.c.l.b16 %v372
      %v517 = vunpack.c.l.b16 %v373
      %v518 = vunpack.c.l.b16 %v374
      %v519 = vunpack.c.l.b16 %v375
      %v520 = vunpack.c.l.b16 %v376
      %v521 = vunpack.c.l.b16 %v377
      %v522 = vunpack.c.l.b16 %v378
      %v523 = vunpack.c.l.b16 %v379
      %v524 = vunpack.c.l.b16 %v380
      %v525 = vunpack.c.l.b16 %v381
      %v526 = vunpack.c.l.b16 %v382
      %v527 = vunpack.c.l.b16 %v383
      %v528 = vunpack.c.l.b16 %v384
      %v529 = vunpack.c.l.b16 %v385
      %v530 = vunpack.c.l.b16 %v386
      %v531 = vunpack.c.l.b16 %v387
      %v532 = vunpack.c.l.b16 %v388
      %v533 = vunpack.c.l.b16 %v389
      %v534 = vunpack.c.l.b16 %v390
      %v535 = vunpack.c.l.b16 %v391
      %v536 = vunpack.c.l.b16 %v392
      %v537 = vunpack.c.l.b16 %v393
      %v538 = vunpack.c.l.b16 %v394
      %v539 = vunpack.c.l.b16 %v395
      %v540 = vunpack.c.l.b16 %v396
      %v541 = vunpack.c.l.b16 %v397
      %v542 = vunpack.c.l.b16 %v398
      %v543 = vunpack.c.l.b16 %v399
      %v544 = vunpack.c.l.b16 %v400
      %v545 = vunpack.c.l.b16 %v401
      %v546 = vunpack.c.l.b16 %v402
      %v547 = vunpack.c.l.b16 %v403
      %v548 = vunpack.c.l.b16 %v404
      %v549 = vunpack.c.l.b16 %v405
      %v550 = vunpack.c.l.b16 %v406
      %v551 = vunpack.c.l.b16 %v407
      %v552 = vunpack.c.l.b16 %v408
      %v553 = vunpack.c.l.b16 %v409
      %v554 = vunpack.c.l.b16 %v410
      %v555 = vunpack.c.l.b16 %v411
      %v556 = vunpack.c.l.b16 %v412
      %v557 = vunpack.c.l.b16 %v413
      %v558 = vunpack.c.l.b16 %v414
      %v559 = vunpack.c.l.b16 %v415
      %v560 = vunpack.c.l.b16 %v416
      %v561 = vunpack.c.l.b16 %v417
      %v562 = vunpack.c.l.b16 %v418
      %v563 = vunpack.c.l.b16 %v419
      %v564 = vunpack.c.l.b16 %v420
      %v565 = vunpack.c.l.b16 %v421
      %v566 = vunpack.c.l.b16 %v422
      %v567 = vunpack.c.l.b16 %v423
      %v568 = vunpack.c.l.b16 %v424
      %v569 = vunpack.c.l.b16 %v425
      %v570 = vunpack.c.l.b16 %v426
      %v571 = vpack.c.b16 %v508, %v507
      %v572 = vpack.c.b16 %v510, %v509
      %v573 = vpack.c.b16 %v512, %v511
      %v574 = vpack.c.b16 %v514, %v513
      %v575 = vpack.c.b16 %v516, %v515
      %v576 = vpack.c.b16 %v518, %v517
      %v577 = vpack.c.b16 %v520, %v519
      %v578 = vpack.c.b16 %v522, %v521
      %v579 = vpack.c.b16 %v524, %v523
      %v580 = vpack.c.b16 %v526, %v525
      %v581 = vpack.c.b16 %v528, %v527
      %v582 = vpack.c.b16 %v530, %v529
      %v583 = vpack.c.b16 %v532, %v531
      %v584 = vpack.c.b16 %v534, %v533
      %v585 = vpack.c.b16 %v536, %v535
      %v586 = vpack.c.b16 %v538, %v537
      %v587 = vpack.c.b16 %v540, %v539
      %v588 = vpack.c.b16 %v542, %v541
      %v589 = vpack.c.b16 %v544, %v543
      %v590 = vpack.c.b16 %v546, %v545
      %v591 = vpack.c.b16 %v548, %v547
      %v592 = vpack.c.b16 %v550, %v549
      %v593 = vpack.c.b16 %v552, %v551
      %v594 = vpack.c.b16 %v554, %v553
      %v595 = vpack.c.b16 %v556, %v555
      %v596 = vpack.c.b16 %v558, %v557
      %v597 = vpack.c.b16 %v560, %v559
      %v598 = vpack.c.b16 %v562, %v561
      %v599 = vpack.c.b16 %v564, %v563
      %v600 = vpack.c.b16 %v566, %v565
      %v601 = vpack.c.b16 %v568, %v567
      %v602 = vpack.c.b16 %v570, %v569
      %v651 = vunpack.c.l.b16 %v427
      %v652 = vunpack.c.l.b16 %v428
      %v653 = vunpack.c.l.b16 %v429
      %v654 = vunpack.c.l.b16 %v430
      %v655 = vunpack.c.l.b16 %v431
      %v656 = vunpack.c.l.b16 %v432
      %v657 = vunpack.c.l.b16 %v433
      %v658 = vunpack.c.l.b16 %v434
      %v659 = vunpack.c.l.b16 %v435
      %v660 = vunpack.c.l.b16 %v436
      %v661 = vunpack.c.l.b16 %v437
      %v662 = vunpack.c.l.b16 %v438
      %v663 = vunpack.c.l.b16 %v439
      %v664 = vunpack.c.l.b16 %v440
      %v665 = vunpack.c.l.b16 %v441
      %v666 = vunpack.c.l.b16 %v442
      %v667 = vpack.c.b16 %v652, %v651
      %v668 = vpack.c.b16 %v654, %v653
      %v669 = vpack.c.b16 %v656, %v655
      %v670 = vpack.c.b16 %v658, %v657
      %v671 = vpack.c.b16 %v660, %v659
      %v672 = vpack.c.b16 %v662, %v661
      %v673 = vpack.c.b16 %v664, %v663
      %v674 = vpack.c.b16 %v666, %v665
      %683 = vmatprep.subr.bf16.mxu0 0
      %684 = vmatpush1.bf16.msra.mxu0 %v674
      %685 = vmatprep.subr.bf16.mxu0 0
      %686 = vmatpush1.bf16.msra.mxu0 %v673
      %687 = vmatprep.subr.bf16.mxu0 0
      %688 = vmatpush1.bf16.msra.mxu0 %v672
      %689 = vmatprep.subr.bf16.mxu0 0
      %690 = vmatpush1.bf16.msra.mxu0 %v671
      %691 = vmatprep.subr.bf16.mxu0 0
      %692 = vmatpush1.bf16.msra.mxu0 %v670
      %693 = vmatprep.subr.bf16.mxu0 0
      %694 = vmatpush1.bf16.msra.mxu0 %v669
      %695 = vmatprep.subr.bf16.mxu0 0
      %696 = vmatpush1.bf16.msra.mxu0 %v668
      %697 = vmatprep.subr.bf16.mxu0 0
      %698 = vmatpush1.bf16.msra.mxu0 %v667
      %699 = vmatprep.subr.bf16.mxu0 0
      %700 = vmatpush2.bf16.msra.mxu0 0
      %701 = vmatprep.subr.bf16.mxu0 0
      %702 = vmatpush2.bf16.msra.mxu0 0
      %703 = vmatprep.subr.bf16.mxu0 0
      %704 = vmatpush2.bf16.msra.mxu0 0
      %705 = vmatprep.subr.bf16.mxu0 0
      %706 = vmatpush2.bf16.msra.mxu0 0
      %707 = vmatprep.subr.bf16.mxu0 0
      %708 = vmatpush2.bf16.msra.mxu0 0
      %709 = vmatprep.subr.bf16.mxu0 0
      %710 = vmatpush2.bf16.msra.mxu0 0
      %711 = vmatprep.subr.bf16.mxu0 0
      %712 = vmatpush2.bf16.msra.mxu0 0
      %713 = vmatprep.subr.bf16.mxu0 0
      %714 = vmatpush2.bf16.msra.mxu0 0
      %715 = vmatprep.mubr.bf16.mxu0 0
      %716 = vmatmul.mubr.bf16.gmra.mxu0 %v571
      %v717 = vpop.f32.mrf.mxu0
      %v718 = vadd.f32 0.0, %v717
      %v719 = vpop.f32.mrf.mxu0
      %v720 = vpop.f32.mrf.mxu0
      %v721 = vadd.f32 0.0, %v720
      %v722 = vpop.f32.mrf.mxu0
      %723 = vmatprep.mubr.bf16.mxu0 0
      %724 = vmatmul.mubr.bf16.gmra.mxu0 %v572
      %v725 = vpop.f32.mrf.mxu0
      %v726 = vadd.f32 0.0, %v725
      %v727 = vpop.f32.mrf.mxu0
      %v728 = vpop.f32.mrf.mxu0
      %v729 = vadd.f32 0.0, %v728
      %v730 = vpop.f32.mrf.mxu0
      %731 = vmatprep.mubr.bf16.mxu0 0
      %732 = vmatmul.mubr.bf16.gmra.mxu0 %v573
      %v733 = vpop.f32.mrf.mxu0
      %v734 = vadd.f32 0.0, %v733
      %v735 = vpop.f32.mrf.mxu0
      %v736 = vpop.f32.mrf.mxu0
      %v737 = vadd.f32 0.0, %v736
      %v738 = vpop.f32.mrf.mxu0
      %739 = vmatprep.mubr.bf16.mxu0 0
      %740 = vmatmul.mubr.bf16.gmra.mxu0 %v574
      %v741 = vpop.f32.mrf.mxu0
      %v742 = vadd.f32 0.0, %v741
      %v743 = vpop.f32.mrf.mxu0
      %v744 = vpop.f32.mrf.mxu0
      %v745 = vadd.f32 0.0, %v744
      %v746 = vpop.f32.mrf.mxu0
      %747 = vmatprep.mubr.bf16.mxu0 0
      %748 = vmatmul.mubr.bf16.gmra.mxu0 %v575
      %v749 = vpop.f32.mrf.mxu0
      %v750 = vadd.f32 0.0, %v749
      %v751 = vpop.f32.mrf.mxu0
      %v752 = vpop.f32.mrf.mxu0
      %v753 = vadd.f32 0.0, %v752
      %v754 = vpop.f32.mrf.mxu0
      %755 = vmatprep.mubr.bf16.mxu0 0
      %756 = vmatmul.mubr.bf16.gmra.mxu0 %v576
      %v757 = vpop.f32.mrf.mxu0
      %v758 = vadd.f32 0.0, %v757
      %v759 = vpop.f32.mrf.mxu0
      %v760 = vpop.f32.mrf.mxu0
      %v761 = vadd.f32 0.0, %v760
      %v762 = vpop.f32.mrf.mxu0
      %763 = vmatprep.mubr.bf16.mxu0 0
      %764 = vmatmul.mubr.bf16.gmra.mxu0 %v577
      %v765 = vpop.f32.mrf.mxu0
      %v766 = vadd.f32 0.0, %v765
      %v767 = vpop.f32.mrf.mxu0
      %v768 = vpop.f32.mrf.mxu0
      %v769 = vadd.f32 0.0, %v768
      %v770 = vpop.f32.mrf.mxu0
      %771 = vmatprep.mubr.bf16.mxu0 0
      %772 = vmatmul.mubr.bf16.gmra.mxu0 %v578
      %v773 = vpop.f32.mrf.mxu0
      %v774 = vadd.f32 0.0, %v773
      %v775 = vpop.f32.mrf.mxu0
      %v776 = vpop.f32.mrf.mxu0
      %v777 = vadd.f32 0.0, %v776
      %v778 = vpop.f32.mrf.mxu0
      %779 = vmatprep.mubr.bf16.mxu0 0
      %780 = vmatmul.mubr.bf16.gmra.mxu0 %v579
      %v781 = vpop.f32.mrf.mxu0
      %v782 = vadd.f32 0.0, %v781
      %v783 = vpop.f32.mrf.mxu0
      %v784 = vpop.f32.mrf.mxu0
      %v785 = vadd.f32 0.0, %v784
      %v786 = vpop.f32.mrf.mxu0
      %787 = vmatprep.mubr.bf16.mxu0 0
      %788 = vmatmul.mubr.bf16.gmra.mxu0 %v580
      %v789 = vpop.f32.mrf.mxu0
      %v790 = vadd.f32 0.0, %v789
      %v791 = vpop.f32.mrf.mxu0
      %v792 = vpop.f32.mrf.mxu0
      %v793 = vadd.f32 0.0, %v792
      %v794 = vpop.f32.mrf.mxu0
      %795 = vmatprep.mubr.bf16.mxu0 0
      %796 = vmatmul.mubr.bf16.gmra.mxu0 %v581
      %v797 = vpop.f32.mrf.mxu0
      %v798 = vadd.f32 0.0, %v797
      %v799 = vpop.f32.mrf.mxu0
      %v800 = vpop.f32.mrf.mxu0
      %v801 = vadd.f32 0.0, %v800
      %v802 = vpop.f32.mrf.mxu0
      %803 = vmatprep.mubr.bf16.mxu0 0
      %804 = vmatmul.mubr.bf16.gmra.mxu0 %v582
      %v805 = vpop.f32.mrf.mxu0
      %v806 = vadd.f32 0.0, %v805
      %v807 = vpop.f32.mrf.mxu0
      %v808 = vpop.f32.mrf.mxu0
      %v809 = vadd.f32 0.0, %v808
      %v810 = vpop.f32.mrf.mxu0
      %811 = vmatprep.mubr.bf16.mxu0 0
      %812 = vmatmul.mubr.bf16.gmra.mxu0 %v583
      %v813 = vpop.f32.mrf.mxu0
      %v814 = vadd.f32 0.0, %v813
      %v815 = vpop.f32.mrf.mxu0
      %v816 = vpop.f32.mrf.mxu0
      %v817 = vadd.f32 0.0, %v816
      %v818 = vpop.f32.mrf.mxu0
      %819 = vmatprep.mubr.bf16.mxu0 0
      %820 = vmatmul.mubr.bf16.gmra.mxu0 %v584
      %v821 = vpop.f32.mrf.mxu0
      %v822 = vadd.f32 0.0, %v821
      %v823 = vpop.f32.mrf.mxu0
      %v824 = vpop.f32.mrf.mxu0
      %v825 = vadd.f32 0.0, %v824
      %v826 = vpop.f32.mrf.mxu0
      %827 = vmatprep.mubr.bf16.mxu0 0
      %828 = vmatmul.mubr.bf16.gmra.mxu0 %v585
      %v829 = vpop.f32.mrf.mxu0
      %v830 = vadd.f32 0.0, %v829
      %v831 = vpop.f32.mrf.mxu0
      %v832 = vpop.f32.mrf.mxu0
      %v833 = vadd.f32 0.0, %v832
      %v834 = vpop.f32.mrf.mxu0
      %835 = vmatprep.mubr.bf16.mxu0 0
      %836 = vmatmul.mubr.bf16.gmra.mxu0 %v586
      %v837 = vpop.f32.mrf.mxu0
      %v838 = vadd.f32 0.0, %v837
      %v839 = vpop.f32.mrf.mxu0
      %v840 = vpop.f32.mrf.mxu0
      %v841 = vadd.f32 0.0, %v840
      %v842 = vpop.f32.mrf.mxu0
      %843 = vmatprep.mubr.bf16.mxu0 0
      %844 = vmatmul.mubr.bf16.gmra.mxu0 %v587
      %v845 = vpop.f32.mrf.mxu0
      %v846 = vadd.f32 0.0, %v845
      %v847 = vpop.f32.mrf.mxu0
      %v848 = vpop.f32.mrf.mxu0
      %v849 = vadd.f32 0.0, %v848
      %v850 = vpop.f32.mrf.mxu0
      %851 = vmatprep.mubr.bf16.mxu0 0
      %852 = vmatmul.mubr.bf16.gmra.mxu0 %v588
      %v853 = vpop.f32.mrf.mxu0
      %v854 = vadd.f32 0.0, %v853
      %v855 = vpop.f32.mrf.mxu0
      %v856 = vpop.f32.mrf.mxu0
      %v857 = vadd.f32 0.0, %v856
      %v858 = vpop.f32.mrf.mxu0
      %859 = vmatprep.mubr.bf16.mxu0 0
      %860 = vmatmul.mubr.bf16.gmra.mxu0 %v589
      %v861 = vpop.f32.mrf.mxu0
      %v862 = vadd.f32 0.0, %v861
      %v863 = vpop.f32.mrf.mxu0
      %v864 = vpop.f32.mrf.mxu0
      %v865 = vadd.f32 0.0, %v864
      %v866 = vpop.f32.mrf.mxu0
      %867 = vmatprep.mubr.bf16.mxu0 0
      %868 = vmatmul.mubr.bf16.gmra.mxu0 %v590
      %v869 = vpop.f32.mrf.mxu0
      %v870 = vadd.f32 0.0, %v869
      %v871 = vpop.f32.mrf.mxu0
      %v872 = vpop.f32.mrf.mxu0
      %v873 = vadd.f32 0.0, %v872
      %v874 = vpop.f32.mrf.mxu0
      %875 = vmatprep.mubr.bf16.mxu0 0
      %876 = vmatmul.mubr.bf16.gmra.mxu0 %v591
      %v877 = vpop.f32.mrf.mxu0
      %v878 = vadd.f32 0.0, %v877
      %v879 = vpop.f32.mrf.mxu0
      %v880 = vpop.f32.mrf.mxu0
      %v881 = vadd.f32 0.0, %v880
      %v882 = vpop.f32.mrf.mxu0
      %883 = vmatprep.mubr.bf16.mxu0 0
      %884 = vmatmul.mubr.bf16.gmra.mxu0 %v592
      %v885 = vpop.f32.mrf.mxu0
      %v886 = vadd.f32 0.0, %v885
      %v887 = vpop.f32.mrf.mxu0
      %v888 = vpop.f32.mrf.mxu0
      %v889 = vadd.f32 0.0, %v888
      %v890 = vpop.f32.mrf.mxu0
      %891 = vmatprep.mubr.bf16.mxu0 0
      %892 = vmatmul.mubr.bf16.gmra.mxu0 %v593
      %v893 = vpop.f32.mrf.mxu0
      %v894 = vadd.f32 0.0, %v893
      %v895 = vpop.f32.mrf.mxu0
      %v896 = vpop.f32.mrf.mxu0
      %v897 = vadd.f32 0.0, %v896
      %v898 = vpop.f32.mrf.mxu0
      %899 = vmatprep.mubr.bf16.mxu0 0
      %900 = vmatmul.mubr.bf16.gmra.mxu0 %v594
      %v901 = vpop.f32.mrf.mxu0
      %v902 = vadd.f32 0.0, %v901
      %v903 = vpop.f32.mrf.mxu0
      %v904 = vpop.f32.mrf.mxu0
      %v905 = vadd.f32 0.0, %v904
      %v906 = vpop.f32.mrf.mxu0
      %907 = vmatprep.mubr.bf16.mxu0 0
      %908 = vmatmul.mubr.bf16.gmra.mxu0 %v595
      %v909 = vpop.f32.mrf.mxu0
      %v910 = vadd.f32 0.0, %v909
      %v911 = vpop.f32.mrf.mxu0
      %v912 = vpop.f32.mrf.mxu0
      %v913 = vadd.f32 0.0, %v912
      %v914 = vpop.f32.mrf.mxu0
      %915 = vmatprep.mubr.bf16.mxu0 0
      %916 = vmatmul.mubr.bf16.gmra.mxu0 %v596
      %v917 = vpop.f32.mrf.mxu0
      %v918 = vadd.f32 0.0, %v917
      %v919 = vpop.f32.mrf.mxu0
      %v920 = vpop.f32.mrf.mxu0
      %v921 = vadd.f32 0.0, %v920
      %v922 = vpop.f32.mrf.mxu0
      %923 = vmatprep.mubr.bf16.mxu0 0
      %924 = vmatmul.mubr.bf16.gmra.mxu0 %v597
      %v925 = vpop.f32.mrf.mxu0
      %v926 = vadd.f32 0.0, %v925
      %v927 = vpop.f32.mrf.mxu0
      %v928 = vpop.f32.mrf.mxu0
      %v929 = vadd.f32 0.0, %v928
      %v930 = vpop.f32.mrf.mxu0
      %931 = vmatprep.mubr.bf16.mxu0 0
      %932 = vmatmul.mubr.bf16.gmra.mxu0 %v598
      %v933 = vpop.f32.mrf.mxu0
      %v934 = vadd.f32 0.0, %v933
      %v935 = vpop.f32.mrf.mxu0
      %v936 = vpop.f32.mrf.mxu0
      %v937 = vadd.f32 0.0, %v936
      %v938 = vpop.f32.mrf.mxu0
      %939 = vmatprep.mubr.bf16.mxu0 0
      %940 = vmatmul.mubr.bf16.gmra.mxu0 %v599
      %v941 = vpop.f32.mrf.mxu0
      %v942 = vadd.f32 0.0, %v941
      %v943 = vpop.f32.mrf.mxu0
      %v944 = vpop.f32.mrf.mxu0
      %v945 = vadd.f32 0.0, %v944
      %v946 = vpop.f32.mrf.mxu0
      %947 = vmatprep.mubr.bf16.mxu0 0
      %948 = vmatmul.mubr.bf16.gmra.mxu0 %v600
      %v949 = vpop.f32.mrf.mxu0
      %v950 = vadd.f32 0.0, %v949
      %v951 = vpop.f32.mrf.mxu0
      %v952 = vpop.f32.mrf.mxu0
      %v953 = vadd.f32 0.0, %v952
      %v954 = vpop.f32.mrf.mxu0
      %955 = vmatprep.mubr.bf16.mxu0 0
      %956 = vmatmul.mubr.bf16.gmra.mxu0 %v601
      %v957 = vpop.f32.mrf.mxu0
      %v958 = vadd.f32 0.0, %v957
      %v959 = vpop.f32.mrf.mxu0
      %v960 = vpop.f32.mrf.mxu0
      %v961 = vadd.f32 0.0, %v960
      %v962 = vpop.f32.mrf.mxu0
      %963 = vmatprep.mubr.bf16.mxu0 0
      %964 = vmatmul.mubr.bf16.gmra.mxu0 %v602
      %v965 = vpop.f32.mrf.mxu0
      %v966 = vadd.f32 0.0, %v965
      %v967 = vpop.f32.mrf.mxu0
      %v968 = vpop.f32.mrf.mxu0
      %v969 = vadd.f32 0.0, %v968
      %v970 = vpop.f32.mrf.mxu0
      %971 = vdwg.mxu0
      %v972 = vadd.f32 %v299, %v718
      %v973 = vadd.f32 %v300, %v721
      %v974 = vadd.f32 %v301, %v726
      %v975 = vadd.f32 %v302, %v729
      %v976 = vadd.f32 %v303, %v734
      %v977 = vadd.f32 %v304, %v737
      %v978 = vadd.f32 %v305, %v742
      %v979 = vadd.f32 %v306, %v745
      %v980 = vadd.f32 %v307, %v750
      %v981 = vadd.f32 %v308, %v753
      %v982 = vadd.f32 %v309, %v758
      %v983 = vadd.f32 %v310, %v761
      %v984 = vadd.f32 %v311, %v766
      %v985 = vadd.f32 %v312, %v769
      %v986 = vadd.f32 %v313, %v774
      %v987 = vadd.f32 %v314, %v777
      %v988 = vadd.f32 %v315, %v782
      %v989 = vadd.f32 %v316, %v785
      %v990 = vadd.f32 %v317, %v790
      %v991 = vadd.f32 %v318, %v793
      %v992 = vadd.f32 %v319, %v798
      %v993 = vadd.f32 %v320, %v801
      %v994 = vadd.f32 %v321, %v806
      %v995 = vadd.f32 %v322, %v809
      %v996 = vadd.f32 %v323, %v814
      %v997 = vadd.f32 %v324, %v817
      %v998 = vadd.f32 %v325, %v822
      %v999 = vadd.f32 %v326, %v825
      %v1000 = vadd.f32 %v327, %v830
      %v1001 = vadd.f32 %v328, %v833
      %v1002 = vadd.f32 %v329, %v838
      %v1003 = vadd.f32 %v330, %v841
      %v1004 = vadd.f32 %v331, %v846
      %v1005 = vadd.f32 %v332, %v849
      %v1006 = vadd.f32 %v333, %v854
      %v1007 = vadd.f32 %v334, %v857
      %v1008 = vadd.f32 %v335, %v862
      %v1009 = vadd.f32 %v336, %v865
      %v1010 = vadd.f32 %v337, %v870
      %v1011 = vadd.f32 %v338, %v873
      %v1012 = vadd.f32 %v339, %v878
      %v1013 = vadd.f32 %v340, %v881
      %v1014 = vadd.f32 %v341, %v886
      %v1015 = vadd.f32 %v342, %v889
      %v1016 = vadd.f32 %v343, %v894
      %v1017 = vadd.f32 %v344, %v897
      %v1018 = vadd.f32 %v345, %v902
      %v1019 = vadd.f32 %v346, %v905
      %v1020 = vadd.f32 %v347, %v910
      %v1021 = vadd.f32 %v348, %v913
      %v1022 = vadd.f32 %v349, %v918
      %v1023 = vadd.f32 %v350, %v921
      %v1024 = vadd.f32 %v351, %v926
      %v1025 = vadd.f32 %v352, %v929
      %v1026 = vadd.f32 %v353, %v934
      %v1027 = vadd.f32 %v354, %v937
      %v1028 = vadd.f32 %v355, %v942
      %v1029 = vadd.f32 %v356, %v945
      %v1030 = vadd.f32 %v357, %v950
      %v1031 = vadd.f32 %v358, %v953
      %v1032 = vadd.f32 %v359, %v958
      %v1033 = vadd.f32 %v360, %v961
      %v1034 = vadd.f32 %v361, %v966
      %v1035 = vadd.f32 %v362, %v969
      %1036 = vst [vmem:[#allocation2] sm:$0xff] %v972
      %1037 = vst [vmem:[#allocation2 + $0x8] sm:$0xff] %v973
      %1038 = vst [vmem:[#allocation2 + $0x10] sm:$0xff] %v974
      %1039 = vst [vmem:[#allocation2 + $0x18] sm:$0xff] %v975
      %1040 = vst [vmem:[#allocation2 + $0x20] sm:$0xff] %v976
      %1041 = vst [vmem:[#allocation2 + $0x28] sm:$0xff] %v977
      %1042 = vst [vmem:[#allocation2 + $0x30] sm:$0xff] %v978
      %1043 = vst [vmem:[#allocation2 + $0x38] sm:$0xff] %v979
      %1044 = vst [vmem:[#allocation2 + $0x40] sm:$0xff] %v980
      %1045 = vst [vmem:[#allocation2 + $0x48] sm:$0xff] %v981
      %1046 = vst [vmem:[#allocation2 + $0x50] sm:$0xff] %v982
      %1047 = vst [vmem:[#allocation2 + $0x58] sm:$0xff] %v983
      %1048 = vst [vmem:[#allocation2 + $0x60] sm:$0xff] %v984
      %1049 = vst [vmem:[#allocation2 + $0x68] sm:$0xff] %v985
      %1050 = vst [vmem:[#allocation2 + $0x70] sm:$0xff] %v986
      %1051 = vst [vmem:[#allocation2 + $0x78] sm:$0xff] %v987
      %1052 = vst [vmem:[#allocation2 + $0x80] sm:$0xff] %v988
      %1053 = vst [vmem:[#allocation2 + $0x88] sm:$0xff] %v989
      %1054 = vst [vmem:[#allocation2 + $0x90] sm:$0xff] %v990
      %1055 = vst [vmem:[#allocation2 + $0x98] sm:$0xff] %v991
      %1056 = vst [vmem:[#allocation2 + $0xa0] sm:$0xff] %v992
      %1057 = vst [vmem:[#allocation2 + $0xa8] sm:$0xff] %v993
      %1058 = vst [vmem:[#allocation2 + $0xb0] sm:$0xff] %v994
      %1059 = vst [vmem:[#allocation2 + $0xb8] sm:$0xff] %v995
      %1060 = vst [vmem:[#allocation2 + $0xc0] sm:$0xff] %v996
      %1061 = vst [vmem:[#allocation2 + $0xc8] sm:$0xff] %v997
      %1062 = vst [vmem:[#allocation2 + $0xd0] sm:$0xff] %v998
      %1063 = vst [vmem:[#allocation2 + $0xd8] sm:$0xff] %v999
      %1064 = vst [vmem:[#allocation2 + $0xe0] sm:$0xff] %v1000
      %1065 = vst [vmem:[#allocation2 + $0xe8] sm:$0xff] %v1001
      %1066 = vst [vmem:[#allocation2 + $0xf0] sm:$0xff] %v1002
      %1067 = vst [vmem:[#allocation2 + $0xf8] sm:$0xff] %v1003
      %1068 = vst [vmem:[#allocation2 + $0x100] sm:$0xff] %v1004
      %1069 = vst [vmem:[#allocation2 + $0x108] sm:$0xff] %v1005
      %1070 = vst [vmem:[#allocation2 + $0x110] sm:$0xff] %v1006
      %1071 = vst [vmem:[#allocation2 + $0x118] sm:$0xff] %v1007
      %1072 = vst [vmem:[#allocation2 + $0x120] sm:$0xff] %v1008
      %1073 = vst [vmem:[#allocation2 + $0x128] sm:$0xff] %v1009
      %1074 = vst [vmem:[#allocation2 + $0x130] sm:$0xff] %v1010
      %1075 = vst [vmem:[#allocation2 + $0x138] sm:$0xff] %v1011
      %1076 = vst [vmem:[#allocation2 + $0x140] sm:$0xff] %v1012
      %1077 = vst [vmem:[#allocation2 + $0x148] sm:$0xff] %v1013
      %1078 = vst [vmem:[#allocation2 + $0x150] sm:$0xff] %v1014
      %1079 = vst [vmem:[#allocation2 + $0x158] sm:$0xff] %v1015
      %1080 = vst [vmem:[#allocation2 + $0x160] sm:$0xff] %v1016
      %1081 = vst [vmem:[#allocation2 + $0x168] sm:$0xff] %v1017
      %1082 = vst [vmem:[#allocation2 + $0x170] sm:$0xff] %v1018
      %1083 = vst [vmem:[#allocation2 + $0x178] sm:$0xff] %v1019
      %1084 = vst [vmem:[#allocation2 + $0x180] sm:$0xff] %v1020
      %1085 = vst [vmem:[#allocation2 + $0x188] sm:$0xff] %v1021
      %1086 = vst [vmem:[#allocation2 + $0x190] sm:$0xff] %v1022
      %1087 = vst [vmem:[#allocation2 + $0x198] sm:$0xff] %v1023
      %1088 = vst [vmem:[#allocation2 + $0x1a0] sm:$0xff] %v1024
      %1089 = vst [vmem:[#allocation2 + $0x1a8] sm:$0xff] %v1025
      %1090 = vst [vmem:[#allocation2 + $0x1b0] sm:$0xff] %v1026
      %1091 = vst [vmem:[#allocation2 + $0x1b8] sm:$0xff] %v1027
      %1092 = vst [vmem:[#allocation2 + $0x1c0] sm:$0xff] %v1028
      %1093 = vst [vmem:[#allocation2 + $0x1c8] sm:$0xff] %v1029
      %1094 = vst [vmem:[#allocation2 + $0x1d0] sm:$0xff] %v1030
      %1095 = vst [vmem:[#allocation2 + $0x1d8] sm:$0xff] %v1031
      %1096 = vst [vmem:[#allocation2 + $0x1e0] sm:$0xff] %v1032
      %1097 = vst [vmem:[#allocation2 + $0x1e8] sm:$0xff] %v1033
      %1098 = vst [vmem:[#allocation2 + $0x1f0] sm:$0xff] %v1034
      %1099 = vst [vmem:[#allocation2 + $0x1f8] sm:$0xff] %v1035
      // Predicated region
      $region33: #{g_forward.6} parent=27 // pred_check
        %p1100 = pneg %p231
      $region34: #{g_forward.6} parent=27 // pred_check_branch
        %1102 = sbr.rel (%p1100) target = $region36
      $region35: #{g_forward.6} parent=27 // pred_region
        %v1103 = vld [vmem:[#allocation2] sm:$0xff]
        %v1104 = vld [vmem:[#allocation2 + $0x8] sm:$0xff]
        %v1105 = vld [vmem:[#allocation2 + $0x10] sm:$0xff]
        %v1106 = vld [vmem:[#allocation2 + $0x18] sm:$0xff]
        %v1107 = vld [vmem:[#allocation2 + $0x20] sm:$0xff]
        %v1108 = vld [vmem:[#allocation2 + $0x28] sm:$0xff]
        %v1109 = vld [vmem:[#allocation2 + $0x30] sm:$0xff]
        %v1110 = vld [vmem:[#allocation2 + $0x38] sm:$0xff]
        %v1111 = vld [vmem:[#allocation2 + $0x40] sm:$0xff]
        %v1112 = vld [vmem:[#allocation2 + $0x48] sm:$0xff]
        %v1113 = vld [vmem:[#allocation2 + $0x50] sm:$0xff]
        %v1114 = vld [vmem:[#allocation2 + $0x58] sm:$0xff]
        %v1115 = vld [vmem:[#allocation2 + $0x60] sm:$0xff]
        %v1116 = vld [vmem:[#allocation2 + $0x68] sm:$0xff]
        %v1117 = vld [vmem:[#allocation2 + $0x70] sm:$0xff]
        %v1118 = vld [vmem:[#allocation2 + $0x78] sm:$0xff]
        %v1119 = vld [vmem:[#allocation2 + $0x80] sm:$0xff]
        %v1120 = vld [vmem:[#allocation2 + $0x88] sm:$0xff]
        %v1121 = vld [vmem:[#allocation2 + $0x90] sm:$0xff]
        %v1122 = vld [vmem:[#allocation2 + $0x98] sm:$0xff]
        %v1123 = vld [vmem:[#allocation2 + $0xa0] sm:$0xff]
        %v1124 = vld [vmem:[#allocation2 + $0xa8] sm:$0xff]
        %v1125 = vld [vmem:[#allocation2 + $0xb0] sm:$0xff]
        %v1126 = vld [vmem:[#allocation2 + $0xb8] sm:$0xff]
        %v1127 = vld [vmem:[#allocation2 + $0xc0] sm:$0xff]
        %v1128 = vld [vmem:[#allocation2 + $0xc8] sm:$0xff]
        %v1129 = vld [vmem:[#allocation2 + $0xd0] sm:$0xff]
        %v1130 = vld [vmem:[#allocation2 + $0xd8] sm:$0xff]
        %v1131 = vld [vmem:[#allocation2 + $0xe0] sm:$0xff]
        %v1132 = vld [vmem:[#allocation2 + $0xe8] sm:$0xff]
        %v1133 = vld [vmem:[#allocation2 + $0xf0] sm:$0xff]
        %v1134 = vld [vmem:[#allocation2 + $0xf8] sm:$0xff]
        %v1135 = vld [vmem:[#allocation2 + $0x100] sm:$0xff]
        %v1136 = vld [vmem:[#allocation2 + $0x108] sm:$0xff]
        %v1137 = vld [vmem:[#allocation2 + $0x110] sm:$0xff]
        %v1138 = vld [vmem:[#allocation2 + $0x118] sm:$0xff]
        %v1139 = vld [vmem:[#allocation2 + $0x120] sm:$0xff]
        %v1140 = vld [vmem:[#allocation2 + $0x128] sm:$0xff]
        %v1141 = vld [vmem:[#allocation2 + $0x130] sm:$0xff]
        %v1142 = vld [vmem:[#allocation2 + $0x138] sm:$0xff]
        %v1143 = vld [vmem:[#allocation2 + $0x140] sm:$0xff]
        %v1144 = vld [vmem:[#allocation2 + $0x148] sm:$0xff]
        %v1145 = vld [vmem:[#allocation2 + $0x150] sm:$0xff]
        %v1146 = vld [vmem:[#allocation2 + $0x158] sm:$0xff]
        %v1147 = vld [vmem:[#allocation2 + $0x160] sm:$0xff]
        %v1148 = vld [vmem:[#allocation2 + $0x168] sm:$0xff]
        %v1149 = vld [vmem:[#allocation2 + $0x170] sm:$0xff]
        %v1150 = vld [vmem:[#allocation2 + $0x178] sm:$0xff]
        %v1151 = vld [vmem:[#allocation2 + $0x180] sm:$0xff]
        %v1152 = vld [vmem:[#allocation2 + $0x188] sm:$0xff]
        %v1153 = vld [vmem:[#allocation2 + $0x190] sm:$0xff]
        %v1154 = vld [vmem:[#allocation2 + $0x198] sm:$0xff]
        %v1155 = vld [vmem:[#allocation2 + $0x1a0] sm:$0xff]
        %v1156 = vld [vmem:[#allocation2 + $0x1a8] sm:$0xff]
        %v1157 = vld [vmem:[#allocation2 + $0x1b0] sm:$0xff]
        %v1158 = vld [vmem:[#allocation2 + $0x1b8] sm:$0xff]
        %v1159 = vld [vmem:[#allocation2 + $0x1c0] sm:$0xff]
        %v1160 = vld [vmem:[#allocation2 + $0x1c8] sm:$0xff]
        %v1161 = vld [vmem:[#allocation2 + $0x1d0] sm:$0xff]
        %v1162 = vld [vmem:[#allocation2 + $0x1d8] sm:$0xff]
        %v1163 = vld [vmem:[#allocation2 + $0x1e0] sm:$0xff]
        %v1164 = vld [vmem:[#allocation2 + $0x1e8] sm:$0xff]
        %v1165 = vld [vmem:[#allocation2 + $0x1f0] sm:$0xff]
        %v1166 = vld [vmem:[#allocation2 + $0x1f8] sm:$0xff]
        %v1167 = vmax.f32 %v1103, 0.0
        %v1168 = vmax.f32 %v1104, 0.0
        %v1169 = vmax.f32 %v1105, 0.0
        %v1170 = vmax.f32 %v1106, 0.0
        %v1171 = vmax.f32 %v1107, 0.0
        %v1172 = vmax.f32 %v1108, 0.0
        %v1173 = vmax.f32 %v1109, 0.0
        %v1174 = vmax.f32 %v1110, 0.0
        %v1175 = vmax.f32 %v1111, 0.0
        %v1176 = vmax.f32 %v1112, 0.0
        %v1177 = vmax.f32 %v1113, 0.0
        %v1178 = vmax.f32 %v1114, 0.0
        %v1179 = vmax.f32 %v1115, 0.0
        %v1180 = vmax.f32 %v1116, 0.0
        %v1181 = vmax.f32 %v1117, 0.0
        %v1182 = vmax.f32 %v1118, 0.0
        %v1183 = vmax.f32 %v1119, 0.0
        %v1184 = vmax.f32 %v1120, 0.0
        %v1185 = vmax.f32 %v1121, 0.0
        %v1186 = vmax.f32 %v1122, 0.0
        %v1187 = vmax.f32 %v1123, 0.0
        %v1188 = vmax.f32 %v1124, 0.0
        %v1189 = vmax.f32 %v1125, 0.0
        %v1190 = vmax.f32 %v1126, 0.0
        %v1191 = vmax.f32 %v1127, 0.0
        %v1192 = vmax.f32 %v1128, 0.0
        %v1193 = vmax.f32 %v1129, 0.0
        %v1194 = vmax.f32 %v1130, 0.0
        %v1195 = vmax.f32 %v1131, 0.0
        %v1196 = vmax.f32 %v1132, 0.0
        %v1197 = vmax.f32 %v1133, 0.0
        %v1198 = vmax.f32 %v1134, 0.0
        %v1199 = vmax.f32 %v1135, 0.0
        %v1200 = vmax.f32 %v1136, 0.0
        %v1201 = vmax.f32 %v1137, 0.0
        %v1202 = vmax.f32 %v1138, 0.0
        %v1203 = vmax.f32 %v1139, 0.0
        %v1204 = vmax.f32 %v1140, 0.0
        %v1205 = vmax.f32 %v1141, 0.0
        %v1206 = vmax.f32 %v1142, 0.0
        %v1207 = vmax.f32 %v1143, 0.0
        %v1208 = vmax.f32 %v1144, 0.0
        %v1209 = vmax.f32 %v1145, 0.0
        %v1210 = vmax.f32 %v1146, 0.0
        %v1211 = vmax.f32 %v1147, 0.0
        %v1212 = vmax.f32 %v1148, 0.0
        %v1213 = vmax.f32 %v1149, 0.0
        %v1214 = vmax.f32 %v1150, 0.0
        %v1215 = vmax.f32 %v1151, 0.0
        %v1216 = vmax.f32 %v1152, 0.0
        %v1217 = vmax.f32 %v1153, 0.0
        %v1218 = vmax.f32 %v1154, 0.0
        %v1219 = vmax.f32 %v1155, 0.0
        %v1220 = vmax.f32 %v1156, 0.0
        %v1221 = vmax.f32 %v1157, 0.0
        %v1222 = vmax.f32 %v1158, 0.0
        %v1223 = vmax.f32 %v1159, 0.0
        %v1224 = vmax.f32 %v1160, 0.0
        %v1225 = vmax.f32 %v1161, 0.0
        %v1226 = vmax.f32 %v1162, 0.0
        %v1227 = vmax.f32 %v1163, 0.0
        %v1228 = vmax.f32 %v1164, 0.0
        %v1229 = vmax.f32 %v1165, 0.0
        %v1230 = vmax.f32 %v1166, 0.0
        %v1231 = vpack.c.bf16 %v1168, %v1167
        %v1232 = vpack.c.bf16 %v1170, %v1169
        %v1233 = vpack.c.bf16 %v1172, %v1171
        %v1234 = vpack.c.bf16 %v1174, %v1173
        %v1235 = vpack.c.bf16 %v1176, %v1175
        %v1236 = vpack.c.bf16 %v1178, %v1177
        %v1237 = vpack.c.bf16 %v1180, %v1179
        %v1238 = vpack.c.bf16 %v1182, %v1181
        %v1239 = vpack.c.bf16 %v1184, %v1183
        %v1240 = vpack.c.bf16 %v1186, %v1185
        %v1241 = vpack.c.bf16 %v1188, %v1187
        %v1242 = vpack.c.bf16 %v1190, %v1189
        %v1243 = vpack.c.bf16 %v1192, %v1191
        %v1244 = vpack.c.bf16 %v1194, %v1193
        %v1245 = vpack.c.bf16 %v1196, %v1195
        %v1246 = vpack.c.bf16 %v1198, %v1197
        %v1247 = vpack.c.bf16 %v1200, %v1199
        %v1248 = vpack.c.bf16 %v1202, %v1201
        %v1249 = vpack.c.bf16 %v1204, %v1203
        %v1250 = vpack.c.bf16 %v1206, %v1205
        %v1251 = vpack.c.bf16 %v1208, %v1207
        %v1252 = vpack.c.bf16 %v1210, %v1209
        %v1253 = vpack.c.bf16 %v1212, %v1211
        %v1254 = vpack.c.bf16 %v1214, %v1213
        %v1255 = vpack.c.bf16 %v1216, %v1215
        %v1256 = vpack.c.bf16 %v1218, %v1217
        %v1257 = vpack.c.bf16 %v1220, %v1219
        %v1258 = vpack.c.bf16 %v1222, %v1221
        %v1259 = vpack.c.bf16 %v1224, %v1223
        %v1260 = vpack.c.bf16 %v1226, %v1225
        %v1261 = vpack.c.bf16 %v1228, %v1227
        %v1262 = vpack.c.bf16 %v1230, %v1229
        %v1295 = vunpack.c.l.b16 %v1231
        %v1296 = vunpack.c.h.b16 %v1231
        %v1297 = vunpack.c.l.b16 %v1232
        %v1298 = vunpack.c.h.b16 %v1232
        %v1299 = vunpack.c.l.b16 %v1233
        %v1300 = vunpack.c.h.b16 %v1233
        %v1301 = vunpack.c.l.b16 %v1234
        %v1302 = vunpack.c.h.b16 %v1234
        %v1303 = vunpack.c.l.b16 %v1235
        %v1304 = vunpack.c.h.b16 %v1235
        %v1305 = vunpack.c.l.b16 %v1236
        %v1306 = vunpack.c.h.b16 %v1236
        %v1307 = vunpack.c.l.b16 %v1237
        %v1308 = vunpack.c.h.b16 %v1237
        %v1309 = vunpack.c.l.b16 %v1238
        %v1310 = vunpack.c.h.b16 %v1238
        %v1311 = vunpack.c.l.b16 %v1239
        %v1312 = vunpack.c.h.b16 %v1239
        %v1313 = vunpack.c.l.b16 %v1240
        %v1314 = vunpack.c.h.b16 %v1240
        %v1315 = vunpack.c.l.b16 %v1241
        %v1316 = vunpack.c.h.b16 %v1241
        %v1317 = vunpack.c.l.b16 %v1242
        %v1318 = vunpack.c.h.b16 %v1242
        %v1319 = vunpack.c.l.b16 %v1243
        %v1320 = vunpack.c.h.b16 %v1243
        %v1321 = vunpack.c.l.b16 %v1244
        %v1322 = vunpack.c.h.b16 %v1244
        %v1323 = vunpack.c.l.b16 %v1245
        %v1324 = vunpack.c.h.b16 %v1245
        %v1325 = vunpack.c.l.b16 %v1246
        %v1326 = vunpack.c.h.b16 %v1246
        %v1327 = vunpack.c.l.b16 %v1247
        %v1328 = vunpack.c.h.b16 %v1247
        %v1329 = vunpack.c.l.b16 %v1248
        %v1330 = vunpack.c.h.b16 %v1248
        %v1331 = vunpack.c.l.b16 %v1249
        %v1332 = vunpack.c.h.b16 %v1249
        %v1333 = vunpack.c.l.b16 %v1250
        %v1334 = vunpack.c.h.b16 %v1250
        %v1335 = vunpack.c.l.b16 %v1251
        %v1336 = vunpack.c.h.b16 %v1251
        %v1337 = vunpack.c.l.b16 %v1252
        %v1338 = vunpack.c.h.b16 %v1252
        %v1339 = vunpack.c.l.b16 %v1253
        %v1340 = vunpack.c.h.b16 %v1253
        %v1341 = vunpack.c.l.b16 %v1254
        %v1342 = vunpack.c.h.b16 %v1254
        %v1343 = vunpack.c.l.b16 %v1255
        %v1344 = vunpack.c.h.b16 %v1255
        %v1345 = vunpack.c.l.b16 %v1256
        %v1346 = vunpack.c.h.b16 %v1256
        %v1347 = vunpack.c.l.b16 %v1257
        %v1348 = vunpack.c.h.b16 %v1257
        %v1349 = vunpack.c.l.b16 %v1258
        %v1350 = vunpack.c.h.b16 %v1258
        %v1351 = vunpack.c.l.b16 %v1259
        %v1352 = vunpack.c.h.b16 %v1259
        %v1353 = vunpack.c.l.b16 %v1260
        %v1354 = vunpack.c.h.b16 %v1260
        %v1355 = vunpack.c.l.b16 %v1261
        %v1356 = vunpack.c.h.b16 %v1261
        %v1357 = vunpack.c.l.b16 %v1262
        %v1358 = vunpack.c.h.b16 %v1262
        %v1359 = vpack.c.b16 %v1295, %v1295
        %v1360 = vpack.c.b16 %v1296, %v1296
        %v1361 = vpack.c.b16 %v1297, %v1297
        %v1362 = vpack.c.b16 %v1298, %v1298
        %v1363 = vpack.c.b16 %v1299, %v1299
        %v1364 = vpack.c.b16 %v1300, %v1300
        %v1365 = vpack.c.b16 %v1301, %v1301
        %v1366 = vpack.c.b16 %v1302, %v1302
        %v1367 = vpack.c.b16 %v1303, %v1303
        %v1368 = vpack.c.b16 %v1304, %v1304
        %v1369 = vpack.c.b16 %v1305, %v1305
        %v1370 = vpack.c.b16 %v1306, %v1306
        %v1371 = vpack.c.b16 %v1307, %v1307
        %v1372 = vpack.c.b16 %v1308, %v1308
        %v1373 = vpack.c.b16 %v1309, %v1309
        %v1374 = vpack.c.b16 %v1310, %v1310
        %v1375 = vpack.c.b16 %v1311, %v1311
        %v1376 = vpack.c.b16 %v1312, %v1312
        %v1377 = vpack.c.b16 %v1313, %v1313
        %v1378 = vpack.c.b16 %v1314, %v1314
        %v1379 = vpack.c.b16 %v1315, %v1315
        %v1380 = vpack.c.b16 %v1316, %v1316
        %v1381 = vpack.c.b16 %v1317, %v1317
        %v1382 = vpack.c.b16 %v1318, %v1318
        %v1383 = vpack.c.b16 %v1319, %v1319
        %v1384 = vpack.c.b16 %v1320, %v1320
        %v1385 = vpack.c.b16 %v1321, %v1321
        %v1386 = vpack.c.b16 %v1322, %v1322
        %v1387 = vpack.c.b16 %v1323, %v1323
        %v1388 = vpack.c.b16 %v1324, %v1324
        %v1389 = vpack.c.b16 %v1325, %v1325
        %v1390 = vpack.c.b16 %v1326, %v1326
        %v1391 = vpack.c.b16 %v1327, %v1327
        %v1392 = vpack.c.b16 %v1328, %v1328
        %v1393 = vpack.c.b16 %v1329, %v1329
        %v1394 = vpack.c.b16 %v1330, %v1330
        %v1395 = vpack.c.b16 %v1331, %v1331
        %v1396 = vpack.c.b16 %v1332, %v1332
        %v1397 = vpack.c.b16 %v1333, %v1333
        %v1398 = vpack.c.b16 %v1334, %v1334
        %v1399 = vpack.c.b16 %v1335, %v1335
        %v1400 = vpack.c.b16 %v1336, %v1336
        %v1401 = vpack.c.b16 %v1337, %v1337
        %v1402 = vpack.c.b16 %v1338, %v1338
        %v1403 = vpack.c.b16 %v1339, %v1339
        %v1404 = vpack.c.b16 %v1340, %v1340
        %v1405 = vpack.c.b16 %v1341, %v1341
        %v1406 = vpack.c.b16 %v1342, %v1342
        %v1407 = vpack.c.b16 %v1343, %v1343
        %v1408 = vpack.c.b16 %v1344, %v1344
        %v1409 = vpack.c.b16 %v1345, %v1345
        %v1410 = vpack.c.b16 %v1346, %v1346
        %v1411 = vpack.c.b16 %v1347, %v1347
        %v1412 = vpack.c.b16 %v1348, %v1348
        %v1413 = vpack.c.b16 %v1349, %v1349
        %v1414 = vpack.c.b16 %v1350, %v1350
        %v1415 = vpack.c.b16 %v1351, %v1351
        %v1416 = vpack.c.b16 %v1352, %v1352
        %v1417 = vpack.c.b16 %v1353, %v1353
        %v1418 = vpack.c.b16 %v1354, %v1354
        %v1419 = vpack.c.b16 %v1355, %v1355
        %v1420 = vpack.c.b16 %v1356, %v1356
        %v1421 = vpack.c.b16 %v1357, %v1357
        %v1422 = vpack.c.b16 %v1358, %v1358
        %1487 = vst [vmem:[%s224] sm:$0xf] %v1359
        %1488 = vst [vmem:[%s224 + $0x4] sm:$0xf] %v1360
        %1489 = vst [vmem:[%s224 + $0x8] sm:$0xf] %v1361
        %1490 = vst [vmem:[%s224 + $0xc] sm:$0xf] %v1362
        %1491 = vst [vmem:[%s224 + $0x10] sm:$0xf] %v1363
        %1492 = vst [vmem:[%s224 + $0x14] sm:$0xf] %v1364
        %1493 = vst [vmem:[%s224 + $0x18] sm:$0xf] %v1365
        %1494 = vst [vmem:[%s224 + $0x1c] sm:$0xf] %v1366
        %1495 = vst [vmem:[%s224 + $0x20] sm:$0xf] %v1367
        %1496 = vst [vmem:[%s224 + $0x24] sm:$0xf] %v1368
        %1497 = vst [vmem:[%s224 + $0x28] sm:$0xf] %v1369
        %1498 = vst [vmem:[%s224 + $0x2c] sm:$0xf] %v1370
        %1499 = vst [vmem:[%s224 + $0x30] sm:$0xf] %v1371
        %1500 = vst [vmem:[%s224 + $0x34] sm:$0xf] %v1372
        %1501 = vst [vmem:[%s224 + $0x38] sm:$0xf] %v1373
        %1502 = vst [vmem:[%s224 + $0x3c] sm:$0xf] %v1374
        %1503 = vst [vmem:[%s224 + $0x40] sm:$0xf] %v1375
        %1504 = vst [vmem:[%s224 + $0x44] sm:$0xf] %v1376
        %1505 = vst [vmem:[%s224 + $0x48] sm:$0xf] %v1377
        %1506 = vst [vmem:[%s224 + $0x4c] sm:$0xf] %v1378
        %1507 = vst [vmem:[%s224 + $0x50] sm:$0xf] %v1379
        %1508 = vst [vmem:[%s224 + $0x54] sm:$0xf] %v1380
        %1509 = vst [vmem:[%s224 + $0x58] sm:$0xf] %v1381
        %1510 = vst [vmem:[%s224 + $0x5c] sm:$0xf] %v1382
        %1511 = vst [vmem:[%s224 + $0x60] sm:$0xf] %v1383
        %1512 = vst [vmem:[%s224 + $0x64] sm:$0xf] %v1384
        %1513 = vst [vmem:[%s224 + $0x68] sm:$0xf] %v1385
        %1514 = vst [vmem:[%s224 + $0x6c] sm:$0xf] %v1386
        %1515 = vst [vmem:[%s224 + $0x70] sm:$0xf] %v1387
        %1516 = vst [vmem:[%s224 + $0x74] sm:$0xf] %v1388
        %1517 = vst [vmem:[%s224 + $0x78] sm:$0xf] %v1389
        %1518 = vst [vmem:[%s224 + $0x7c] sm:$0xf] %v1390
        %1519 = vst [vmem:[%s224 + $0x80] sm:$0xf] %v1391
        %1520 = vst [vmem:[%s224 + $0x84] sm:$0xf] %v1392
        %1521 = vst [vmem:[%s224 + $0x88] sm:$0xf] %v1393
        %1522 = vst [vmem:[%s224 + $0x8c] sm:$0xf] %v1394
        %1523 = vst [vmem:[%s224 + $0x90] sm:$0xf] %v1395
        %1524 = vst [vmem:[%s224 + $0x94] sm:$0xf] %v1396
        %1525 = vst [vmem:[%s224 + $0x98] sm:$0xf] %v1397
        %1526 = vst [vmem:[%s224 + $0x9c] sm:$0xf] %v1398
        %1527 = vst [vmem:[%s224 + $0xa0] sm:$0xf] %v1399
        %1528 = vst [vmem:[%s224 + $0xa4] sm:$0xf] %v1400
        %1529 = vst [vmem:[%s224 + $0xa8] sm:$0xf] %v1401
        %1530 = vst [vmem:[%s224 + $0xac] sm:$0xf] %v1402
        %1531 = vst [vmem:[%s224 + $0xb0] sm:$0xf] %v1403
        %1532 = vst [vmem:[%s224 + $0xb4] sm:$0xf] %v1404
        %1533 = vst [vmem:[%s224 + $0xb8] sm:$0xf] %v1405
        %1534 = vst [vmem:[%s224 + $0xbc] sm:$0xf] %v1406
        %1535 = vst [vmem:[%s224 + $0xc0] sm:$0xf] %v1407
        %1536 = vst [vmem:[%s224 + $0xc4] sm:$0xf] %v1408
        %1537 = vst [vmem:[%s224 + $0xc8] sm:$0xf] %v1409
        %1538 = vst [vmem:[%s224 + $0xcc] sm:$0xf] %v1410
        %1539 = vst [vmem:[%s224 + $0xd0] sm:$0xf] %v1411
        %1540 = vst [vmem:[%s224 + $0xd4] sm:$0xf] %v1412
        %1541 = vst [vmem:[%s224 + $0xd8] sm:$0xf] %v1413
        %1542 = vst [vmem:[%s224 + $0xdc] sm:$0xf] %v1414
        %1543 = vst [vmem:[%s224 + $0xe0] sm:$0xf] %v1415
        %1544 = vst [vmem:[%s224 + $0xe4] sm:$0xf] %v1416
        %1545 = vst [vmem:[%s224 + $0xe8] sm:$0xf] %v1417
        %1546 = vst [vmem:[%s224 + $0xec] sm:$0xf] %v1418
        %1547 = vst [vmem:[%s224 + $0xf0] sm:$0xf] %v1419
        %1548 = vst [vmem:[%s224 + $0xf4] sm:$0xf] %v1420
        %1549 = vst [vmem:[%s224 + $0xf8] sm:$0xf] %v1421
        %1550 = vst [vmem:[%s224 + $0xfc] sm:$0xf] %v1422
        %v1551 = vadd.f32 %v1167, %v1168
        %v1552 = vadd.f32 %v1551, %v1169
        %v1553 = vadd.f32 %v1552, %v1170
        %v1554 = vadd.f32 %v1553, %v1171
        %v1555 = vadd.f32 %v1554, %v1172
        %v1556 = vadd.f32 %v1555, %v1173
        %v1557 = vadd.f32 %v1556, %v1174
        %v1558 = vadd.f32 %v1557, %v1175
        %v1559 = vadd.f32 %v1558, %v1176
        %v1560 = vadd.f32 %v1559, %v1177
        %v1561 = vadd.f32 %v1560, %v1178
        %v1562 = vadd.f32 %v1561, %v1179
        %v1563 = vadd.f32 %v1562, %v1180
        %v1564 = vadd.f32 %v1563, %v1181
        %v1565 = vadd.f32 %v1564, %v1182
        %v1566 = vadd.f32 %v1565, %v1183
        %v1567 = vadd.f32 %v1566, %v1184
        %v1568 = vadd.f32 %v1567, %v1185
        %v1569 = vadd.f32 %v1568, %v1186
        %v1570 = vadd.f32 %v1569, %v1187
        %v1571 = vadd.f32 %v1570, %v1188
        %v1572 = vadd.f32 %v1571, %v1189
        %v1573 = vadd.f32 %v1572, %v1190
        %v1574 = vadd.f32 %v1573, %v1191
        %v1575 = vadd.f32 %v1574, %v1192
        %v1576 = vadd.f32 %v1575, %v1193
        %v1577 = vadd.f32 %v1576, %v1194
        %v1578 = vadd.f32 %v1577, %v1195
        %v1579 = vadd.f32 %v1578, %v1196
        %v1580 = vadd.f32 %v1579, %v1197
        %v1581 = vadd.f32 %v1580, %v1198
        %v1582 = vadd.f32 %v1581, %v1199
        %v1583 = vadd.f32 %v1582, %v1200
        %v1584 = vadd.f32 %v1583, %v1201
        %v1585 = vadd.f32 %v1584, %v1202
        %v1586 = vadd.f32 %v1585, %v1203
        %v1587 = vadd.f32 %v1586, %v1204
        %v1588 = vadd.f32 %v1587, %v1205
        %v1589 = vadd.f32 %v1588, %v1206
        %v1590 = vadd.f32 %v1589, %v1207
        %v1591 = vadd.f32 %v1590, %v1208
        %v1592 = vadd.f32 %v1591, %v1209
        %v1593 = vadd.f32 %v1592, %v1210
        %v1594 = vadd.f32 %v1593, %v1211
        %v1595 = vadd.f32 %v1594, %v1212
        %v1596 = vadd.f32 %v1595, %v1213
        %v1597 = vadd.f32 %v1596, %v1214
        %v1598 = vadd.f32 %v1597, %v1215
        %v1599 = vadd.f32 %v1598, %v1216
        %v1600 = vadd.f32 %v1599, %v1217
        %v1601 = vadd.f32 %v1600, %v1218
        %v1602 = vadd.f32 %v1601, %v1219
        %v1603 = vadd.f32 %v1602, %v1220
        %v1604 = vadd.f32 %v1603, %v1221
        %v1605 = vadd.f32 %v1604, %v1222
        %v1606 = vadd.f32 %v1605, %v1223
        %v1607 = vadd.f32 %v1606, %v1224
        %v1608 = vadd.f32 %v1607, %v1225
        %v1609 = vadd.f32 %v1608, %v1226
        %v1610 = vadd.f32 %v1609, %v1227
        %v1611 = vadd.f32 %v1610, %v1228
        %v1612 = vadd.f32 %v1611, %v1229
        %v1613 = vadd.f32 %v1612, %v1230
        %v1614 = vrot.slane %v1613, 4
        %v1615 = vadd.f32 %v1613, %v1614
        %v1616 = vrot.slane %v1615, 2
        %v1617 = vadd.f32 %v1615, %v1616
        %v1618 = vrot.slane %v1617, 1
        %v1619 = vadd.f32 %v1617, %v1618
        %v1620 = vmul.f32 %v1167, %v1167
        %v1621 = vmul.f32 %v1168, %v1168
        %v1622 = vmul.f32 %v1169, %v1169
        %v1623 = vmul.f32 %v1170, %v1170
        %v1624 = vmul.f32 %v1171, %v1171
        %v1625 = vmul.f32 %v1172, %v1172
        %v1626 = vmul.f32 %v1173, %v1173
        %v1627 = vmul.f32 %v1174, %v1174
        %v1628 = vmul.f32 %v1175, %v1175
        %v1629 = vmul.f32 %v1176, %v1176
        %v1630 = vmul.f32 %v1177, %v1177
        %v1631 = vmul.f32 %v1178, %v1178
        %v1632 = vmul.f32 %v1179, %v1179
        %v1633 = vmul.f32 %v1180, %v1180
        %v1634 = vmul.f32 %v1181, %v1181
        %v1635 = vmul.f32 %v1182, %v1182
        %v1636 = vmul.f32 %v1183, %v1183
        %v1637 = vmul.f32 %v1184, %v1184
        %v1638 = vmul.f32 %v1185, %v1185
        %v1639 = vmul.f32 %v1186, %v1186
        %v1640 = vmul.f32 %v1187, %v1187
        %v1641 = vmul.f32 %v1188, %v1188
        %v1642 = vmul.f32 %v1189, %v1189
        %v1643 = vmul.f32 %v1190, %v1190
        %v1644 = vmul.f32 %v1191, %v1191
        %v1645 = vmul.f32 %v1192, %v1192
        %v1646 = vmul.f32 %v1193, %v1193
        %v1647 = vmul.f32 %v1194, %v1194
        %v1648 = vmul.f32 %v1195, %v1195
        %v1649 = vmul.f32 %v1196, %v1196
        %v1650 = vmul.f32 %v1197, %v1197
        %v1651 = vmul.f32 %v1198, %v1198
        %v1652 = vmul.f32 %v1199, %v1199
        %v1653 = vmul.f32 %v1200, %v1200
        %v1654 = vmul.f32 %v1201, %v1201
        %v1655 = vmul.f32 %v1202, %v1202
        %v1656 = vmul.f32 %v1203, %v1203
        %v1657 = vmul.f32 %v1204, %v1204
        %v1658 = vmul.f32 %v1205, %v1205
        %v1659 = vmul.f32 %v1206, %v1206
        %v1660 = vmul.f32 %v1207, %v1207
        %v1661 = vmul.f32 %v1208, %v1208
        %v1662 = vmul.f32 %v1209, %v1209
        %v1663 = vmul.f32 %v1210, %v1210
        %v1664 = vmul.f32 %v1211, %v1211
        %v1665 = vmul.f32 %v1212, %v1212
        %v1666 = vmul.f32 %v1213, %v1213
        %v1667 = vmul.f32 %v1214, %v1214
        %v1668 = vmul.f32 %v1215, %v1215
        %v1669 = vmul.f32 %v1216, %v1216
        %v1670 = vmul.f32 %v1217, %v1217
        %v1671 = vmul.f32 %v1218, %v1218
        %v1672 = vmul.f32 %v1219, %v1219
        %v1673 = vmul.f32 %v1220, %v1220
        %v1674 = vmul.f32 %v1221, %v1221
        %v1675 = vmul.f32 %v1222, %v1222
        %v1676 = vmul.f32 %v1223, %v1223
        %v1677 = vmul.f32 %v1224, %v1224
        %v1678 = vmul.f32 %v1225, %v1225
        %v1679 = vmul.f32 %v1226, %v1226
        %v1680 = vmul.f32 %v1227, %v1227
        %v1681 = vmul.f32 %v1228, %v1228
        %v1682 = vmul.f32 %v1229, %v1229
        %v1683 = vmul.f32 %v1230, %v1230
        %v1684 = vadd.f32 %v1620, %v1621
        %v1685 = vadd.f32 %v1684, %v1622
        %v1686 = vadd.f32 %v1685, %v1623
        %v1687 = vadd.f32 %v1686, %v1624
        %v1688 = vadd.f32 %v1687, %v1625
        %v1689 = vadd.f32 %v1688, %v1626
        %v1690 = vadd.f32 %v1689, %v1627
        %v1691 = vadd.f32 %v1690, %v1628
        %v1692 = vadd.f32 %v1691, %v1629
        %v1693 = vadd.f32 %v1692, %v1630
        %v1694 = vadd.f32 %v1693, %v1631
        %v1695 = vadd.f32 %v1694, %v1632
        %v1696 = vadd.f32 %v1695, %v1633
        %v1697 = vadd.f32 %v1696, %v1634
        %v1698 = vadd.f32 %v1697, %v1635
        %v1699 = vadd.f32 %v1698, %v1636
        %v1700 = vadd.f32 %v1699, %v1637
        %v1701 = vadd.f32 %v1700, %v1638
        %v1702 = vadd.f32 %v1701, %v1639
        %v1703 = vadd.f32 %v1702, %v1640
        %v1704 = vadd.f32 %v1703, %v1641
        %v1705 = vadd.f32 %v1704, %v1642
        %v1706 = vadd.f32 %v1705, %v1643
        %v1707 = vadd.f32 %v1706, %v1644
        %v1708 = vadd.f32 %v1707, %v1645
        %v1709 = vadd.f32 %v1708, %v1646
        %v1710 = vadd.f32 %v1709, %v1647
        %v1711 = vadd.f32 %v1710, %v1648
        %v1712 = vadd.f32 %v1711, %v1649
        %v1713 = vadd.f32 %v1712, %v1650
        %v1714 = vadd.f32 %v1713, %v1651
        %v1715 = vadd.f32 %v1714, %v1652
        %v1716 = vadd.f32 %v1715, %v1653
        %v1717 = vadd.f32 %v1716, %v1654
        %v1718 = vadd.f32 %v1717, %v1655
        %v1719 = vadd.f32 %v1718, %v1656
        %v1720 = vadd.f32 %v1719, %v1657
        %v1721 = vadd.f32 %v1720, %v1658
        %v1722 = vadd.f32 %v1721, %v1659
        %v1723 = vadd.f32 %v1722, %v1660
        %v1724 = vadd.f32 %v1723, %v1661
        %v1725 = vadd.f32 %v1724, %v1662
        %v1726 = vadd.f32 %v1725, %v1663
        %v1727 = vadd.f32 %v1726, %v1664
        %v1728 = vadd.f32 %v1727, %v1665
        %v1729 = vadd.f32 %v1728, %v1666
        %v1730 = vadd.f32 %v1729, %v1667
        %v1731 = vadd.f32 %v1730, %v1668
        %v1732 = vadd.f32 %v1731, %v1669
        %v1733 = vadd.f32 %v1732, %v1670
        %v1734 = vadd.f32 %v1733, %v1671
        %v1735 = vadd.f32 %v1734, %v1672
        %v1736 = vadd.f32 %v1735, %v1673
        %v1737 = vadd.f32 %v1736, %v1674
        %v1738 = vadd.f32 %v1737, %v1675
        %v1739 = vadd.f32 %v1738, %v1676
        %v1740 = vadd.f32 %v1739, %v1677
        %v1741 = vadd.f32 %v1740, %v1678
        %v1742 = vadd.f32 %v1741, %v1679
        %v1743 = vadd.f32 %v1742, %v1680
        %v1744 = vadd.f32 %v1743, %v1681
        %v1745 = vadd.f32 %v1744, %v1682
        %v1746 = vadd.f32 %v1745, %v1683
        %v1747 = vrot.slane %v1746, 4
        %v1748 = vadd.f32 %v1746, %v1747
        %v1749 = vrot.slane %v1748, 2
        %v1750 = vadd.f32 %v1748, %v1749
        %v1751 = vrot.slane %v1750, 1
        %v1752 = vadd.f32 %v1750, %v1751
        %vm1753 = vcmask 1040384
        %v1754 = vsel %vm1753, %v1619, %v1752
        %1755 = vst [vmem:[%s229] sm:$0x3] %v1754
      $region36: #{g_forward.6} parent=27 // pred_fallthru
        _
      %s1756 = smul.u32 64, %s19
      %p1757 = scmp.lt.s32.totalorder %s1756, 1023
      %s1758 = scalar_select %p1757, %s1756, 1023
      %s1759 = smul.addr %s1758, 4
      %s1760 = scalar_lea.vmem %s2, %s1759
      %p1761 = scmp.lt.s32.totalorder %s19, 15
      %s1762 = scalar_select %p1761, %s19, 15
      %s1763 = smul.addr %s1762, 2
      %s1764 = scalar_lea.vmem %s3, %s1763
      // Predicated region
      $region37: #{g_forward.6} parent=27 // pred_check
        %p1765 = pneg %p99
      $region38: #{g_forward.6} parent=27 // pred_check_branch
        %1767 = sbr.rel (%p1765) target = $region40
      $region39: #{g_forward.6} parent=27 // pred_region
        %s1768 = smul.u32 64, %s19
      $region40: #{g_forward.6} parent=27 // pred_fallthru
        _
      // Predicated region
      $region41: #{g_forward.6} parent=27 // pred_check
        %p1769 = pneg %p125
      $region42: #{g_forward.6} parent=27 // pred_check_branch
        %1771 = sbr.rel (%p1769) target = $region44
      $region43: #{g_forward.6} parent=27 // pred_region
        _
      $region44: #{g_forward.6} parent=27 // pred_fallthru
        _
    $region28: #{g_forward.6} parent=5 // pred_fallthru
      _
    %p1772 = scmp.le.s32.totalorder 2, %s10
    // Predicated region
    $region45: #{g_forward.6} parent=5 // pred_check
      %p1773 = pneg %p1772
    $region46: #{g_forward.6} parent=5 // pred_check_branch
      %1775 = sbr.rel (%p1773) target = $region48
    $region47: #{g_forward.6} parent=5 // pred_region
      %s1776 = ssub.s32 %s10, 2
      // Predicated region
      $region49: #{g_forward.6} parent=47 // pred_check
        %p1777 = pneg %p105
      $region50: #{g_forward.6} parent=47 // pred_check_branch
        %1779 = sbr.rel (%p1777) target = $region52
      $region51: #{g_forward.6} parent=47 // pred_region
        %s1780 = smul.u32 64, %s21
        %p1781 = scmp.lt.s32.totalorder %s1780, 1023
        %s1782 = scalar_select %p1781, %s1780, 1023
        %s1783 = smul.addr %s1782, 4
        %s1784 = scalar_lea.vmem %s2, %s1783
      $region52: #{g_forward.6} parent=47 // pred_fallthru
        _
      // Predicated region
      $region53: #{g_forward.6} parent=47 // pred_check
        %p1785 = pneg %p131
      $region54: #{g_forward.6} parent=47 // pred_check_branch
        %1787 = sbr.rel (%p1785) target = $region56
      $region55: #{g_forward.6} parent=47 // pred_region
        %p1788 = scmp.lt.s32.totalorder %s21, 15
        %s1789 = scalar_select %p1788, %s21, 15
        %s1790 = smul.addr %s1789, 2
        %s1791 = scalar_lea.vmem %s3, %s1790
      $region56: #{g_forward.6} parent=47 // pred_fallthru
        _
    $region48: #{g_forward.6} parent=5 // pred_fallthru
      _
  $region6: #{g_forward.6} parent=0 // loop_footer
    %s14 = sadd.s32 1, %s10
  $region7: #{g_forward.6} parent=0 // loop_footer_branch
    %9 = sbr.rel target = $region3
  $region8: #{g_forward.6} parent=0 // loop_exit
    _

// kernel: g_forward.7
$region0: #{g_forward.7}
  #allocation0 [shape = 'u32[]', space=smem, size = 0x4, offset = 0x4, fixed_abs, tag = 'smem constant byte address 0x4 - core index']
  #allocation1 [shape = 'u32[144,128]{1,0:T(1,128)}', space=vmem, size = 0x12000, scoped, tag = 'internal scratch']
  %s0 = inlined_call_operand.vmem [shape: bf16[8192,128], index: 0, kind: input, shape index: {}]
  %s1 = inlined_call_operand.vmem [shape: f32[1,128], index: 1, kind: input, shape index: {}]
  %s2 = inlined_call_operand.vmem [shape: f32[1,128], index: 2, kind: input, shape index: {}]
  %s3 = inlined_call_operand.vmem [shape: bf16[8192,128], index: 3, kind: output, shape index: {}]
  %s4 = sld [smem:[#allocation0]]
  $region45: #{g_forward.7} parent=0
    _
  %s6 = ssub.s32 1, %s4
  %s7 = scalar_select 0, %s6, %s4
  loop: start=0, step=1, limit=18
  $region2: #{g_forward.7} parent=0 // loop_pre_header
    _
  $region3: #{g_forward.7} parent=0 // loop_header
    %s9 = sphi 0, %s13
    %p10 = scmp.ge.s32.totalorder %s9, 18
    %s19 = sphi 0, %s21
    %s22 = sphi 0, %s19
    %s23 = sphi 0, %s22
    %s39 = sphi 0, %s23
    %s43 = sphi 0, %s43
    %s45 = sphi 0, %s43
    %s46 = sphi 0, %s45
    %s60 = sphi 0, %s46
    %s64 = sphi 0, %s64
    %s66 = sphi 0, %s64
    %s67 = sphi 0, %s66
    %s81 = sphi 0, %s67
    %s87 = sphi 0, %s89
    %s90 = sphi 0, %s87
    %s91 = sphi 0, %s90
    %s107 = sphi 0, %s91
  $region4: #{g_forward.7} parent=0 // loop_header_branch
    %12 = sbr.rel (%p10) target = $region8
  $region5: #{g_forward.7} parent=0 // loop_body
    %s14 = ssub.s32 %s9, 1
    %s15 = ssub.s32 %s9, 2
    %s16 = sadd.s32 %s9, 1
    %s17 = ssub.s32 %s9, %s16
    %p18 = scmp.eq.s32.totalorder %s17, 0
    %s20 = sadd.s32 %s19, 1
    %s21 = scalar_select %p18, %s19, %s20
    %p24 = pneg %p18
    %p25 = scmp.eq.s32.totalorder %s9, 15
    %p26 = por %p24, %p25
    %p27 = scmp.ne.s32.totalorder %s19, %s22
    %p28 = scmp.eq.s32.totalorder %s9, 0
    %p29 = por %p27, %p28
    %p30 = scmp.ne.s32.totalorder %s19, %s22
    %p31 = scmp.eq.s32.totalorder %s14, 15
    %p32 = por %p30, %p31
    %p33 = scmp.ne.s32.totalorder %s22, %s23
    %p34 = scmp.eq.s32.totalorder %s14, 0
    %p35 = por %p33, %p34
    %p36 = scmp.ne.s32.totalorder %s22, %s23
    %p37 = scmp.eq.s32.totalorder %s15, 15
    %p38 = por %p36, %p37
    %p40 = scmp.ne.s32.totalorder %s23, %s39
    %p41 = scmp.eq.s32.totalorder %s15, 0
    %p42 = por %p40, %p41
    %s44 = sadd.s32 %s43, 1
    %p47 = scmp.eq.s32.totalorder %s9, 15
    %p48 = scmp.ne.s32.totalorder %s43, %s45
    %p49 = scmp.eq.s32.totalorder %s9, 0
    %p50 = por %p48, %p49
    %p51 = scmp.ne.s32.totalorder %s43, %s45
    %p52 = scmp.eq.s32.totalorder %s14, 15
    %p53 = por %p51, %p52
    %p54 = scmp.ne.s32.totalorder %s45, %s46
    %p55 = scmp.eq.s32.totalorder %s14, 0
    %p56 = por %p54, %p55
    %p57 = scmp.ne.s32.totalorder %s45, %s46
    %p58 = scmp.eq.s32.totalorder %s15, 15
    %p59 = por %p57, %p58
    %p61 = scmp.ne.s32.totalorder %s46, %s60
    %p62 = scmp.eq.s32.totalorder %s15, 0
    %p63 = por %p61, %p62
    %s65 = sadd.s32 %s64, 1
    %p68 = scmp.eq.s32.totalorder %s9, 15
    %p69 = scmp.ne.s32.totalorder %s64, %s66
    %p70 = scmp.eq.s32.totalorder %s9, 0
    %p71 = por %p69, %p70
    %p72 = scmp.ne.s32.totalorder %s64, %s66
    %p73 = scmp.eq.s32.totalorder %s14, 15
    %p74 = por %p72, %p73
    %p75 = scmp.ne.s32.totalorder %s66, %s67
    %p76 = scmp.eq.s32.totalorder %s14, 0
    %p77 = por %p75, %p76
    %p78 = scmp.ne.s32.totalorder %s66, %s67
    %p79 = scmp.eq.s32.totalorder %s15, 15
    %p80 = por %p78, %p79
    %p82 = scmp.ne.s32.totalorder %s67, %s81
    %p83 = scmp.eq.s32.totalorder %s15, 0
    %p84 = por %p82, %p83
    %s85 = ssub.s32 %s9, %s16
    %p86 = scmp.eq.s32.totalorder %s85, 0
    %s88 = sadd.s32 %s87, 1
    %s89 = scalar_select %p86, %s87, %s88
    %p92 = pneg %p86
    %p93 = scmp.eq.s32.totalorder %s9, 15
    %p94 = por %p92, %p93
    %p95 = scmp.ne.s32.totalorder %s87, %s90
    %p96 = scmp.eq.s32.totalorder %s9, 0
    %p97 = por %p95, %p96
    %p98 = scmp.ne.s32.totalorder %s87, %s90
    %p99 = scmp.eq.s32.totalorder %s14, 15
    %p100 = por %p98, %p99
    %p101 = scmp.ne.s32.totalorder %s90, %s91
    %p102 = scmp.eq.s32.totalorder %s14, 0
    %p103 = por %p101, %p102
    %p104 = scmp.ne.s32.totalorder %s90, %s91
    %p105 = scmp.eq.s32.totalorder %s15, 15
    %p106 = por %p104, %p105
    %p108 = scmp.ne.s32.totalorder %s91, %s107
    %p109 = scmp.eq.s32.totalorder %s15, 0
    %p110 = por %p108, %p109
    %p111 = scmp.le.s32.totalorder 1, %s9
    %p112 = scmp.lt.s32.totalorder %s9, 17
    %p113 = pnand %p111, %p112
    %p114 = pneg %p113
    // Predicated region
    $region9: #{g_forward.7} parent=5 // pred_check
      _
    $region10: #{g_forward.7} parent=5 // pred_check_branch
      %116 = sbr.rel (%p113) target = $region12
    $region11: #{g_forward.7} parent=5 // pred_region
      %s117 = ssub.s32 %s9, 1
      // Predicated region
      $region13: #{g_forward.7} parent=11 // pred_check
        %p118 = pneg %p56
      $region14: #{g_forward.7} parent=11 // pred_check_branch
        %120 = sbr.rel (%p118) target = $region16
      $region15: #{g_forward.7} parent=11 // pred_region
        _
      $region16: #{g_forward.7} parent=11 // pred_fallthru
        _
      // Predicated region
      $region17: #{g_forward.7} parent=11 // pred_check
        %p121 = pneg %p77
      $region18: #{g_forward.7} parent=11 // pred_check_branch
        %123 = sbr.rel (%p121) target = $region20
      $region19: #{g_forward.7} parent=11 // pred_region
        _
      $region20: #{g_forward.7} parent=11 // pred_fallthru
        _
    $region12: #{g_forward.7} parent=5 // pred_fallthru
      _
    %p124 = scmp.lt.s32.totalorder %s9, 16
    // Predicated region
    $region21: #{g_forward.7} parent=5 // pred_check
      %p125 = pneg %p124
    $region22: #{g_forward.7} parent=5 // pred_check_branch
      %127 = sbr.rel (%p125) target = $region24
    $region23: #{g_forward.7} parent=5 // pred_region
      // Predicated region
      $region25: #{g_forward.7} parent=23 // pred_check
        %p128 = pneg %p29
      $region26: #{g_forward.7} parent=23 // pred_check_branch
        %130 = sbr.rel (%p128) target = $region28
      $region27: #{g_forward.7} parent=23 // pred_region
        %s131 = smul.u32 64, %s9
        %p132 = scmp.lt.s32.totalorder %s131, 1023
        %s133 = scalar_select %p132, %s131, 1023
        %s134 = smul.addr %s133, 4
        %s135 = scalar_lea.vmem %s0, %s134
        %s136 = smul.u32 64, %s9
      $region28: #{g_forward.7} parent=23 // pred_fallthru
        _
    $region24: #{g_forward.7} parent=5 // pred_fallthru
      _
    %p137 = scmp.le.s32.totalorder 1, %s9
    %p138 = scmp.lt.s32.totalorder %s9, 17
    %p139 = pnand %p137, %p138
    %p140 = pneg %p139
    // Predicated region
    $region29: #{g_forward.7} parent=5 // pred_check
      _
    $region30: #{g_forward.7} parent=5 // pred_check_branch
      %142 = sbr.rel (%p139) target = $region32
    $region31: #{g_forward.7} parent=5 // pred_region
      %s143 = ssub.s32 %s9, 1
      %s144 = smul.u32 64, %s14
      %p145 = scmp.lt.s32.totalorder %s144, 1023
      %s146 = scalar_select %p145, %s144, 1023
      %s147 = smul.addr %s146, 4
      %s148 = scalar_lea.vmem %s0, %s147
      %p149 = pneg %p35
      %p150 = pneg %p32
      %p151 = pneg %p56
      %p152 = pneg %p53
      %p153 = pneg %p77
      %p154 = pneg %p74
      %p155 = pneg %p103
      %p156 = pneg %p100
      %s157 = smul.u32 64, %s14
      %p158 = scmp.lt.s32.totalorder %s157, 1023
      %s159 = scalar_select %p158, %s157, 1023
      %s160 = smul.addr %s159, 4
      %s161 = scalar_lea.vmem %s3, %s160
      %s162 = smul.u32 64, %s14
      %p163 = scmp.lt.s32.totalorder %s162, 1023
      %s164 = scalar_select %p163, %s162, 1023
      %s165 = smul.addr %s164, 4
      %s166 = scalar_lea.vmem %s0, %s165
      %s167 = smul.u32 64, %s14
      %s168 = smul.u32 64, %s14
      %p169 = scmp.lt.s32.totalorder %s168, 1023
      %s170 = scalar_select %p169, %s168, 1023
      %s171 = smul.addr %s170, 4
      %s172 = scalar_lea.vmem %s3, %s171
      %s173 = smul.u32 64, %s14
      %v174 = vld [vmem:[%s166] sm:$0xf]
      %v175 = vld [vmem:[%s166 + $0x4] sm:$0xf]
      %v176 = vld [vmem:[%s166 + $0x8] sm:$0xf]
      %v177 = vld [vmem:[%s166 + $0xc] sm:$0xf]
      %v178 = vld [vmem:[%s166 + $0x10] sm:$0xf]
      %v179 = vld [vmem:[%s166 + $0x14] sm:$0xf]
      %v180 = vld [vmem:[%s166 + $0x18] sm:$0xf]
      %v181 = vld [vmem:[%s166 + $0x1c] sm:$0xf]
      %v182 = vld [vmem:[%s166 + $0x20] sm:$0xf]
      %v183 = vld [vmem:[%s166 + $0x24] sm:$0xf]
      %v184 = vld [vmem:[%s166 + $0x28] sm:$0xf]
      %v185 = vld [vmem:[%s166 + $0x2c] sm:$0xf]
      %v186 = vld [vmem:[%s166 + $0x30] sm:$0xf]
      %v187 = vld [vmem:[%s166 + $0x34] sm:$0xf]
      %v188 = vld [vmem:[%s166 + $0x38] sm:$0xf]
      %v189 = vld [vmem:[%s166 + $0x3c] sm:$0xf]
      %v190 = vld [vmem:[%s166 + $0x40] sm:$0xf]
      %v191 = vld [vmem:[%s166 + $0x44] sm:$0xf]
      %v192 = vld [vmem:[%s166 + $0x48] sm:$0xf]
      %v193 = vld [vmem:[%s166 + $0x4c] sm:$0xf]
      %v194 = vld [vmem:[%s166 + $0x50] sm:$0xf]
      %v195 = vld [vmem:[%s166 + $0x54] sm:$0xf]
      %v196 = vld [vmem:[%s166 + $0x58] sm:$0xf]
      %v197 = vld [vmem:[%s166 + $0x5c] sm:$0xf]
      %v198 = vld [vmem:[%s166 + $0x60] sm:$0xf]
      %v199 = vld [vmem:[%s166 + $0x64] sm:$0xf]
      %v200 = vld [vmem:[%s166 + $0x68] sm:$0xf]
      %v201 = vld [vmem:[%s166 + $0x6c] sm:$0xf]
      %v202 = vld [vmem:[%s166 + $0x70] sm:$0xf]
      %v203 = vld [vmem:[%s166 + $0x74] sm:$0xf]
      %v204 = vld [vmem:[%s166 + $0x78] sm:$0xf]
      %v205 = vld [vmem:[%s166 + $0x7c] sm:$0xf]
      %v206 = vld [vmem:[%s166 + $0x80] sm:$0xf]
      %v207 = vld [vmem:[%s166 + $0x84] sm:$0xf]
      %v208 = vld [vmem:[%s166 + $0x88] sm:$0xf]
      %v209 = vld [vmem:[%s166 + $0x8c] sm:$0xf]
      %v210 = vld [vmem:[%s166 + $0x90] sm:$0xf]
      %v211 = vld [vmem:[%s166 + $0x94] sm:$0xf]
      %v212 = vld [vmem:[%s166 + $0x98] sm:$0xf]
      %v213 = vld [vmem:[%s166 + $0x9c] sm:$0xf]
      %v214 = vld [vmem:[%s166 + $0xa0] sm:$0xf]
      %v215 = vld [vmem:[%s166 + $0xa4] sm:$0xf]
      %v216 = vld [vmem:[%s166 + $0xa8] sm:$0xf]
      %v217 = vld [vmem:[%s166 + $0xac] sm:$0xf]
      %v218 = vld [vmem:[%s166 + $0xb0] sm:$0xf]
      %v219 = vld [vmem:[%s166 + $0xb4] sm:$0xf]
      %v220 = vld [vmem:[%s166 + $0xb8] sm:$0xf]
      %v221 = vld [vmem:[%s166 + $0xbc] sm:$0xf]
      %v222 = vld [vmem:[%s166 + $0xc0] sm:$0xf]
      %v223 = vld [vmem:[%s166 + $0xc4] sm:$0xf]
      %v224 = vld [vmem:[%s166 + $0xc8] sm:$0xf]
      %v225 = vld [vmem:[%s166 + $0xcc] sm:$0xf]
      %v226 = vld [vmem:[%s166 + $0xd0] sm:$0xf]
      %v227 = vld [vmem:[%s166 + $0xd4] sm:$0xf]
      %v228 = vld [vmem:[%s166 + $0xd8] sm:$0xf]
      %v229 = vld [vmem:[%s166 + $0xdc] sm:$0xf]
      %v230 = vld [vmem:[%s166 + $0xe0] sm:$0xf]
      %v231 = vld [vmem:[%s166 + $0xe4] sm:$0xf]
      %v232 = vld [vmem:[%s166 + $0xe8] sm:$0xf]
      %v233 = vld [vmem:[%s166 + $0xec] sm:$0xf]
      %v234 = vld [vmem:[%s166 + $0xf0] sm:$0xf]
      %v235 = vld [vmem:[%s166 + $0xf4] sm:$0xf]
      %v236 = vld [vmem:[%s166 + $0xf8] sm:$0xf]
      %v237 = vld [vmem:[%s166 + $0xfc] sm:$0xf]
      %v238 = vunpack.c.l.bf16 %v174
      %v239 = vunpack.c.l.bf16 %v175
      %v240 = vunpack.c.l.bf16 %v176
      %v241 = vunpack.c.l.bf16 %v177
      %v242 = vunpack.c.l.bf16 %v178
      %v243 = vunpack.c.l.bf16 %v179
      %v244 = vunpack.c.l.bf16 %v180
      %v245 = vunpack.c.l.bf16 %v181
      %v246 = vunpack.c.l.bf16 %v182
      %v247 = vunpack.c.l.bf16 %v183
      %v248 = vunpack.c.l.bf16 %v184
      %v249 = vunpack.c.l.bf16 %v185
      %v250 = vunpack.c.l.bf16 %v186
      %v251 = vunpack.c.l.bf16 %v187
      %v252 = vunpack.c.l.bf16 %v188
      %v253 = vunpack.c.l.bf16 %v189
      %v254 = vunpack.c.l.bf16 %v190
      %v255 = vunpack.c.l.bf16 %v191
      %v256 = vunpack.c.l.bf16 %v192
      %v257 = vunpack.c.l.bf16 %v193
      %v258 = vunpack.c.l.bf16 %v194
      %v259 = vunpack.c.l.bf16 %v195
      %v260 = vunpack.c.l.bf16 %v196
      %v261 = vunpack.c.l.bf16 %v197
      %v262 = vunpack.c.l.bf16 %v198
      %v263 = vunpack.c.l.bf16 %v199
      %v264 = vunpack.c.l.bf16 %v200
      %v265 = vunpack.c.l.bf16 %v201
      %v266 = vunpack.c.l.bf16 %v202
      %v267 = vunpack.c.l.bf16 %v203
      %v268 = vunpack.c.l.bf16 %v204
      %v269 = vunpack.c.l.bf16 %v205
      %v270 = vunpack.c.l.bf16 %v206
      %v271 = vunpack.c.l.bf16 %v207
      %v272 = vunpack.c.l.bf16 %v208
      %v273 = vunpack.c.l.bf16 %v209
      %v274 = vunpack.c.l.bf16 %v210
      %v275 = vunpack.c.l.bf16 %v211
      %v276 = vunpack.c.l.bf16 %v212
      %v277 = vunpack.c.l.bf16 %v213
      %v278 = vunpack.c.l.bf16 %v214
      %v279 = vunpack.c.l.bf16 %v215
      %v280 = vunpack.c.l.bf16 %v216
      %v281 = vunpack.c.l.bf16 %v217
      %v282 = vunpack.c.l.bf16 %v218
      %v283 = vunpack.c.l.bf16 %v219
      %v284 = vunpack.c.l.bf16 %v220
      %v285 = vunpack.c.l.bf16 %v221
      %v286 = vunpack.c.l.bf16 %v222
      %v287 = vunpack.c.l.bf16 %v223
      %v288 = vunpack.c.l.bf16 %v224
      %v289 = vunpack.c.l.bf16 %v225
      %v290 = vunpack.c.l.bf16 %v226
      %v291 = vunpack.c.l.bf16 %v227
      %v292 = vunpack.c.l.bf16 %v228
      %v293 = vunpack.c.l.bf16 %v229
      %v294 = vunpack.c.l.bf16 %v230
      %v295 = vunpack.c.l.bf16 %v231
      %v296 = vunpack.c.l.bf16 %v232
      %v297 = vunpack.c.l.bf16 %v233
      %v298 = vunpack.c.l.bf16 %v234
      %v299 = vunpack.c.l.bf16 %v235
      %v300 = vunpack.c.l.bf16 %v236
      %v301 = vunpack.c.l.bf16 %v237
      %v302 = vld [vmem:[%s1] sm:$0x1]
      %v304 = vlaneseq
      %v305 = vshrl.u32 %v304, 7
      %v306 = vsub.s32 0, %v305
      %v307 = vrot.slane %v302, %v306
      %v309 = vmul.f32 %v238, %v307
      %v310 = vmul.f32 %v239, %v307
      %v311 = vmul.f32 %v240, %v307
      %v312 = vmul.f32 %v241, %v307
      %v313 = vmul.f32 %v242, %v307
      %v314 = vmul.f32 %v243, %v307
      %v315 = vmul.f32 %v244, %v307
      %v316 = vmul.f32 %v245, %v307
      %v317 = vmul.f32 %v246, %v307
      %v318 = vmul.f32 %v247, %v307
      %v319 = vmul.f32 %v248, %v307
      %v320 = vmul.f32 %v249, %v307
      %v321 = vmul.f32 %v250, %v307
      %v322 = vmul.f32 %v251, %v307
      %v323 = vmul.f32 %v252, %v307
      %v324 = vmul.f32 %v253, %v307
      %v325 = vmul.f32 %v254, %v307
      %v326 = vmul.f32 %v255, %v307
      %v327 = vmul.f32 %v256, %v307
      %v328 = vmul.f32 %v257, %v307
      %v329 = vmul.f32 %v258, %v307
      %v330 = vmul.f32 %v259, %v307
      %v331 = vmul.f32 %v260, %v307
      %v332 = vmul.f32 %v261, %v307
      %v333 = vmul.f32 %v262, %v307
      %v334 = vmul.f32 %v263, %v307
      %v335 = vmul.f32 %v264, %v307
      %v336 = vmul.f32 %v265, %v307
      %v337 = vmul.f32 %v266, %v307
      %v338 = vmul.f32 %v267, %v307
      %v339 = vmul.f32 %v268, %v307
      %v340 = vmul.f32 %v269, %v307
      %v341 = vmul.f32 %v270, %v307
      %v342 = vmul.f32 %v271, %v307
      %v343 = vmul.f32 %v272, %v307
      %v344 = vmul.f32 %v273, %v307
      %v345 = vmul.f32 %v274, %v307
      %v346 = vmul.f32 %v275, %v307
      %v347 = vmul.f32 %v276, %v307
      %v348 = vmul.f32 %v277, %v307
      %v349 = vmul.f32 %v278, %v307
      %v350 = vmul.f32 %v279, %v307
      %v351 = vmul.f32 %v280, %v307
      %v352 = vmul.f32 %v281, %v307
      %v353 = vmul.f32 %v282, %v307
      %v354 = vmul.f32 %v283, %v307
      %v355 = vmul.f32 %v284, %v307
      %v356 = vmul.f32 %v285, %v307
      %v357 = vmul.f32 %v286, %v307
      %v358 = vmul.f32 %v287, %v307
      %v359 = vmul.f32 %v288, %v307
      %v360 = vmul.f32 %v289, %v307
      %v361 = vmul.f32 %v290, %v307
      %v362 = vmul.f32 %v291, %v307
      %v363 = vmul.f32 %v292, %v307
      %v364 = vmul.f32 %v293, %v307
      %v365 = vmul.f32 %v294, %v307
      %v366 = vmul.f32 %v295, %v307
      %v367 = vmul.f32 %v296, %v307
      %v368 = vmul.f32 %v297, %v307
      %v369 = vmul.f32 %v298, %v307
      %v370 = vmul.f32 %v299, %v307
      %v371 = vmul.f32 %v300, %v307
      %v372 = vmul.f32 %v301, %v307
      %v373 = vld [vmem:[%s2] sm:$0x1]
      %v375 = vlaneseq
      %v376 = vshrl.u32 %v375, 7
      %v377 = vsub.s32 0, %v376
      %v378 = vrot.slane %v373, %v377
      %v380 = vadd.f32 %v309, %v378
      %v381 = vadd.f32 %v310, %v378
      %v382 = vadd.f32 %v311, %v378
      %v383 = vadd.f32 %v312, %v378
      %v384 = vadd.f32 %v313, %v378
      %v385 = vadd.f32 %v314, %v378
      %v386 = vadd.f32 %v315, %v378
      %v387 = vadd.f32 %v316, %v378
      %v388 = vadd.f32 %v317, %v378
      %v389 = vadd.f32 %v318, %v378
      %v390 = vadd.f32 %v319, %v378
      %v391 = vadd.f32 %v320, %v378
      %v392 = vadd.f32 %v321, %v378
      %v393 = vadd.f32 %v322, %v378
      %v394 = vadd.f32 %v323, %v378
      %v395 = vadd.f32 %v324, %v378
      %v396 = vadd.f32 %v325, %v378
      %v397 = vadd.f32 %v326, %v378
      %v398 = vadd.f32 %v327, %v378
      %v399 = vadd.f32 %v328, %v378
      %v400 = vadd.f32 %v329, %v378
      %v401 = vadd.f32 %v330, %v378
      %v402 = vadd.f32 %v331, %v378
      %v403 = vadd.f32 %v332, %v378
      %v404 = vadd.f32 %v333, %v378
      %v405 = vadd.f32 %v334, %v378
      %v406 = vadd.f32 %v335, %v378
      %v407 = vadd.f32 %v336, %v378
      %v408 = vadd.f32 %v337, %v378
      %v409 = vadd.f32 %v338, %v378
      %v410 = vadd.f32 %v339, %v378
      %v411 = vadd.f32 %v340, %v378
      %v412 = vadd.f32 %v341, %v378
      %v413 = vadd.f32 %v342, %v378
      %v414 = vadd.f32 %v343, %v378
      %v415 = vadd.f32 %v344, %v378
      %v416 = vadd.f32 %v345, %v378
      %v417 = vadd.f32 %v346, %v378
      %v418 = vadd.f32 %v347, %v378
      %v419 = vadd.f32 %v348, %v378
      %v420 = vadd.f32 %v349, %v378
      %v421 = vadd.f32 %v350, %v378
      %v422 = vadd.f32 %v351, %v378
      %v423 = vadd.f32 %v352, %v378
      %v424 = vadd.f32 %v353, %v378
      %v425 = vadd.f32 %v354, %v378
      %v426 = vadd.f32 %v355, %v378
      %v427 = vadd.f32 %v356, %v378
      %v428 = vadd.f32 %v357, %v378
      %v429 = vadd.f32 %v358, %v378
      %v430 = vadd.f32 %v359, %v378
      %v431 = vadd.f32 %v360, %v378
      %v432 = vadd.f32 %v361, %v378
      %v433 = vadd.f32 %v362, %v378
      %v434 = vadd.f32 %v363, %v378
      %v435 = vadd.f32 %v364, %v378
      %v436 = vadd.f32 %v365, %v378
      %v437 = vadd.f32 %v366, %v378
      %v438 = vadd.f32 %v367, %v378
      %v439 = vadd.f32 %v368, %v378
      %v440 = vadd.f32 %v369, %v378
      %v441 = vadd.f32 %v370, %v378
      %v442 = vadd.f32 %v371, %v378
      %v443 = vadd.f32 %v372, %v378
      %v444 = vpack.c.bf16 %v381, %v380
      %v445 = vpack.c.bf16 %v383, %v382
      %v446 = vpack.c.bf16 %v385, %v384
      %v447 = vpack.c.bf16 %v387, %v386
      %v448 = vpack.c.bf16 %v389, %v388
      %v449 = vpack.c.bf16 %v391, %v390
      %v450 = vpack.c.bf16 %v393, %v392
      %v451 = vpack.c.bf16 %v395, %v394
      %v452 = vpack.c.bf16 %v397, %v396
      %v453 = vpack.c.bf16 %v399, %v398
      %v454 = vpack.c.bf16 %v401, %v400
      %v455 = vpack.c.bf16 %v403, %v402
      %v456 = vpack.c.bf16 %v405, %v404
      %v457 = vpack.c.bf16 %v407, %v406
      %v458 = vpack.c.bf16 %v409, %v408
      %v459 = vpack.c.bf16 %v411, %v410
      %v460 = vpack.c.bf16 %v413, %v412
      %v461 = vpack.c.bf16 %v415, %v414
      %v462 = vpack.c.bf16 %v417, %v416
      %v463 = vpack.c.bf16 %v419, %v418
      %v464 = vpack.c.bf16 %v421, %v420
      %v465 = vpack.c.bf16 %v423, %v422
      %v466 = vpack.c.bf16 %v425, %v424
      %v467 = vpack.c.bf16 %v427, %v426
      %v468 = vpack.c.bf16 %v429, %v428
      %v469 = vpack.c.bf16 %v431, %v430
      %v470 = vpack.c.bf16 %v433, %v432
      %v471 = vpack.c.bf16 %v435, %v434
      %v472 = vpack.c.bf16 %v437, %v436
      %v473 = vpack.c.bf16 %v439, %v438
      %v474 = vpack.c.bf16 %v441, %v440
      %v475 = vpack.c.bf16 %v443, %v442
      %v508 = vunpack.c.l.b16 %v444
      %v509 = vunpack.c.h.b16 %v444
      %v510 = vunpack.c.l.b16 %v445
      %v511 = vunpack.c.h.b16 %v445
      %v512 = vunpack.c.l.b16 %v446
      %v513 = vunpack.c.h.b16 %v446
      %v514 = vunpack.c.l.b16 %v447
      %v515 = vunpack.c.h.b16 %v447
      %v516 = vunpack.c.l.b16 %v448
      %v517 = vunpack.c.h.b16 %v448
      %v518 = vunpack.c.l.b16 %v449
      %v519 = vunpack.c.h.b16 %v449
      %v520 = vunpack.c.l.b16 %v450
      %v521 = vunpack.c.h.b16 %v450
      %v522 = vunpack.c.l.b16 %v451
      %v523 = vunpack.c.h.b16 %v451
      %v524 = vunpack.c.l.b16 %v452
      %v525 = vunpack.c.h.b16 %v452
      %v526 = vunpack.c.l.b16 %v453
      %v527 = vunpack.c.h.b16 %v453
      %v528 = vunpack.c.l.b16 %v454
      %v529 = vunpack.c.h.b16 %v454
      %v530 = vunpack.c.l.b16 %v455
      %v531 = vunpack.c.h.b16 %v455
      %v532 = vunpack.c.l.b16 %v456
      %v533 = vunpack.c.h.b16 %v456
      %v534 = vunpack.c.l.b16 %v457
      %v535 = vunpack.c.h.b16 %v457
      %v536 = vunpack.c.l.b16 %v458
      %v537 = vunpack.c.h.b16 %v458
      %v538 = vunpack.c.l.b16 %v459
      %v539 = vunpack.c.h.b16 %v459
      %v540 = vunpack.c.l.b16 %v460
      %v541 = vunpack.c.h.b16 %v460
      %v542 = vunpack.c.l.b16 %v461
      %v543 = vunpack.c.h.b16 %v461
      %v544 = vunpack.c.l.b16 %v462
      %v545 = vunpack.c.h.b16 %v462
      %v546 = vunpack.c.l.b16 %v463
      %v547 = vunpack.c.h.b16 %v463
      %v548 = vunpack.c.l.b16 %v464
      %v549 = vunpack.c.h.b16 %v464
      %v550 = vunpack.c.l.b16 %v465
      %v551 = vunpack.c.h.b16 %v465
      %v552 = vunpack.c.l.b16 %v466
      %v553 = vunpack.c.h.b16 %v466
      %v554 = vunpack.c.l.b16 %v467
      %v555 = vunpack.c.h.b16 %v467
      %v556 = vunpack.c.l.b16 %v468
      %v557 = vunpack.c.h.b16 %v468
      %v558 = vunpack.c.l.b16 %v469
      %v559 = vunpack.c.h.b16 %v469
      %v560 = vunpack.c.l.b16 %v470
      %v561 = vunpack.c.h.b16 %v470
      %v562 = vunpack.c.l.b16 %v471
      %v563 = vunpack.c.h.b16 %v471
      %v564 = vunpack.c.l.b16 %v472
      %v565 = vunpack.c.h.b16 %v472
      %v566 = vunpack.c.l.b16 %v473
      %v567 = vunpack.c.h.b16 %v473
      %v568 = vunpack.c.l.b16 %v474
      %v569 = vunpack.c.h.b16 %v474
      %v570 = vunpack.c.l.b16 %v475
      %v571 = vunpack.c.h.b16 %v475
      %v572 = vpack.c.b16 %v508, %v508
      %v573 = vpack.c.b16 %v509, %v509
      %v574 = vpack.c.b16 %v510, %v510
      %v575 = vpack.c.b16 %v511, %v511
      %v576 = vpack.c.b16 %v512, %v512
      %v577 = vpack.c.b16 %v513, %v513
      %v578 = vpack.c.b16 %v514, %v514
      %v579 = vpack.c.b16 %v515, %v515
      %v580 = vpack.c.b16 %v516, %v516
      %v581 = vpack.c.b16 %v517, %v517
      %v582 = vpack.c.b16 %v518, %v518
      %v583 = vpack.c.b16 %v519, %v519
      %v584 = vpack.c.b16 %v520, %v520
      %v585 = vpack.c.b16 %v521, %v521
      %v586 = vpack.c.b16 %v522, %v522
      %v587 = vpack.c.b16 %v523, %v523
      %v588 = vpack.c.b16 %v524, %v524
      %v589 = vpack.c.b16 %v525, %v525
      %v590 = vpack.c.b16 %v526, %v526
      %v591 = vpack.c.b16 %v527, %v527
      %v592 = vpack.c.b16 %v528, %v528
      %v593 = vpack.c.b16 %v529, %v529
      %v594 = vpack.c.b16 %v530, %v530
      %v595 = vpack.c.b16 %v531, %v531
      %v596 = vpack.c.b16 %v532, %v532
      %v597 = vpack.c.b16 %v533, %v533
      %v598 = vpack.c.b16 %v534, %v534
      %v599 = vpack.c.b16 %v535, %v535
      %v600 = vpack.c.b16 %v536, %v536
      %v601 = vpack.c.b16 %v537, %v537
      %v602 = vpack.c.b16 %v538, %v538
      %v603 = vpack.c.b16 %v539, %v539
      %v604 = vpack.c.b16 %v540, %v540
      %v605 = vpack.c.b16 %v541, %v541
      %v606 = vpack.c.b16 %v542, %v542
      %v607 = vpack.c.b16 %v543, %v543
      %v608 = vpack.c.b16 %v544, %v544
      %v609 = vpack.c.b16 %v545, %v545
      %v610 = vpack.c.b16 %v546, %v546
      %v611 = vpack.c.b16 %v547, %v547
      %v612 = vpack.c.b16 %v548, %v548
      %v613 = vpack.c.b16 %v549, %v549
      %v614 = vpack.c.b16 %v550, %v550
      %v615 = vpack.c.b16 %v551, %v551
      %v616 = vpack.c.b16 %v552, %v552
      %v617 = vpack.c.b16 %v553, %v553
      %v618 = vpack.c.b16 %v554, %v554
      %v619 = vpack.c.b16 %v555, %v555
      %v620 = vpack.c.b16 %v556, %v556
      %v621 = vpack.c.b16 %v557, %v557
      %v622 = vpack.c.b16 %v558, %v558
      %v623 = vpack.c.b16 %v559, %v559
      %v624 = vpack.c.b16 %v560, %v560
      %v625 = vpack.c.b16 %v561, %v561
      %v626 = vpack.c.b16 %v562, %v562
      %v627 = vpack.c.b16 %v563, %v563
      %v628 = vpack.c.b16 %v564, %v564
      %v629 = vpack.c.b16 %v565, %v565
      %v630 = vpack.c.b16 %v566, %v566
      %v631 = vpack.c.b16 %v567, %v567
      %v632 = vpack.c.b16 %v568, %v568
      %v633 = vpack.c.b16 %v569, %v569
      %v634 = vpack.c.b16 %v570, %v570
      %v635 = vpack.c.b16 %v571, %v571
      %700 = vst [vmem:[%s172] sm:$0xf] %v572
      %701 = vst [vmem:[%s172 + $0x4] sm:$0xf] %v573
      %702 = vst [vmem:[%s172 + $0x8] sm:$0xf] %v574
      %703 = vst [vmem:[%s172 + $0xc] sm:$0xf] %v575
      %704 = vst [vmem:[%s172 + $0x10] sm:$0xf] %v576
      %705 = vst [vmem:[%s172 + $0x14] sm:$0xf] %v577
      %706 = vst [vmem:[%s172 + $0x18] sm:$0xf] %v578
      %707 = vst [vmem:[%s172 + $0x1c] sm:$0xf] %v579
      %708 = vst [vmem:[%s172 + $0x20] sm:$0xf] %v580
      %709 = vst [vmem:[%s172 + $0x24] sm:$0xf] %v581
      %710 = vst [vmem:[%s172 + $0x28] sm:$0xf] %v582
      %711 = vst [vmem:[%s172 + $0x2c] sm:$0xf] %v583
      %712 = vst [vmem:[%s172 + $0x30] sm:$0xf] %v584
      %713 = vst [vmem:[%s172 + $0x34] sm:$0xf] %v585
      %714 = vst [vmem:[%s172 + $0x38] sm:$0xf] %v586
      %715 = vst [vmem:[%s172 + $0x3c] sm:$0xf] %v587
      %716 = vst [vmem:[%s172 + $0x40] sm:$0xf] %v588
      %717 = vst [vmem:[%s172 + $0x44] sm:$0xf] %v589
      %718 = vst [vmem:[%s172 + $0x48] sm:$0xf] %v590
      %719 = vst [vmem:[%s172 + $0x4c] sm:$0xf] %v591
      %720 = vst [vmem:[%s172 + $0x50] sm:$0xf] %v592
      %721 = vst [vmem:[%s172 + $0x54] sm:$0xf] %v593
      %722 = vst [vmem:[%s172 + $0x58] sm:$0xf] %v594
      %723 = vst [vmem:[%s172 + $0x5c] sm:$0xf] %v595
      %724 = vst [vmem:[%s172 + $0x60] sm:$0xf] %v596
      %725 = vst [vmem:[%s172 + $0x64] sm:$0xf] %v597
      %726 = vst [vmem:[%s172 + $0x68] sm:$0xf] %v598
      %727 = vst [vmem:[%s172 + $0x6c] sm:$0xf] %v599
      %728 = vst [vmem:[%s172 + $0x70] sm:$0xf] %v600
      %729 = vst [vmem:[%s172 + $0x74] sm:$0xf] %v601
      %730 = vst [vmem:[%s172 + $0x78] sm:$0xf] %v602
      %731 = vst [vmem:[%s172 + $0x7c] sm:$0xf] %v603
      %732 = vst [vmem:[%s172 + $0x80] sm:$0xf] %v604
      %733 = vst [vmem:[%s172 + $0x84] sm:$0xf] %v605
      %734 = vst [vmem:[%s172 + $0x88] sm:$0xf] %v606
      %735 = vst [vmem:[%s172 + $0x8c] sm:$0xf] %v607
      %736 = vst [vmem:[%s172 + $0x90] sm:$0xf] %v608
      %737 = vst [vmem:[%s172 + $0x94] sm:$0xf] %v609
      %738 = vst [vmem:[%s172 + $0x98] sm:$0xf] %v610
      %739 = vst [vmem:[%s172 + $0x9c] sm:$0xf] %v611
      %740 = vst [vmem:[%s172 + $0xa0] sm:$0xf] %v612
      %741 = vst [vmem:[%s172 + $0xa4] sm:$0xf] %v613
      %742 = vst [vmem:[%s172 + $0xa8] sm:$0xf] %v614
      %743 = vst [vmem:[%s172 + $0xac] sm:$0xf] %v615
      %744 = vst [vmem:[%s172 + $0xb0] sm:$0xf] %v616
      %745 = vst [vmem:[%s172 + $0xb4] sm:$0xf] %v617
      %746 = vst [vmem:[%s172 + $0xb8] sm:$0xf] %v618
      %747 = vst [vmem:[%s172 + $0xbc] sm:$0xf] %v619
      %748 = vst [vmem:[%s172 + $0xc0] sm:$0xf] %v620
      %749 = vst [vmem:[%s172 + $0xc4] sm:$0xf] %v621
      %750 = vst [vmem:[%s172 + $0xc8] sm:$0xf] %v622
      %751 = vst [vmem:[%s172 + $0xcc] sm:$0xf] %v623
      %752 = vst [vmem:[%s172 + $0xd0] sm:$0xf] %v624
      %753 = vst [vmem:[%s172 + $0xd4] sm:$0xf] %v625
      %754 = vst [vmem:[%s172 + $0xd8] sm:$0xf] %v626
      %755 = vst [vmem:[%s172 + $0xdc] sm:$0xf] %v627
      %756 = vst [vmem:[%s172 + $0xe0] sm:$0xf] %v628
      %757 = vst [vmem:[%s172 + $0xe4] sm:$0xf] %v629
      %758 = vst [vmem:[%s172 + $0xe8] sm:$0xf] %v630
      %759 = vst [vmem:[%s172 + $0xec] sm:$0xf] %v631
      %760 = vst [vmem:[%s172 + $0xf0] sm:$0xf] %v632
      %761 = vst [vmem:[%s172 + $0xf4] sm:$0xf] %v633
      %762 = vst [vmem:[%s172 + $0xf8] sm:$0xf] %v634
      %763 = vst [vmem:[%s172 + $0xfc] sm:$0xf] %v635
      %s764 = smul.u32 64, %s14
      %p765 = scmp.lt.s32.totalorder %s764, 1023
      %s766 = scalar_select %p765, %s764, 1023
      %s767 = smul.addr %s766, 4
      %s768 = scalar_lea.vmem %s3, %s767
      // Predicated region
      $region33: #{g_forward.7} parent=31 // pred_check
        %p769 = pneg %p100
      $region34: #{g_forward.7} parent=31 // pred_check_branch
        %771 = sbr.rel (%p769) target = $region36
      $region35: #{g_forward.7} parent=31 // pred_region
        %s772 = smul.u32 64, %s14
      $region36: #{g_forward.7} parent=31 // pred_fallthru
        _
    $region32: #{g_forward.7} parent=5 // pred_fallthru
      _
    %p773 = scmp.le.s32.totalorder 2, %s9
    // Predicated region
    $region37: #{g_forward.7} parent=5 // pred_check
      %p774 = pneg %p773
    $region38: #{g_forward.7} parent=5 // pred_check_branch
      %776 = sbr.rel (%p774) target = $region40
    $region39: #{g_forward.7} parent=5 // pred_region
      %s777 = ssub.s32 %s9, 2
      // Predicated region
      $region41: #{g_forward.7} parent=39 // pred_check
        %p778 = pneg %p106
      $region42: #{g_forward.7} parent=39 // pred_check_branch
        %780 = sbr.rel (%p778) target = $region44
      $region43: #{g_forward.7} parent=39 // pred_region
        %s781 = smul.u32 64, %s15
        %p782 = scmp.lt.s32.totalorder %s781, 1023
        %s783 = scalar_select %p782, %s781, 1023
        %s784 = smul.addr %s783, 4
        %s785 = scalar_lea.vmem %s3, %s784
      $region44: #{g_forward.7} parent=39 // pred_fallthru
        _
    $region40: #{g_forward.7} parent=5 // pred_fallthru
      _
  $region6: #{g_forward.7} parent=0 // loop_footer
    %s13 = sadd.s32 1, %s9
  $region7: #{g_forward.7} parent=0 // loop_footer_branch
    %8 = sbr.rel target = $region3
  $region8: #{g_forward.7} parent=0 // loop_exit
    _

// kernel: g_forward.9
$region0: #{g_forward.9}
  #allocation0 [shape = 'u32[]', space=smem, size = 0x4, offset = 0x4, fixed_abs, tag = 'smem constant byte address 0x4 - core index']
  #allocation1 [shape = 'u32[144,128]{1,0:T(1,128)}', space=vmem, size = 0x12000, scoped, tag = 'internal scratch']
  %s0 = inlined_call_operand.vmem [shape: bf16[8192,128], index: 0, kind: input, shape index: {}]
  %s1 = inlined_call_operand.vmem [shape: f32[1,128], index: 1, kind: input, shape index: {}]
  %s2 = inlined_call_operand.vmem [shape: f32[1,128], index: 2, kind: input, shape index: {}]
  %s3 = inlined_call_operand.vmem [shape: f32[8192,128], index: 3, kind: output, shape index: {}]
  %s4 = sld [smem:[#allocation0]]
  $region45: #{g_forward.9} parent=0
    _
  %s6 = ssub.s32 1, %s4
  %s7 = scalar_select 0, %s6, %s4
  loop: start=0, step=1, limit=18
  $region2: #{g_forward.9} parent=0 // loop_pre_header
    _
  $region3: #{g_forward.9} parent=0 // loop_header
    %s9 = sphi 0, %s13
    %p10 = scmp.ge.s32.totalorder %s9, 18
    %s19 = sphi 0, %s21
    %s22 = sphi 0, %s19
    %s23 = sphi 0, %s22
    %s39 = sphi 0, %s23
    %s43 = sphi 0, %s43
    %s45 = sphi 0, %s43
    %s46 = sphi 0, %s45
    %s60 = sphi 0, %s46
    %s64 = sphi 0, %s64
    %s66 = sphi 0, %s64
    %s67 = sphi 0, %s66
    %s81 = sphi 0, %s67
    %s87 = sphi 0, %s89
    %s90 = sphi 0, %s87
    %s91 = sphi 0, %s90
    %s107 = sphi 0, %s91
  $region4: #{g_forward.9} parent=0 // loop_header_branch
    %12 = sbr.rel (%p10) target = $region8
  $region5: #{g_forward.9} parent=0 // loop_body
    %s14 = ssub.s32 %s9, 1
    %s15 = ssub.s32 %s9, 2
    %s16 = sadd.s32 %s9, 1
    %s17 = ssub.s32 %s9, %s16
    %p18 = scmp.eq.s32.totalorder %s17, 0
    %s20 = sadd.s32 %s19, 1
    %s21 = scalar_select %p18, %s19, %s20
    %p24 = pneg %p18
    %p25 = scmp.eq.s32.totalorder %s9, 15
    %p26 = por %p24, %p25
    %p27 = scmp.ne.s32.totalorder %s19, %s22
    %p28 = scmp.eq.s32.totalorder %s9, 0
    %p29 = por %p27, %p28
    %p30 = scmp.ne.s32.totalorder %s19, %s22
    %p31 = scmp.eq.s32.totalorder %s14, 15
    %p32 = por %p30, %p31
    %p33 = scmp.ne.s32.totalorder %s22, %s23
    %p34 = scmp.eq.s32.totalorder %s14, 0
    %p35 = por %p33, %p34
    %p36 = scmp.ne.s32.totalorder %s22, %s23
    %p37 = scmp.eq.s32.totalorder %s15, 15
    %p38 = por %p36, %p37
    %p40 = scmp.ne.s32.totalorder %s23, %s39
    %p41 = scmp.eq.s32.totalorder %s15, 0
    %p42 = por %p40, %p41
    %s44 = sadd.s32 %s43, 1
    %p47 = scmp.eq.s32.totalorder %s9, 15
    %p48 = scmp.ne.s32.totalorder %s43, %s45
    %p49 = scmp.eq.s32.totalorder %s9, 0
    %p50 = por %p48, %p49
    %p51 = scmp.ne.s32.totalorder %s43, %s45
    %p52 = scmp.eq.s32.totalorder %s14, 15
    %p53 = por %p51, %p52
    %p54 = scmp.ne.s32.totalorder %s45, %s46
    %p55 = scmp.eq.s32.totalorder %s14, 0
    %p56 = por %p54, %p55
    %p57 = scmp.ne.s32.totalorder %s45, %s46
    %p58 = scmp.eq.s32.totalorder %s15, 15
    %p59 = por %p57, %p58
    %p61 = scmp.ne.s32.totalorder %s46, %s60
    %p62 = scmp.eq.s32.totalorder %s15, 0
    %p63 = por %p61, %p62
    %s65 = sadd.s32 %s64, 1
    %p68 = scmp.eq.s32.totalorder %s9, 15
    %p69 = scmp.ne.s32.totalorder %s64, %s66
    %p70 = scmp.eq.s32.totalorder %s9, 0
    %p71 = por %p69, %p70
    %p72 = scmp.ne.s32.totalorder %s64, %s66
    %p73 = scmp.eq.s32.totalorder %s14, 15
    %p74 = por %p72, %p73
    %p75 = scmp.ne.s32.totalorder %s66, %s67
    %p76 = scmp.eq.s32.totalorder %s14, 0
    %p77 = por %p75, %p76
    %p78 = scmp.ne.s32.totalorder %s66, %s67
    %p79 = scmp.eq.s32.totalorder %s15, 15
    %p80 = por %p78, %p79
    %p82 = scmp.ne.s32.totalorder %s67, %s81
    %p83 = scmp.eq.s32.totalorder %s15, 0
    %p84 = por %p82, %p83
    %s85 = ssub.s32 %s9, %s16
    %p86 = scmp.eq.s32.totalorder %s85, 0
    %s88 = sadd.s32 %s87, 1
    %s89 = scalar_select %p86, %s87, %s88
    %p92 = pneg %p86
    %p93 = scmp.eq.s32.totalorder %s9, 15
    %p94 = por %p92, %p93
    %p95 = scmp.ne.s32.totalorder %s87, %s90
    %p96 = scmp.eq.s32.totalorder %s9, 0
    %p97 = por %p95, %p96
    %p98 = scmp.ne.s32.totalorder %s87, %s90
    %p99 = scmp.eq.s32.totalorder %s14, 15
    %p100 = por %p98, %p99
    %p101 = scmp.ne.s32.totalorder %s90, %s91
    %p102 = scmp.eq.s32.totalorder %s14, 0
    %p103 = por %p101, %p102
    %p104 = scmp.ne.s32.totalorder %s90, %s91
    %p105 = scmp.eq.s32.totalorder %s15, 15
    %p106 = por %p104, %p105
    %p108 = scmp.ne.s32.totalorder %s91, %s107
    %p109 = scmp.eq.s32.totalorder %s15, 0
    %p110 = por %p108, %p109
    %p111 = scmp.le.s32.totalorder 1, %s9
    %p112 = scmp.lt.s32.totalorder %s9, 17
    %p113 = pnand %p111, %p112
    %p114 = pneg %p113
    // Predicated region
    $region9: #{g_forward.9} parent=5 // pred_check
      _
    $region10: #{g_forward.9} parent=5 // pred_check_branch
      %116 = sbr.rel (%p113) target = $region12
    $region11: #{g_forward.9} parent=5 // pred_region
      %s117 = ssub.s32 %s9, 1
      // Predicated region
      $region13: #{g_forward.9} parent=11 // pred_check
        %p118 = pneg %p56
      $region14: #{g_forward.9} parent=11 // pred_check_branch
        %120 = sbr.rel (%p118) target = $region16
      $region15: #{g_forward.9} parent=11 // pred_region
        _
      $region16: #{g_forward.9} parent=11 // pred_fallthru
        _
      // Predicated region
      $region17: #{g_forward.9} parent=11 // pred_check
        %p121 = pneg %p77
      $region18: #{g_forward.9} parent=11 // pred_check_branch
        %123 = sbr.rel (%p121) target = $region20
      $region19: #{g_forward.9} parent=11 // pred_region
        _
      $region20: #{g_forward.9} parent=11 // pred_fallthru
        _
    $region12: #{g_forward.9} parent=5 // pred_fallthru
      _
    %p124 = scmp.lt.s32.totalorder %s9, 16
    // Predicated region
    $region21: #{g_forward.9} parent=5 // pred_check
      %p125 = pneg %p124
    $region22: #{g_forward.9} parent=5 // pred_check_branch
      %127 = sbr.rel (%p125) target = $region24
    $region23: #{g_forward.9} parent=5 // pred_region
      // Predicated region
      $region25: #{g_forward.9} parent=23 // pred_check
        %p128 = pneg %p29
      $region26: #{g_forward.9} parent=23 // pred_check_branch
        %130 = sbr.rel (%p128) target = $region28
      $region27: #{g_forward.9} parent=23 // pred_region
        %s131 = smul.u32 64, %s9
        %p132 = scmp.lt.s32.totalorder %s131, 1023
        %s133 = scalar_select %p132, %s131, 1023
        %s134 = smul.addr %s133, 4
        %s135 = scalar_lea.vmem %s0, %s134
        %s136 = smul.u32 64, %s9
      $region28: #{g_forward.9} parent=23 // pred_fallthru
        _
    $region24: #{g_forward.9} parent=5 // pred_fallthru
      _
    %p137 = scmp.le.s32.totalorder 1, %s9
    %p138 = scmp.lt.s32.totalorder %s9, 17
    %p139 = pnand %p137, %p138
    %p140 = pneg %p139
    // Predicated region
    $region29: #{g_forward.9} parent=5 // pred_check
      _
    $region30: #{g_forward.9} parent=5 // pred_check_branch
      %142 = sbr.rel (%p139) target = $region32
    $region31: #{g_forward.9} parent=5 // pred_region
      %s143 = ssub.s32 %s9, 1
      %s144 = smul.u32 64, %s14
      %p145 = scmp.lt.s32.totalorder %s144, 1023
      %s146 = scalar_select %p145, %s144, 1023
      %s147 = smul.addr %s146, 4
      %s148 = scalar_lea.vmem %s0, %s147
      %p149 = pneg %p35
      %p150 = pneg %p32
      %p151 = pneg %p56
      %p152 = pneg %p53
      %p153 = pneg %p77
      %p154 = pneg %p74
      %p155 = pneg %p103
      %p156 = pneg %p100
      %s157 = smul.u32 64, %s14
      %p158 = scmp.lt.s32.totalorder %s157, 1023
      %s159 = scalar_select %p158, %s157, 1023
      %s160 = smul.addr %s159, 8
      %s161 = scalar_lea.vmem %s3, %s160
      %s162 = smul.u32 64, %s14
      %p163 = scmp.lt.s32.totalorder %s162, 1023
      %s164 = scalar_select %p163, %s162, 1023
      %s165 = smul.addr %s164, 4
      %s166 = scalar_lea.vmem %s0, %s165
      %s167 = smul.u32 64, %s14
      %s168 = smul.u32 64, %s14
      %p169 = scmp.lt.s32.totalorder %s168, 1023
      %s170 = scalar_select %p169, %s168, 1023
      %s171 = smul.addr %s170, 8
      %s172 = scalar_lea.vmem %s3, %s171
      %s173 = smul.u32 64, %s14
      %v174 = vld [vmem:[%s166] sm:$0xf]
      %v175 = vld [vmem:[%s166 + $0x4] sm:$0xf]
      %v176 = vld [vmem:[%s166 + $0x8] sm:$0xf]
      %v177 = vld [vmem:[%s166 + $0xc] sm:$0xf]
      %v178 = vld [vmem:[%s166 + $0x10] sm:$0xf]
      %v179 = vld [vmem:[%s166 + $0x14] sm:$0xf]
      %v180 = vld [vmem:[%s166 + $0x18] sm:$0xf]
      %v181 = vld [vmem:[%s166 + $0x1c] sm:$0xf]
      %v182 = vld [vmem:[%s166 + $0x20] sm:$0xf]
      %v183 = vld [vmem:[%s166 + $0x24] sm:$0xf]
      %v184 = vld [vmem:[%s166 + $0x28] sm:$0xf]
      %v185 = vld [vmem:[%s166 + $0x2c] sm:$0xf]
      %v186 = vld [vmem:[%s166 + $0x30] sm:$0xf]
      %v187 = vld [vmem:[%s166 + $0x34] sm:$0xf]
      %v188 = vld [vmem:[%s166 + $0x38] sm:$0xf]
      %v189 = vld [vmem:[%s166 + $0x3c] sm:$0xf]
      %v190 = vld [vmem:[%s166 + $0x40] sm:$0xf]
      %v191 = vld [vmem:[%s166 + $0x44] sm:$0xf]
      %v192 = vld [vmem:[%s166 + $0x48] sm:$0xf]
      %v193 = vld [vmem:[%s166 + $0x4c] sm:$0xf]
      %v194 = vld [vmem:[%s166 + $0x50] sm:$0xf]
      %v195 = vld [vmem:[%s166 + $0x54] sm:$0xf]
      %v196 = vld [vmem:[%s166 + $0x58] sm:$0xf]
      %v197 = vld [vmem:[%s166 + $0x5c] sm:$0xf]
      %v198 = vld [vmem:[%s166 + $0x60] sm:$0xf]
      %v199 = vld [vmem:[%s166 + $0x64] sm:$0xf]
      %v200 = vld [vmem:[%s166 + $0x68] sm:$0xf]
      %v201 = vld [vmem:[%s166 + $0x6c] sm:$0xf]
      %v202 = vld [vmem:[%s166 + $0x70] sm:$0xf]
      %v203 = vld [vmem:[%s166 + $0x74] sm:$0xf]
      %v204 = vld [vmem:[%s166 + $0x78] sm:$0xf]
      %v205 = vld [vmem:[%s166 + $0x7c] sm:$0xf]
      %v206 = vld [vmem:[%s166 + $0x80] sm:$0xf]
      %v207 = vld [vmem:[%s166 + $0x84] sm:$0xf]
      %v208 = vld [vmem:[%s166 + $0x88] sm:$0xf]
      %v209 = vld [vmem:[%s166 + $0x8c] sm:$0xf]
      %v210 = vld [vmem:[%s166 + $0x90] sm:$0xf]
      %v211 = vld [vmem:[%s166 + $0x94] sm:$0xf]
      %v212 = vld [vmem:[%s166 + $0x98] sm:$0xf]
      %v213 = vld [vmem:[%s166 + $0x9c] sm:$0xf]
      %v214 = vld [vmem:[%s166 + $0xa0] sm:$0xf]
      %v215 = vld [vmem:[%s166 + $0xa4] sm:$0xf]
      %v216 = vld [vmem:[%s166 + $0xa8] sm:$0xf]
      %v217 = vld [vmem:[%s166 + $0xac] sm:$0xf]
      %v218 = vld [vmem:[%s166 + $0xb0] sm:$0xf]
      %v219 = vld [vmem:[%s166 + $0xb4] sm:$0xf]
      %v220 = vld [vmem:[%s166 + $0xb8] sm:$0xf]
      %v221 = vld [vmem:[%s166 + $0xbc] sm:$0xf]
      %v222 = vld [vmem:[%s166 + $0xc0] sm:$0xf]
      %v223 = vld [vmem:[%s166 + $0xc4] sm:$0xf]
      %v224 = vld [vmem:[%s166 + $0xc8] sm:$0xf]
      %v225 = vld [vmem:[%s166 + $0xcc] sm:$0xf]
      %v226 = vld [vmem:[%s166 + $0xd0] sm:$0xf]
      %v227 = vld [vmem:[%s166 + $0xd4] sm:$0xf]
      %v228 = vld [vmem:[%s166 + $0xd8] sm:$0xf]
      %v229 = vld [vmem:[%s166 + $0xdc] sm:$0xf]
      %v230 = vld [vmem:[%s166 + $0xe0] sm:$0xf]
      %v231 = vld [vmem:[%s166 + $0xe4] sm:$0xf]
      %v232 = vld [vmem:[%s166 + $0xe8] sm:$0xf]
      %v233 = vld [vmem:[%s166 + $0xec] sm:$0xf]
      %v234 = vld [vmem:[%s166 + $0xf0] sm:$0xf]
      %v235 = vld [vmem:[%s166 + $0xf4] sm:$0xf]
      %v236 = vld [vmem:[%s166 + $0xf8] sm:$0xf]
      %v237 = vld [vmem:[%s166 + $0xfc] sm:$0xf]
      %v238 = vunpack.c.l.bf16 %v174
      %v239 = vunpack.c.l.bf16 %v175
      %v240 = vunpack.c.l.bf16 %v176
      %v241 = vunpack.c.l.bf16 %v177
      %v242 = vunpack.c.l.bf16 %v178
      %v243 = vunpack.c.l.bf16 %v179
      %v244 = vunpack.c.l.bf16 %v180
      %v245 = vunpack.c.l.bf16 %v181
      %v246 = vunpack.c.l.bf16 %v182
      %v247 = vunpack.c.l.bf16 %v183
      %v248 = vunpack.c.l.bf16 %v184
      %v249 = vunpack.c.l.bf16 %v185
      %v250 = vunpack.c.l.bf16 %v186
      %v251 = vunpack.c.l.bf16 %v187
      %v252 = vunpack.c.l.bf16 %v188
      %v253 = vunpack.c.l.bf16 %v189
      %v254 = vunpack.c.l.bf16 %v190
      %v255 = vunpack.c.l.bf16 %v191
      %v256 = vunpack.c.l.bf16 %v192
      %v257 = vunpack.c.l.bf16 %v193
      %v258 = vunpack.c.l.bf16 %v194
      %v259 = vunpack.c.l.bf16 %v195
      %v260 = vunpack.c.l.bf16 %v196
      %v261 = vunpack.c.l.bf16 %v197
      %v262 = vunpack.c.l.bf16 %v198
      %v263 = vunpack.c.l.bf16 %v199
      %v264 = vunpack.c.l.bf16 %v200
      %v265 = vunpack.c.l.bf16 %v201
      %v266 = vunpack.c.l.bf16 %v202
      %v267 = vunpack.c.l.bf16 %v203
      %v268 = vunpack.c.l.bf16 %v204
      %v269 = vunpack.c.l.bf16 %v205
      %v270 = vunpack.c.l.bf16 %v206
      %v271 = vunpack.c.l.bf16 %v207
      %v272 = vunpack.c.l.bf16 %v208
      %v273 = vunpack.c.l.bf16 %v209
      %v274 = vunpack.c.l.bf16 %v210
      %v275 = vunpack.c.l.bf16 %v211
      %v276 = vunpack.c.l.bf16 %v212
      %v277 = vunpack.c.l.bf16 %v213
      %v278 = vunpack.c.l.bf16 %v214
      %v279 = vunpack.c.l.bf16 %v215
      %v280 = vunpack.c.l.bf16 %v216
      %v281 = vunpack.c.l.bf16 %v217
      %v282 = vunpack.c.l.bf16 %v218
      %v283 = vunpack.c.l.bf16 %v219
      %v284 = vunpack.c.l.bf16 %v220
      %v285 = vunpack.c.l.bf16 %v221
      %v286 = vunpack.c.l.bf16 %v222
      %v287 = vunpack.c.l.bf16 %v223
      %v288 = vunpack.c.l.bf16 %v224
      %v289 = vunpack.c.l.bf16 %v225
      %v290 = vunpack.c.l.bf16 %v226
      %v291 = vunpack.c.l.bf16 %v227
      %v292 = vunpack.c.l.bf16 %v228
      %v293 = vunpack.c.l.bf16 %v229
      %v294 = vunpack.c.l.bf16 %v230
      %v295 = vunpack.c.l.bf16 %v231
      %v296 = vunpack.c.l.bf16 %v232
      %v297 = vunpack.c.l.bf16 %v233
      %v298 = vunpack.c.l.bf16 %v234
      %v299 = vunpack.c.l.bf16 %v235
      %v300 = vunpack.c.l.bf16 %v236
      %v301 = vunpack.c.l.bf16 %v237
      %v302 = vld [vmem:[%s1] sm:$0x1]
      %v304 = vlaneseq
      %v305 = vshrl.u32 %v304, 7
      %v306 = vsub.s32 0, %v305
      %v307 = vrot.slane %v302, %v306
      %v309 = vmul.f32 %v238, %v307
      %v310 = vmul.f32 %v239, %v307
      %v311 = vmul.f32 %v240, %v307
      %v312 = vmul.f32 %v241, %v307
      %v313 = vmul.f32 %v242, %v307
      %v314 = vmul.f32 %v243, %v307
      %v315 = vmul.f32 %v244, %v307
      %v316 = vmul.f32 %v245, %v307
      %v317 = vmul.f32 %v246, %v307
      %v318 = vmul.f32 %v247, %v307
      %v319 = vmul.f32 %v248, %v307
      %v320 = vmul.f32 %v249, %v307
      %v321 = vmul.f32 %v250, %v307
      %v322 = vmul.f32 %v251, %v307
      %v323 = vmul.f32 %v252, %v307
      %v324 = vmul.f32 %v253, %v307
      %v325 = vmul.f32 %v254, %v307
      %v326 = vmul.f32 %v255, %v307
      %v327 = vmul.f32 %v256, %v307
      %v328 = vmul.f32 %v257, %v307
      %v329 = vmul.f32 %v258, %v307
      %v330 = vmul.f32 %v259, %v307
      %v331 = vmul.f32 %v260, %v307
      %v332 = vmul.f32 %v261, %v307
      %v333 = vmul.f32 %v262, %v307
      %v334 = vmul.f32 %v263, %v307
      %v335 = vmul.f32 %v264, %v307
      %v336 = vmul.f32 %v265, %v307
      %v337 = vmul.f32 %v266, %v307
      %v338 = vmul.f32 %v267, %v307
      %v339 = vmul.f32 %v268, %v307
      %v340 = vmul.f32 %v269, %v307
      %v341 = vmul.f32 %v270, %v307
      %v342 = vmul.f32 %v271, %v307
      %v343 = vmul.f32 %v272, %v307
      %v344 = vmul.f32 %v273, %v307
      %v345 = vmul.f32 %v274, %v307
      %v346 = vmul.f32 %v275, %v307
      %v347 = vmul.f32 %v276, %v307
      %v348 = vmul.f32 %v277, %v307
      %v349 = vmul.f32 %v278, %v307
      %v350 = vmul.f32 %v279, %v307
      %v351 = vmul.f32 %v280, %v307
      %v352 = vmul.f32 %v281, %v307
      %v353 = vmul.f32 %v282, %v307
      %v354 = vmul.f32 %v283, %v307
      %v355 = vmul.f32 %v284, %v307
      %v356 = vmul.f32 %v285, %v307
      %v357 = vmul.f32 %v286, %v307
      %v358 = vmul.f32 %v287, %v307
      %v359 = vmul.f32 %v288, %v307
      %v360 = vmul.f32 %v289, %v307
      %v361 = vmul.f32 %v290, %v307
      %v362 = vmul.f32 %v291, %v307
      %v363 = vmul.f32 %v292, %v307
      %v364 = vmul.f32 %v293, %v307
      %v365 = vmul.f32 %v294, %v307
      %v366 = vmul.f32 %v295, %v307
      %v367 = vmul.f32 %v296, %v307
      %v368 = vmul.f32 %v297, %v307
      %v369 = vmul.f32 %v298, %v307
      %v370 = vmul.f32 %v299, %v307
      %v371 = vmul.f32 %v300, %v307
      %v372 = vmul.f32 %v301, %v307
      %v373 = vld [vmem:[%s2] sm:$0x1]
      %v375 = vlaneseq
      %v376 = vshrl.u32 %v375, 7
      %v377 = vsub.s32 0, %v376
      %v378 = vrot.slane %v373, %v377
      %v380 = vadd.f32 %v309, %v378
      %v381 = vadd.f32 %v310, %v378
      %v382 = vadd.f32 %v311, %v378
      %v383 = vadd.f32 %v312, %v378
      %v384 = vadd.f32 %v313, %v378
      %v385 = vadd.f32 %v314, %v378
      %v386 = vadd.f32 %v315, %v378
      %v387 = vadd.f32 %v316, %v378
      %v388 = vadd.f32 %v317, %v378
      %v389 = vadd.f32 %v318, %v378
      %v390 = vadd.f32 %v319, %v378
      %v391 = vadd.f32 %v320, %v378
      %v392 = vadd.f32 %v321, %v378
      %v393 = vadd.f32 %v322, %v378
      %v394 = vadd.f32 %v323, %v378
      %v395 = vadd.f32 %v324, %v378
      %v396 = vadd.f32 %v325, %v378
      %v397 = vadd.f32 %v326, %v378
      %v398 = vadd.f32 %v327, %v378
      %v399 = vadd.f32 %v328, %v378
      %v400 = vadd.f32 %v329, %v378
      %v401 = vadd.f32 %v330, %v378
      %v402 = vadd.f32 %v331, %v378
      %v403 = vadd.f32 %v332, %v378
      %v404 = vadd.f32 %v333, %v378
      %v405 = vadd.f32 %v334, %v378
      %v406 = vadd.f32 %v335, %v378
      %v407 = vadd.f32 %v336, %v378
      %v408 = vadd.f32 %v337, %v378
      %v409 = vadd.f32 %v338, %v378
      %v410 = vadd.f32 %v339, %v378
      %v411 = vadd.f32 %v340, %v378
      %v412 = vadd.f32 %v341, %v378
      %v413 = vadd.f32 %v342, %v378
      %v414 = vadd.f32 %v343, %v378
      %v415 = vadd.f32 %v344, %v378
      %v416 = vadd.f32 %v345, %v378
      %v417 = vadd.f32 %v346, %v378
      %v418 = vadd.f32 %v347, %v378
      %v419 = vadd.f32 %v348, %v378
      %v420 = vadd.f32 %v349, %v378
      %v421 = vadd.f32 %v350, %v378
      %v422 = vadd.f32 %v351, %v378
      %v423 = vadd.f32 %v352, %v378
      %v424 = vadd.f32 %v353, %v378
      %v425 = vadd.f32 %v354, %v378
      %v426 = vadd.f32 %v355, %v378
      %v427 = vadd.f32 %v356, %v378
      %v428 = vadd.f32 %v357, %v378
      %v429 = vadd.f32 %v358, %v378
      %v430 = vadd.f32 %v359, %v378
      %v431 = vadd.f32 %v360, %v378
      %v432 = vadd.f32 %v361, %v378
      %v433 = vadd.f32 %v362, %v378
      %v434 = vadd.f32 %v363, %v378
      %v435 = vadd.f32 %v364, %v378
      %v436 = vadd.f32 %v365, %v378
      %v437 = vadd.f32 %v366, %v378
      %v438 = vadd.f32 %v367, %v378
      %v439 = vadd.f32 %v368, %v378
      %v440 = vadd.f32 %v369, %v378
      %v441 = vadd.f32 %v370, %v378
      %v442 = vadd.f32 %v371, %v378
      %v443 = vadd.f32 %v372, %v378
      %444 = vst [vmem:[%s172] sm:$0xff] %v380
      %445 = vst [vmem:[%s172 + $0x8] sm:$0xff] %v381
      %446 = vst [vmem:[%s172 + $0x10] sm:$0xff] %v382
      %447 = vst [vmem:[%s172 + $0x18] sm:$0xff] %v383
      %448 = vst [vmem:[%s172 + $0x20] sm:$0xff] %v384
      %449 = vst [vmem:[%s172 + $0x28] sm:$0xff] %v385
      %450 = vst [vmem:[%s172 + $0x30] sm:$0xff] %v386
      %451 = vst [vmem:[%s172 + $0x38] sm:$0xff] %v387
      %452 = vst [vmem:[%s172 + $0x40] sm:$0xff] %v388
      %453 = vst [vmem:[%s172 + $0x48] sm:$0xff] %v389
      %454 = vst [vmem:[%s172 + $0x50] sm:$0xff] %v390
      %455 = vst [vmem:[%s172 + $0x58] sm:$0xff] %v391
      %456 = vst [vmem:[%s172 + $0x60] sm:$0xff] %v392
      %457 = vst [vmem:[%s172 + $0x68] sm:$0xff] %v393
      %458 = vst [vmem:[%s172 + $0x70] sm:$0xff] %v394
      %459 = vst [vmem:[%s172 + $0x78] sm:$0xff] %v395
      %460 = vst [vmem:[%s172 + $0x80] sm:$0xff] %v396
      %461 = vst [vmem:[%s172 + $0x88] sm:$0xff] %v397
      %462 = vst [vmem:[%s172 + $0x90] sm:$0xff] %v398
      %463 = vst [vmem:[%s172 + $0x98] sm:$0xff] %v399
      %464 = vst [vmem:[%s172 + $0xa0] sm:$0xff] %v400
      %465 = vst [vmem:[%s172 + $0xa8] sm:$0xff] %v401
      %466 = vst [vmem:[%s172 + $0xb0] sm:$0xff] %v402
      %467 = vst [vmem:[%s172 + $0xb8] sm:$0xff] %v403
      %468 = vst [vmem:[%s172 + $0xc0] sm:$0xff] %v404
      %469 = vst [vmem:[%s172 + $0xc8] sm:$0xff] %v405
      %470 = vst [vmem:[%s172 + $0xd0] sm:$0xff] %v406
      %471 = vst [vmem:[%s172 + $0xd8] sm:$0xff] %v407
      %472 = vst [vmem:[%s172 + $0xe0] sm:$0xff] %v408
      %473 = vst [vmem:[%s172 + $0xe8] sm:$0xff] %v409
      %474 = vst [vmem:[%s172 + $0xf0] sm:$0xff] %v410
      %475 = vst [vmem:[%s172 + $0xf8] sm:$0xff] %v411
      %476 = vst [vmem:[%s172 + $0x100] sm:$0xff] %v412
      %477 = vst [vmem:[%s172 + $0x108] sm:$0xff] %v413
      %478 = vst [vmem:[%s172 + $0x110] sm:$0xff] %v414
      %479 = vst [vmem:[%s172 + $0x118] sm:$0xff] %v415
      %480 = vst [vmem:[%s172 + $0x120] sm:$0xff] %v416
      %481 = vst [vmem:[%s172 + $0x128] sm:$0xff] %v417
      %482 = vst [vmem:[%s172 + $0x130] sm:$0xff] %v418
      %483 = vst [vmem:[%s172 + $0x138] sm:$0xff] %v419
      %484 = vst [vmem:[%s172 + $0x140] sm:$0xff] %v420
      %485 = vst [vmem:[%s172 + $0x148] sm:$0xff] %v421
      %486 = vst [vmem:[%s172 + $0x150] sm:$0xff] %v422
      %487 = vst [vmem:[%s172 + $0x158] sm:$0xff] %v423
      %488 = vst [vmem:[%s172 + $0x160] sm:$0xff] %v424
      %489 = vst [vmem:[%s172 + $0x168] sm:$0xff] %v425
      %490 = vst [vmem:[%s172 + $0x170] sm:$0xff] %v426
      %491 = vst [vmem:[%s172 + $0x178] sm:$0xff] %v427
      %492 = vst [vmem:[%s172 + $0x180] sm:$0xff] %v428
      %493 = vst [vmem:[%s172 + $0x188] sm:$0xff] %v429
      %494 = vst [vmem:[%s172 + $0x190] sm:$0xff] %v430
      %495 = vst [vmem:[%s172 + $0x198] sm:$0xff] %v431
      %496 = vst [vmem:[%s172 + $0x1a0] sm:$0xff] %v432
      %497 = vst [vmem:[%s172 + $0x1a8] sm:$0xff] %v433
      %498 = vst [vmem:[%s172 + $0x1b0] sm:$0xff] %v434
      %499 = vst [vmem:[%s172 + $0x1b8] sm:$0xff] %v435
      %500 = vst [vmem:[%s172 + $0x1c0] sm:$0xff] %v436
      %501 = vst [vmem:[%s172 + $0x1c8] sm:$0xff] %v437
      %502 = vst [vmem:[%s172 + $0x1d0] sm:$0xff] %v438
      %503 = vst [vmem:[%s172 + $0x1d8] sm:$0xff] %v439
      %504 = vst [vmem:[%s172 + $0x1e0] sm:$0xff] %v440
      %505 = vst [vmem:[%s172 + $0x1e8] sm:$0xff] %v441
      %506 = vst [vmem:[%s172 + $0x1f0] sm:$0xff] %v442
      %507 = vst [vmem:[%s172 + $0x1f8] sm:$0xff] %v443
      %s508 = smul.u32 64, %s14
      %p509 = scmp.lt.s32.totalorder %s508, 1023
      %s510 = scalar_select %p509, %s508, 1023
      %s511 = smul.addr %s510, 8
      %s512 = scalar_lea.vmem %s3, %s511
      // Predicated region
      $region33: #{g_forward.9} parent=31 // pred_check
        %p513 = pneg %p100
      $region34: #{g_forward.9} parent=31 // pred_check_branch
        %515 = sbr.rel (%p513) target = $region36
      $region35: #{g_forward.9} parent=31 // pred_region
        %s516 = smul.u32 64, %s14
      $region36: #{g_forward.9} parent=31 // pred_fallthru
        _
    $region32: #{g_forward.9} parent=5 // pred_fallthru
      _
    %p517 = scmp.le.s32.totalorder 2, %s9
    // Predicated region
    $region37: #{g_forward.9} parent=5 // pred_check
      %p518 = pneg %p517
    $region38: #{g_forward.9} parent=5 // pred_check_branch
      %520 = sbr.rel (%p518) target = $region40
    $region39: #{g_forward.9} parent=5 // pred_region
      %s521 = ssub.s32 %s9, 2
      // Predicated region
      $region41: #{g_forward.9} parent=39 // pred_check
        %p522 = pneg %p106
      $region42: #{g_forward.9} parent=39 // pred_check_branch
        %524 = sbr.rel (%p522) target = $region44
      $region43: #{g_forward.9} parent=39 // pred_region
        %s525 = smul.u32 64, %s15
        %p526 = scmp.lt.s32.totalorder %s525, 1023
        %s527 = scalar_select %p526, %s525, 1023
        %s528 = smul.addr %s527, 8
        %s529 = scalar_lea.vmem %s3, %s528
      $region44: #{g_forward.9} parent=39 // pred_fallthru
        _
    $region40: #{g_forward.9} parent=5 // pred_fallthru
      _
  $region6: #{g_forward.9} parent=0 // loop_footer
    %s13 = sadd.s32 1, %s9
  $region7: #{g_forward.9} parent=0 // loop_footer_branch
    %8 = sbr.rel target = $region3
  $region8: #{g_forward.9} parent=0 // loop_exit
    _

</llo_original>
